<compile_context>
chip_gen: v7x
topology: tpu7x:2x2x1
jax: 0.10.0
libtpu: 0.0.40
codegen_flags: <defaults>
</compile_context>

<pallas_src>
import functools

import numpy as np
import jax
import jax.numpy as jnp
from jax import lax
from jax.experimental import pallas as pl
from jax.experimental.pallas import tpu as pltpu


# ----------------------------------------------------------------------------
# Pallas kernel: whole decoder forward for one batch block (T static, small)
# ----------------------------------------------------------------------------
def decoder_kernel(
    enc_ref, ytp_ref, h0_ref, c0_ref,
    wenc_ref, b12_ref, wcomb_ref, w3_ref, wih_ref, bl_ref, wffh_ref, bff_ref,
    weights_ref, final_ref,
    ep_ref, ef_ref,
    *, T, H,
):
    f32 = jnp.float32
    BB = h0_ref.shape[0]
    dot32 = functools.partial(jnp.dot, preferred_element_type=f32)

    # ---- one-time precompute: single bf16 MXU matmul for all enc columns ----
    #   cols 0:H  -> attention Linear1+2 fold applied to the encoder slice
    #   col  H    -> folded fc (y_tilde) column
    #   col  H+1  -> folded fc_final context column
    comb = lax.dot_general(enc_ref[...], wenc_ref[...],
                           (((2,), (0,)), ((), ())),
                           preferred_element_type=f32)            # (BB,T,H+2)
    ep_ref[...] = comb[..., :H] + b12_ref[...][None, :, :]         # (BB,T,H)
    ef_ref[...] = comb[..., H:]                                    # (BB,T,2)

    # Attention position j uses hidden/cell of direction j % 2 (T even).
    parity_even = (lax.broadcasted_iota(jnp.int32, (1, T, 1), 1) % 2) == 0

    h_cat = h0_ref[...]            # (BB, 2H) = [h_fwd | h_bwd]
    c_cat = c0_ref[...]            # (BB, 2H)
    w_acc = jnp.zeros((BB, T, 1), f32)
    alpha = w_acc                  # overwritten on every loop iteration

    for t in range(T):
        # One fused MXU push per step: LSTM recurrent gates (cols 0:8H,
        # vreg-aligned slice) + the 4 attention h/c projections (cols 8H:10H).
        hc = jnp.concatenate([h_cat, c_cat], axis=-1).astype(jnp.bfloat16)
        big = dot32(hc, wcomb_ref[...])                            # (BB,10H) f32
        gate_h = big[:, :8 * H]
        proj_f = big[:, 8 * H:9 * H][:, None, :]                   # (BB,1,H)
        proj_b = big[:, 9 * H:10 * H][:, None, :]

        # ---- attention over the T encoder positions (T stays on sublanes) ---
        a3 = jnp.tanh(ep_ref[...] + jnp.where(parity_even, proj_f, proj_b))
        # attention Linear3 bias cancels inside the softmax -> dropped.
        e = jnp.sum(a3 * w3_ref[...][None, :, :], axis=-1, keepdims=True)
        m = jnp.max(e, axis=1, keepdims=True)
        p = jnp.exp(e - m)
        alpha = p * pl.reciprocal(jnp.sum(p, axis=1, keepdims=True), approx=True)
        w_acc = w_acc + alpha                                      # (BB,T,1)

        # ---- fully folded fc: y_tilde is one scalar per row ------------------
        y_tilde = (jnp.sum(alpha * ef_ref[:, :, 0:1], axis=1)
                   + ytp_ref[:, t:t + 1])                          # (BB,1)

        # ---- one-step bidirectional LSTM cell (both directions fused) --------
        # gate lane layout: [i_f i_b f_f f_b o_f o_b | g_f g_b]
        gates = gate_h + y_tilde * wih_ref[...] + bl_ref[...]      # (BB,8H)
        sg = jax.nn.sigmoid(gates[:, :6 * H])
        g_g = jnp.tanh(gates[:, 6 * H:])
        i_g = sg[:, 0:2 * H]
        f_g = sg[:, 2 * H:4 * H]
        o_g = sg[:, 4 * H:6 * H]
        c_cat = f_g * c_cat + i_g * g_g
        h_cat = o_g * jnp.tanh(c_cat)

    weights_ref[...] = w_acc * (1.0 / T)
    # context is only consumed by fc_final -> use the precomputed enc@Wff_ctx
    # column with the LAST step's alpha instead of ever building context.
    ctx_ff = jnp.sum(alpha * ef_ref[:, :, 1:2], axis=1)            # (BB,1)
    final_ref[...] = (jnp.sum(h_cat[:, :H] * wffh_ref[...], axis=-1, keepdims=True)
                      + ctx_ff + bff_ref[...])


# ----------------------------------------------------------------------------
# Wrapper: host-side weight folding / fusing, batch-parallel pallas_call
# ----------------------------------------------------------------------------
def pick_batch_tile(B, max_tile=256):
    """Batch tile: multiple of 8 (or == B), divides B, capped at 256; when the
    batch allows it, pick a tile giving >=2 grid steps (v7x has 2 TCs)."""
    if B > max_tile:
        for cand in range(max_tile, 7, -8):
            if B % cand == 0:
                return cand
        return B
    half = B // 2
    if B % 2 == 0 and half % 8 == 0:
        return half
    return B


def decoder_forward(p, input_encoded, y_history, speed, h_init, c_init, *, T, H):
    B = input_encoded.shape[0]
    f32, bf16 = jnp.float32, jnp.bfloat16

    # ---- fold attention Linear1 into Linear2 (no nonlinearity between) ------
    W12 = p["W1"].T @ p["W2"].T                        # (4H, H)
    b12 = p["b1"] @ p["W2"].T + p["b2"]                # (H,)
    W12h, W12c, W12e = W12[:H], W12[H:2 * H], W12[2 * H:]

    # ---- fold fc Linear1 into Linear2 (no nonlinearity between) -------------
    Wf_fold = p["Wf1"].T @ p["Wf2"].T                  # (2H+2, 1)
    bf_fold = p["bf1"] @ p["Wf2"].T + p["bf2"]         # (1,)
    wfc = Wf_fold[:2 * H]                              # (2H, 1) context column
    cy = Wf_fold[2 * H, 0]                             # y_history scalar
    cs = Wf_fold[2 * H + 1, 0]                         # speed scalar
    c0fc = bf_fold[0]                                  # fused fc bias scalar

    # ---- fc_final split ------------------------------------------------------
    wffh = p["Wff"][:, :H]                             # (1, H)   hidden part
    wffc_col = p["Wff"][:, H:].T                       # (2H, 1)  context part

    # Encoder-side combined weight: [attn proj | fc col | fc_final col]
    w_enc_all = jnp.concatenate([W12e, wfc, wffc_col], axis=1).astype(bf16)  # (2H,H+2)

    # ---- fused per-step weight: LSTM gate block first (aligned), attn last --
    def gate_layout(wf, wb):   # torch [i,f,g,o] cols -> [i_f i_b f_f f_b o_f o_b g_f g_b]
        i_f, f_f, g_f, o_f = jnp.split(wf, 4, axis=-1)
        i_b, f_b, g_b, o_b = jnp.split(wb, 4, axis=-1)
        return jnp.concatenate([i_f, i_b, f_f, f_b, o_f, o_b, g_f, g_b], axis=-1)

    ZH4 = jnp.zeros((H, 4 * H), f32)
    whh_stacked = gate_layout(jnp.concatenate([p["Whh_f"].T, ZH4], axis=0),   # rows 0:H  act on h_f
                              jnp.concatenate([ZH4, p["Whh_b"].T], axis=0))   # rows H:2H act on h_b
    gate_block = jnp.concatenate([whh_stacked, jnp.zeros((2 * H, 8 * H), f32)], axis=0)  # (4H,8H)
    Z = jnp.zeros((H, H), f32)
    W_attn = jnp.concatenate([                          # rows [h_f|h_b|c_f|c_b], cols [fwd H | bwd H]
        jnp.concatenate([W12h, Z], axis=1),
        jnp.concatenate([Z, W12h], axis=1),
        jnp.concatenate([W12c, Z], axis=1),
        jnp.concatenate([Z, W12c], axis=1),
    ], axis=0)                                          # (4H, 2H)
    w_comb = jnp.concatenate([gate_block, W_attn], axis=1).astype(bf16)       # (4H, 10H)

    wih_row = gate_layout(p["Wih_f"].T, p["Wih_b"].T)                         # (1, 8H)
    bl_row = gate_layout((p["bih_f"] + p["bhh_f"])[None, :],
                         (p["bih_b"] + p["bhh_b"])[None, :])                  # (1, 8H)

    # ---- inputs --------------------------------------------------------------
    h0_cat = jnp.concatenate([h_init[0], h_init[1]], axis=-1)   # (B, 2H)
    c0_cat = jnp.concatenate([c_init[0], c_init[1]], axis=-1)   # (B, 2H)
    # y_history / speed contribution to y_tilde, folded through the fc layers.
    ytp = y_history[:, :, 0] * cy + speed[:, :, 0] * cs + c0fc  # (B, T)
    enc_bf16 = input_encoded.astype(bf16)                       # MXU-only use

    batch_args = (enc_bf16, ytp, h0_cat, c0_cat)
    weight_args = (w_enc_all, b12[None, :], w_comb, p["W3"], wih_row, bl_row,
                   wffh, p["bff"][None, :])

    BB = pick_batch_tile(B)
    assert B % BB == 0
    grid = (B // BB,)

    def batch_spec(shape):
        nd = len(shape)
        blk = (BB,) + tuple(shape[1:])
        return pl.BlockSpec(blk, lambda b, _nd=nd: (b,) + (0,) * (_nd - 1))

    def full_spec(arr):
        nd = arr.ndim
        return pl.BlockSpec(arr.shape, lambda b, _nd=nd: (0,) * _nd)

    in_specs = ([batch_spec(a.shape) for a in batch_args]
                + [full_spec(w) for w in weight_args])
    out_specs = (batch_spec((B, T, 1)), batch_spec((B, 1)))
    out_shape = (jax.ShapeDtypeStruct((B, T, 1), f32),
                 jax.ShapeDtypeStruct((B, 1), f32))

    kernel = functools.partial(decoder_kernel, T=T, H=H)
    weights3, final = pl.pallas_call(
        kernel,
        out_shape=out_shape,
        grid=grid,
        in_specs=in_specs,
        out_specs=out_specs,
        scratch_shapes=[pltpu.VMEM((BB, T, H), f32),    # enc attention proj
                        pltpu.VMEM((BB, T, 2), f32)],   # folded fc / fc_final cols
        compiler_params=pltpu.CompilerParams(dimension_semantics=("parallel",)),
    )(*batch_args, *weight_args)
    return weights3[..., 0], final


# ----------------------------------------------------------------------------
# Deterministic parameter init (synthetic — no checkpoint load)
# ----------------------------------------------------------------------------
def orthogonal(key, shape, dtype=jnp.float32):
    rows = shape[0]
    cols = int(np.prod(shape[1:]))
    a = jax.random.normal(key, (max(rows, cols), min(rows, cols)), dtype)
    q, r = jnp.linalg.qr(a)
    q = q * jnp.sign(jnp.diagonal(r))[None, :]
    if rows < cols:
        q = q.T
    return q[:rows, :cols].reshape(shape).astype(dtype)


def linear_params(key, out_dim, in_dim):
    kw, kb = jax.random.split(key)
    bound = 1.0 / np.sqrt(in_dim)
    W = jax.random.uniform(kw, (out_dim, in_dim), jnp.float32, -bound, bound)
    b = jax.random.uniform(kb, (out_dim,), jnp.float32, -bound, bound)
    return W, b


# ----------------------------------------------------------------------------
# Pure-JAX reference (mirrors the PyTorch forward literally, with concats)
# ----------------------------------------------------------------------------
def reference_forward(p, enc, y_history, speed, h_init, c_init, T, H):
    B = enc.shape[0]
    hidden, cell = h_init, c_init
    weights = jnp.zeros((B, T), jnp.float32)
    context = jnp.zeros((B, 2 * H), jnp.float32)
    rep = T // 2

    def cell_upd(W_ih, W_hh, b_ih, b_hh, x_in, h, c):
        g = x_in @ W_ih.T + b_ih + h @ W_hh.T + b_hh
        i, f, gg, o = jnp.split(g, 4, axis=1)
        c_new = jax.nn.sigmoid(f) * c + jax.nn.sigmoid(i) * jnp.tanh(gg)
        return jax.nn.sigmoid(o) * jnp.tanh(c_new), c_new

    for t in range(T):
        h_rep = jnp.transpose(jnp.tile(hidden, (rep, 1, 1)), (1, 0, 2))
        c_rep = jnp.transpose(jnp.tile(cell, (rep, 1, 1)), (1, 0, 2))
        x = jnp.concatenate([h_rep, c_rep, enc], axis=2).reshape(-1, 4 * H)
        a = jnp.tanh((x @ p["W1"].T + p["b1"]) @ p["W2"].T + p["b2"])
        e = (a @ p["W3"].T + p["b3"]).reshape(B, T)
        alpha = jax.nn.softmax(e, axis=1)
        weights = weights + alpha
        context = jnp.einsum("bt,btd->bd", alpha, enc)
        z = jnp.concatenate([context, y_history[:, t], speed[:, t]], axis=1)
        y_tilde = (z @ p["Wf1"].T + p["bf1"]) @ p["Wf2"].T + p["bf2"]
        hf, cf = cell_upd(p["Wih_f"], p["Whh_f"], p["bih_f"], p["bhh_f"], y_tilde, hidden[0], cell[0])
        hb, cb = cell_upd(p["Wih_b"], p["Whh_b"], p["bih_b"], p["bhh_b"], y_tilde, hidden[1], cell[1])
        hidden, cell = jnp.stack([hf, hb]), jnp.stack([cf, cb])
    final = jnp.concatenate([hidden[0], context], axis=1) @ p["Wff"].T + p["bff"]
    return weights / T, final


# ----------------------------------------------------------------------------
if __name__ == "__main__":
    B, H, T = 2, 32, 8          # batch, enc_hidden == dec_hidden, timesteps
    OUT = 1                     # out_feats

    root = jax.random.PRNGKey(0)
    ks = jax.random.split(root, 16)

    params = {}
    params["W1"], params["b1"] = linear_params(ks[0], H, 4 * H)        # attn L1
    params["W2"], params["b2"] = linear_params(ks[1], H, H)            # attn L2
    params["W3"], params["b3"] = linear_params(ks[2], 1, H)            # attn L3
    params["Wf1"], params["bf1"] = linear_params(ks[3], H, 2 * H + 2)  # fc L1
    params["Wf2"], params["bf2"] = linear_params(ks[4], OUT, H)        # fc L2
    params["Wih_f"], params["bih_f"] = linear_params(ks[5], 4 * H, OUT)
    params["Whh_f"], params["bhh_f"] = linear_params(ks[6], 4 * H, H)
    params["Wih_b"], params["bih_b"] = linear_params(ks[7], 4 * H, OUT)
    params["Whh_b"], params["bhh_b"] = linear_params(ks[8], 4 * H, H)
    params["Wff"], params["bff"] = linear_params(ks[9], OUT, 3 * H)    # fc_final

    input_encoded = jax.random.normal(ks[10], (B, T, 2 * H), jnp.float32)
    y_history = jax.random.normal(ks[11], (B, T, OUT), jnp.float32)
    speed = jax.random.normal(ks[12], (B, T, 1), jnp.float32)
    # init_hidden(..., bi=True) -> orthogonal (2*num_layer, B, H)
    h_init = orthogonal(ks[13], (2, B, H))
    c_init = orthogonal(ks[14], (2, B, H))
    # TODO(synk): the torch code also orthogonal-inits an initial `context`,
    # but with T >= 1 it is overwritten before first use, so it is omitted.

    weights_out, final_out = decoder_forward(
        params, input_encoded, y_history, speed, h_init, c_init, T=T, H=H)
    jax.block_until_ready((weights_out, final_out))

    w_ref, f_ref = reference_forward(
        params, input_encoded, y_history, speed, h_init, c_init, T, H)
    np.testing.assert_allclose(np.asarray(weights_out), np.asarray(w_ref),
                               rtol=5e-2, atol=5e-2)
    np.testing.assert_allclose(np.asarray(final_out), np.asarray(f_ref),
                               rtol=5e-2, atol=5e-2)
    assert weights_out.shape == (B, T) and final_out.shape == (B, 1)

    print("KERNEL_OK")
</pallas_src>

<mosaic_0001>
module attributes {stable_mosaic.version = 11 : i64} {
  func.func @decoder_kernel(%arg0: i32, %arg1: memref<2x8x64xbf16, #tpu.memory_space<vmem>>, %arg2: memref<2x8xf32, #tpu.memory_space<vmem>>, %arg3: memref<2x64xf32, #tpu.memory_space<vmem>>, %arg4: memref<2x64xf32, #tpu.memory_space<vmem>>, %arg5: memref<64x34xbf16, #tpu.memory_space<vmem>>, %arg6: memref<1x32xf32, #tpu.memory_space<vmem>>, %arg7: memref<128x320xbf16, #tpu.memory_space<vmem>>, %arg8: memref<1x32xf32, #tpu.memory_space<vmem>>, %arg9: memref<1x256xf32, #tpu.memory_space<vmem>>, %arg10: memref<1x256xf32, #tpu.memory_space<vmem>>, %arg11: memref<1x32xf32, #tpu.memory_space<vmem>>, %arg12: memref<1x1xf32, #tpu.memory_space<vmem>>, %arg13: memref<2x8x1xf32, #tpu.memory_space<vmem>>, %arg14: memref<2x1xf32, #tpu.memory_space<vmem>>, %arg15: memref<2x8x32xf32, #tpu.memory_space<vmem>>, %arg16: memref<2x8x2xf32, #tpu.memory_space<vmem>>) attributes {dimension_semantics = [#tpu.dimension_semantics<parallel>], iteration_bounds = array<i64: 1>, scalar_prefetch = 0 : i64, scratch_operands = 2 : i64, tpu.core_type = #tpu.core_type<tc>, window_params = [{transform_indices = @transform_0, window_bounds = array<i64: 2, 8, 64>}, {transform_indices = @transform_1, window_bounds = array<i64: 2, 8>}, {transform_indices = @transform_2, window_bounds = array<i64: 2, 64>}, {transform_indices = @transform_3, window_bounds = array<i64: 2, 64>}, {pipeline_mode = #tpu.pipeline_mode<synchronous>, transform_indices = @transform_4, window_bounds = array<i64: 64, 34>}, {pipeline_mode = #tpu.pipeline_mode<synchronous>, transform_indices = @transform_5, window_bounds = array<i64: 1, 32>}, {pipeline_mode = #tpu.pipeline_mode<synchronous>, transform_indices = @transform_6, window_bounds = array<i64: 128, 320>}, {pipeline_mode = #tpu.pipeline_mode<synchronous>, transform_indices = @transform_7, window_bounds = array<i64: 1, 32>}, {pipeline_mode = #tpu.pipeline_mode<synchronous>, transform_indices = @transform_8, window_bounds = array<i64: 1, 256>}, {pipeline_mode = #tpu.pipeline_mode<synchronous>, transform_indices = @transform_9, window_bounds = array<i64: 1, 256>}, {pipeline_mode = #tpu.pipeline_mode<synchronous>, transform_indices = @transform_10, window_bounds = array<i64: 1, 32>}, {pipeline_mode = #tpu.pipeline_mode<synchronous>, transform_indices = @transform_11, window_bounds = array<i64: 1, 1>}, {transform_indices = @transform_12, window_bounds = array<i64: 2, 8, 1>}, {transform_indices = @transform_13, window_bounds = array<i64: 2, 1>}]} {
    %c0 = arith.constant 0 : index
    %c0_0 = arith.constant 0 : index
    %c0_1 = arith.constant 0 : index
    %0 = vector.load %arg1[%c0, %c0_0, %c0_1] : memref<2x8x64xbf16, #tpu.memory_space<vmem>>, vector<2x8x64xbf16>
    %c0_2 = arith.constant 0 : index
    %c0_3 = arith.constant 0 : index
    %1 = vector.load %arg5[%c0_2, %c0_3] : memref<64x34xbf16, #tpu.memory_space<vmem>>, vector<64x34xbf16>
    %cst = arith.constant dense<0.000000e+00> : vector<2x8x34xf32>
    %2 = tpu.matmul %0, %1, %cst {dimension_numbers = #tpu.dot_dimension_numbers<[2], [0], [0, 1], [1], [0, 0, 0, 1, 1, 1], [], []>} : vector<2x8x64xbf16>, vector<64x34xbf16>, vector<2x8x34xf32> -> vector<2x8x34xf32>
    %3 = vector.extract_strided_slice %2 {offsets = [0, 0, 0], sizes = [2, 8, 32], strides = [1, 1, 1]} : vector<2x8x34xf32> to vector<2x8x32xf32>
    %c0_4 = arith.constant 0 : index
    %c0_5 = arith.constant 0 : index
    %4 = vector.load %arg6[%c0_4, %c0_5] : memref<1x32xf32, #tpu.memory_space<vmem>>, vector<1x32xf32>
    %5 = vector.shape_cast %4 : vector<1x32xf32> to vector<1x1x32xf32>
    %6 = vector.broadcast %5 : vector<1x1x32xf32> to vector<2x8x32xf32>
    %7 = arith.addf %3, %6 : vector<2x8x32xf32>
    %c0_6 = arith.constant 0 : index
    %c0_7 = arith.constant 0 : index
    %c0_8 = arith.constant 0 : index
    %8 = vector.load %arg15[%c0_6, %c0_7, %c0_8] : memref<2x8x32xf32, #tpu.memory_space<vmem>>, vector<2x8x32xf32>
    tpu.vector_store %arg15[%c0_6, %c0_7, %c0_8], %7 {strides = array<i32>} : memref<2x8x32xf32, #tpu.memory_space<vmem>>, vector<2x8x32xf32>,
    %9 = vector.extract_strided_slice %2 {offsets = [0, 0, 32], sizes = [2, 8, 2], strides = [1, 1, 1]} : vector<2x8x34xf32> to vector<2x8x2xf32>
    %c0_9 = arith.constant 0 : index
    %c0_10 = arith.constant 0 : index
    %c0_11 = arith.constant 0 : index
    %10 = vector.load %arg16[%c0_9, %c0_10, %c0_11] : memref<2x8x2xf32, #tpu.memory_space<vmem>>, vector<2x8x2xf32>
    tpu.vector_store %arg16[%c0_9, %c0_10, %c0_11], %9 {strides = array<i32>} : memref<2x8x2xf32, #tpu.memory_space<vmem>>, vector<2x8x2xf32>,
    %11 = tpu.iota {dimensions = array<i32: 1>} : vector<1x8x1xi32>
    %c2_i32 = arith.constant 2 : i32
    %c0_i32 = arith.constant 0 : i32
    %12 = arith.cmpi eq, %c2_i32, %c0_i32 : i32
    %c1_i32 = arith.constant 1 : i32
    %13 = arith.select %12, %c1_i32, %c2_i32 : i32
    %14 = vector.broadcast %13 : i32 to vector<1x8x1xi32>
    %15 = arith.remsi %11, %14 : vector<1x8x1xi32>
    %c0_i32_12 = arith.constant 0 : i32
    %16 = vector.broadcast %c0_i32_12 : i32 to vector<1x8x1xi32>
    %17 = arith.cmpi ne, %15, %16 : vector<1x8x1xi32>
    %c0_i32_13 = arith.constant 0 : i32
    %18 = vector.broadcast %c0_i32_13 : i32 to vector<1x8x1xi32>
    %19 = arith.cmpi slt, %15, %18 : vector<1x8x1xi32>
    %c0_i32_14 = arith.constant 0 : i32
    %20 = arith.cmpi slt, %13, %c0_i32_14 : i32
    %21 = vector.broadcast %20 : i1 to vector<1x8x1xi1>
    %22 = vector.broadcast %21 : vector<1x8x1xi1> to vector<1x8x1xi1>
    %23 = arith.xori %19, %22 : vector<1x8x1xi1>
    %24 = arith.andi %23, %17 : vector<1x8x1xi1>
    %25 = vector.broadcast %13 : i32 to vector<1x8x1xi32>
    %26 = arith.addi %15, %25 : vector<1x8x1xi32>
    %27 = arith.select %24, %26, %15 : vector<1x8x1xi1>, vector<1x8x1xi32>
    %c0_i32_15 = arith.constant 0 : i32
    %28 = vector.broadcast %c0_i32_15 : i32 to vector<1x8x1xi32>
    %29 = arith.cmpi eq, %27, %28 : vector<1x8x1xi32>
    %c0_16 = arith.constant 0 : index
    %c0_17 = arith.constant 0 : index
    %30 = vector.load %arg3[%c0_16, %c0_17] : memref<2x64xf32, #tpu.memory_space<vmem>>, vector<2x64xf32>
    %c0_18 = arith.constant 0 : index
    %c0_19 = arith.constant 0 : index
    %31 = vector.load %arg4[%c0_18, %c0_19] : memref<2x64xf32, #tpu.memory_space<vmem>>, vector<2x64xf32>
    %cst_20 = arith.constant 0.000000e+00 : f32
    %32 = vector.broadcast %cst_20 : f32 to vector<2x8x1xf32>
    %33 = tpu.concatenate %30, %31 in 1 : vector<2x64xf32>, vector<2x64xf32> -> vector<2x128xf32>
    %34 = arith.truncf %33 : vector<2x128xf32> to vector<2x128xbf16>
    %c0_21 = arith.constant 0 : index
    %c0_22 = arith.constant 0 : index
    %35 = vector.load %arg7[%c0_21, %c0_22] : memref<128x320xbf16, #tpu.memory_space<vmem>>, vector<128x320xbf16>
    %cst_23 = arith.constant dense<0.000000e+00> : vector<2x320xf32>
    %36 = tpu.matmul %34, %35, %cst_23 {dimension_numbers = #tpu.dot_dimension_numbers<[1], [0], [0], [1], [0, 0, 1, 1], [], []>} : vector<2x128xbf16>, vector<128x320xbf16>, vector<2x320xf32> -> vector<2x320xf32>
    %37 = vector.extract_strided_slice %36 {offsets = [0, 0], sizes = [2, 256], strides = [1, 1]} : vector<2x320xf32> to vector<2x256xf32>
    %38 = vector.extract_strided_slice %36 {offsets = [0, 256], sizes = [2, 32], strides = [1, 1]} : vector<2x320xf32> to vector<2x32xf32>
    %39 = vector.shape_cast %38 : vector<2x32xf32> to vector<2x1x32xf32>
    %40 = vector.extract_strided_slice %36 {offsets = [0, 288], sizes = [2, 32], strides = [1, 1]} : vector<2x320xf32> to vector<2x32xf32>
    %41 = vector.shape_cast %40 : vector<2x32xf32> to vector<2x1x32xf32>
    %c0_24 = arith.constant 0 : index
    %c0_25 = arith.constant 0 : index
    %c0_26 = arith.constant 0 : index
    %42 = vector.load %arg15[%c0_24, %c0_25, %c0_26] : memref<2x8x32xf32, #tpu.memory_space<vmem>>, vector<2x8x32xf32>
    %43 = vector.shape_cast %29 : vector<1x8x1xi1> to vector<1x8x1xi1>
    %44 = vector.broadcast %43 : vector<1x8x1xi1> to vector<2x8x32xi1>
    %45 = vector.shape_cast %39 : vector<2x1x32xf32> to vector<2x1x32xf32>
    %46 = vector.broadcast %45 : vector<2x1x32xf32> to vector<2x8x32xf32>
    %47 = vector.shape_cast %41 : vector<2x1x32xf32> to vector<2x1x32xf32>
    %48 = vector.broadcast %47 : vector<2x1x32xf32> to vector<2x8x32xf32>
    %49 = arith.select %44, %46, %48 : vector<2x8x32xi1>, vector<2x8x32xf32>
    %50 = arith.addf %42, %49 : vector<2x8x32xf32>
    %51 = math.tanh %50 : vector<2x8x32xf32>
    %c0_27 = arith.constant 0 : index
    %c0_28 = arith.constant 0 : index
    %52 = vector.load %arg8[%c0_27, %c0_28] : memref<1x32xf32, #tpu.memory_space<vmem>>, vector<1x32xf32>
    %53 = vector.shape_cast %52 : vector<1x32xf32> to vector<1x1x32xf32>
    %54 = vector.broadcast %53 : vector<1x1x32xf32> to vector<2x8x32xf32>
    %55 = arith.mulf %51, %54 : vector<2x8x32xf32>
    %cst_29 = arith.constant dense<0.000000e+00> : vector<2x8xf32>
    %56 = vector.multi_reduction <add>, %55, %cst_29 [2] : vector<2x8x32xf32> to vector<2x8xf32>
    %57 = vector.shape_cast %56 : vector<2x8xf32> to vector<2x8x1xf32>
    %cst_30 = arith.constant dense<0xFF800000> : vector<2x1xf32>
    %58 = vector.multi_reduction <maximumf>, %57, %cst_30 [1] : vector<2x8x1xf32> to vector<2x1xf32>
    %59 = vector.shape_cast %58 : vector<2x1xf32> to vector<2x1x1xf32>
    %60 = vector.broadcast %59 : vector<2x1x1xf32> to vector<2x8x1xf32>
    %61 = arith.subf %57, %60 : vector<2x8x1xf32>
    %62 = math.exp %61 : vector<2x8x1xf32>
    %cst_31 = arith.constant dense<0.000000e+00> : vector<2x1xf32>
    %63 = vector.multi_reduction <add>, %62, %cst_31 [1] : vector<2x8x1xf32> to vector<2x1xf32>
    %64 = vector.shape_cast %63 : vector<2x1xf32> to vector<2x1x1xf32>
    %65 = tpu.reciprocal %64 {approx = true} : vector<2x1x1xf32> -> vector<2x1x1xf32>
    %66 = vector.broadcast %65 : vector<2x1x1xf32> to vector<2x8x1xf32>
    %67 = arith.mulf %62, %66 : vector<2x8x1xf32>
    %68 = arith.addf %32, %67 : vector<2x8x1xf32>
    %c0_32 = arith.constant 0 : index
    %c0_33 = arith.constant 0 : index
    %c0_34 = arith.constant 0 : index
    %69 = vector.load %arg16[%c0_32, %c0_33, %c0_34] : memref<2x8x2xf32, #tpu.memory_space<vmem>>, vector<2x8x1xf32>
    %70 = arith.mulf %67, %69 : vector<2x8x1xf32>
    %cst_35 = arith.constant dense<0.000000e+00> : vector<2x1xf32>
    %71 = vector.multi_reduction <add>, %70, %cst_35 [1] : vector<2x8x1xf32> to vector<2x1xf32>
    %c0_36 = arith.constant 0 : index
    %c0_37 = arith.constant 0 : index
    %72 = vector.load %arg2[%c0_36, %c0_37] : memref<2x8xf32, #tpu.memory_space<vmem>>, vector<2x1xf32>
    %73 = arith.addf %71, %72 : vector<2x1xf32>
    %c0_38 = arith.constant 0 : index
    %c0_39 = arith.constant 0 : index
    %74 = vector.load %arg9[%c0_38, %c0_39] : memref<1x256xf32, #tpu.memory_space<vmem>>, vector<1x256xf32>
    %75 = vector.broadcast %73 : vector<2x1xf32> to vector<2x256xf32>
    %76 = vector.broadcast %74 : vector<1x256xf32> to vector<2x256xf32>
    %77 = arith.mulf %75, %76 : vector<2x256xf32>
    %78 = arith.addf %37, %77 : vector<2x256xf32>
    %c0_40 = arith.constant 0 : index
    %c0_41 = arith.constant 0 : index
    %79 = vector.load %arg10[%c0_40, %c0_41] : memref<1x256xf32, #tpu.memory_space<vmem>>, vector<1x256xf32>
    %80 = vector.broadcast %79 : vector<1x256xf32> to vector<2x256xf32>
    %81 = arith.addf %78, %80 : vector<2x256xf32>
    %82 = vector.extract_strided_slice %81 {offsets = [0, 0], sizes = [2, 192], strides = [1, 1]} : vector<2x256xf32> to vector<2x192xf32>
    %83 = arith.negf %82 : vector<2x192xf32>
    %84 = math.exp %83 : vector<2x192xf32>
    %cst_42 = arith.constant 1.000000e+00 : f32
    %85 = vector.broadcast %cst_42 : f32 to vector<2x192xf32>
    %86 = arith.addf %85, %84 : vector<2x192xf32>
    %87 = arith.divf %85, %86 : vector<2x192xf32>
    %88 = vector.extract_strided_slice %81 {offsets = [0, 192], sizes = [2, 64], strides = [1, 1]} : vector<2x256xf32> to vector<2x64xf32>
    %89 = math.tanh %88 : vector<2x64xf32>
    %90 = vector.extract_strided_slice %87 {offsets = [0, 0], sizes = [2, 64], strides = [1, 1]} : vector<2x192xf32> to vector<2x64xf32>
    %91 = vector.extract_strided_slice %87 {offsets = [0, 64], sizes = [2, 64], strides = [1, 1]} : vector<2x192xf32> to vector<2x64xf32>
    %92 = vector.extract_strided_slice %87 {offsets = [0, 128], sizes = [2, 64], strides = [1, 1]} : vector<2x192xf32> to vector<2x64xf32>
    %93 = arith.mulf %91, %31 : vector<2x64xf32>
    %94 = arith.mulf %90, %89 : vector<2x64xf32>
    %95 = arith.addf %93, %94 : vector<2x64xf32>
    %96 = math.tanh %95 : vector<2x64xf32>
    %97 = arith.mulf %92, %96 : vector<2x64xf32>
    %98 = tpu.concatenate %97, %95 in 1 : vector<2x64xf32>, vector<2x64xf32> -> vector<2x128xf32>
    %99 = arith.truncf %98 : vector<2x128xf32> to vector<2x128xbf16>
    %c0_43 = arith.constant 0 : index
    %c0_44 = arith.constant 0 : index
    %100 = vector.load %arg7[%c0_43, %c0_44] : memref<128x320xbf16, #tpu.memory_space<vmem>>, vector<128x320xbf16>
    %cst_45 = arith.constant dense<0.000000e+00> : vector<2x320xf32>
    %101 = tpu.matmul %99, %100, %cst_45 {dimension_numbers = #tpu.dot_dimension_numbers<[1], [0], [0], [1], [0, 0, 1, 1], [], []>} : vector<2x128xbf16>, vector<128x320xbf16>, vector<2x320xf32> -> vector<2x320xf32>
    %102 = vector.extract_strided_slice %101 {offsets = [0, 0], sizes = [2, 256], strides = [1, 1]} : vector<2x320xf32> to vector<2x256xf32>
    %103 = vector.extract_strided_slice %101 {offsets = [0, 256], sizes = [2, 32], strides = [1, 1]} : vector<2x320xf32> to vector<2x32xf32>
    %104 = vector.shape_cast %103 : vector<2x32xf32> to vector<2x1x32xf32>
    %105 = vector.extract_strided_slice %101 {offsets = [0, 288], sizes = [2, 32], strides = [1, 1]} : vector<2x320xf32> to vector<2x32xf32>
    %106 = vector.shape_cast %105 : vector<2x32xf32> to vector<2x1x32xf32>
    %c0_46 = arith.constant 0 : index
    %c0_47 = arith.constant 0 : index
    %c0_48 = arith.constant 0 : index
    %107 = vector.load %arg15[%c0_46, %c0_47, %c0_48] : memref<2x8x32xf32, #tpu.memory_space<vmem>>, vector<2x8x32xf32>
    %108 = vector.shape_cast %29 : vector<1x8x1xi1> to vector<1x8x1xi1>
    %109 = vector.broadcast %108 : vector<1x8x1xi1> to vector<2x8x32xi1>
    %110 = vector.shape_cast %104 : vector<2x1x32xf32> to vector<2x1x32xf32>
    %111 = vector.broadcast %110 : vector<2x1x32xf32> to vector<2x8x32xf32>
    %112 = vector.shape_cast %106 : vector<2x1x32xf32> to vector<2x1x32xf32>
    %113 = vector.broadcast %112 : vector<2x1x32xf32> to vector<2x8x32xf32>
    %114 = arith.select %109, %111, %113 : vector<2x8x32xi1>, vector<2x8x32xf32>
    %115 = arith.addf %107, %114 : vector<2x8x32xf32>
    %116 = math.tanh %115 : vector<2x8x32xf32>
    %c0_49 = arith.constant 0 : index
    %c0_50 = arith.constant 0 : index
    %117 = vector.load %arg8[%c0_49, %c0_50] : memref<1x32xf32, #tpu.memory_space<vmem>>, vector<1x32xf32>
    %118 = vector.shape_cast %117 : vector<1x32xf32> to vector<1x1x32xf32>
    %119 = vector.broadcast %118 : vector<1x1x32xf32> to vector<2x8x32xf32>
    %120 = arith.mulf %116, %119 : vector<2x8x32xf32>
    %cst_51 = arith.constant dense<0.000000e+00> : vector<2x8xf32>
    %121 = vector.multi_reduction <add>, %120, %cst_51 [2] : vector<2x8x32xf32> to vector<2x8xf32>
    %122 = vector.shape_cast %121 : vector<2x8xf32> to vector<2x8x1xf32>
    %cst_52 = arith.constant dense<0xFF800000> : vector<2x1xf32>
    %123 = vector.multi_reduction <maximumf>, %122, %cst_52 [1] : vector<2x8x1xf32> to vector<2x1xf32>
    %124 = vector.shape_cast %123 : vector<2x1xf32> to vector<2x1x1xf32>
    %125 = vector.broadcast %124 : vector<2x1x1xf32> to vector<2x8x1xf32>
    %126 = arith.subf %122, %125 : vector<2x8x1xf32>
    %127 = math.exp %126 : vector<2x8x1xf32>
    %cst_53 = arith.constant dense<0.000000e+00> : vector<2x1xf32>
    %128 = vector.multi_reduction <add>, %127, %cst_53 [1] : vector<2x8x1xf32> to vector<2x1xf32>
    %129 = vector.shape_cast %128 : vector<2x1xf32> to vector<2x1x1xf32>
    %130 = tpu.reciprocal %129 {approx = true} : vector<2x1x1xf32> -> vector<2x1x1xf32>
    %131 = vector.broadcast %130 : vector<2x1x1xf32> to vector<2x8x1xf32>
    %132 = arith.mulf %127, %131 : vector<2x8x1xf32>
    %133 = arith.addf %68, %132 : vector<2x8x1xf32>
    %c0_54 = arith.constant 0 : index
    %c0_55 = arith.constant 0 : index
    %c0_56 = arith.constant 0 : index
    %134 = vector.load %arg16[%c0_54, %c0_55, %c0_56] : memref<2x8x2xf32, #tpu.memory_space<vmem>>, vector<2x8x1xf32>
    %135 = arith.mulf %132, %134 : vector<2x8x1xf32>
    %cst_57 = arith.constant dense<0.000000e+00> : vector<2x1xf32>
    %136 = vector.multi_reduction <add>, %135, %cst_57 [1] : vector<2x8x1xf32> to vector<2x1xf32>
    %c0_58 = arith.constant 0 : index
    %c1 = arith.constant 1 : index
    %137 = vector.load %arg2[%c0_58, %c1] : memref<2x8xf32, #tpu.memory_space<vmem>>, vector<2x1xf32>
    %138 = arith.addf %136, %137 : vector<2x1xf32>
    %c0_59 = arith.constant 0 : index
    %c0_60 = arith.constant 0 : index
    %139 = vector.load %arg9[%c0_59, %c0_60] : memref<1x256xf32, #tpu.memory_space<vmem>>, vector<1x256xf32>
    %140 = vector.broadcast %138 : vector<2x1xf32> to vector<2x256xf32>
    %141 = vector.broadcast %139 : vector<1x256xf32> to vector<2x256xf32>
    %142 = arith.mulf %140, %141 : vector<2x256xf32>
    %143 = arith.addf %102, %142 : vector<2x256xf32>
    %c0_61 = arith.constant 0 : index
    %c0_62 = arith.constant 0 : index
    %144 = vector.load %arg10[%c0_61, %c0_62] : memref<1x256xf32, #tpu.memory_space<vmem>>, vector<1x256xf32>
    %145 = vector.broadcast %144 : vector<1x256xf32> to vector<2x256xf32>
    %146 = arith.addf %143, %145 : vector<2x256xf32>
    %147 = vector.extract_strided_slice %146 {offsets = [0, 0], sizes = [2, 192], strides = [1, 1]} : vector<2x256xf32> to vector<2x192xf32>
    %148 = arith.negf %147 : vector<2x192xf32>
    %149 = math.exp %148 : vector<2x192xf32>
    %cst_63 = arith.constant 1.000000e+00 : f32
    %150 = vector.broadcast %cst_63 : f32 to vector<2x192xf32>
    %151 = arith.addf %150, %149 : vector<2x192xf32>
    %152 = arith.divf %150, %151 : vector<2x192xf32>
    %153 = vector.extract_strided_slice %146 {offsets = [0, 192], sizes = [2, 64], strides = [1, 1]} : vector<2x256xf32> to vector<2x64xf32>
    %154 = math.tanh %153 : vector<2x64xf32>
    %155 = vector.extract_strided_slice %152 {offsets = [0, 0], sizes = [2, 64], strides = [1, 1]} : vector<2x192xf32> to vector<2x64xf32>
    %156 = vector.extract_strided_slice %152 {offsets = [0, 64], sizes = [2, 64], strides = [1, 1]} : vector<2x192xf32> to vector<2x64xf32>
    %157 = vector.extract_strided_slice %152 {offsets = [0, 128], sizes = [2, 64], strides = [1, 1]} : vector<2x192xf32> to vector<2x64xf32>
    %158 = arith.mulf %156, %95 : vector<2x64xf32>
    %159 = arith.mulf %155, %154 : vector<2x64xf32>
    %160 = arith.addf %158, %159 : vector<2x64xf32>
    %161 = math.tanh %160 : vector<2x64xf32>
    %162 = arith.mulf %157, %161 : vector<2x64xf32>
    %163 = tpu.concatenate %162, %160 in 1 : vector<2x64xf32>, vector<2x64xf32> -> vector<2x128xf32>
    %164 = arith.truncf %163 : vector<2x128xf32> to vector<2x128xbf16>
    %c0_64 = arith.constant 0 : index
    %c0_65 = arith.constant 0 : index
    %165 = vector.load %arg7[%c0_64, %c0_65] : memref<128x320xbf16, #tpu.memory_space<vmem>>, vector<128x320xbf16>
    %cst_66 = arith.constant dense<0.000000e+00> : vector<2x320xf32>
    %166 = tpu.matmul %164, %165, %cst_66 {dimension_numbers = #tpu.dot_dimension_numbers<[1], [0], [0], [1], [0, 0, 1, 1], [], []>} : vector<2x128xbf16>, vector<128x320xbf16>, vector<2x320xf32> -> vector<2x320xf32>
    %167 = vector.extract_strided_slice %166 {offsets = [0, 0], sizes = [2, 256], strides = [1, 1]} : vector<2x320xf32> to vector<2x256xf32>
    %168 = vector.extract_strided_slice %166 {offsets = [0, 256], sizes = [2, 32], strides = [1, 1]} : vector<2x320xf32> to vector<2x32xf32>
    %169 = vector.shape_cast %168 : vector<2x32xf32> to vector<2x1x32xf32>
    %170 = vector.extract_strided_slice %166 {offsets = [0, 288], sizes = [2, 32], strides = [1, 1]} : vector<2x320xf32> to vector<2x32xf32>
    %171 = vector.shape_cast %170 : vector<2x32xf32> to vector<2x1x32xf32>
    %c0_67 = arith.constant 0 : index
    %c0_68 = arith.constant 0 : index
    %c0_69 = arith.constant 0 : index
    %172 = vector.load %arg15[%c0_67, %c0_68, %c0_69] : memref<2x8x32xf32, #tpu.memory_space<vmem>>, vector<2x8x32xf32>
    %173 = vector.shape_cast %29 : vector<1x8x1xi1> to vector<1x8x1xi1>
    %174 = vector.broadcast %173 : vector<1x8x1xi1> to vector<2x8x32xi1>
    %175 = vector.shape_cast %169 : vector<2x1x32xf32> to vector<2x1x32xf32>
    %176 = vector.broadcast %175 : vector<2x1x32xf32> to vector<2x8x32xf32>
    %177 = vector.shape_cast %171 : vector<2x1x32xf32> to vector<2x1x32xf32>
    %178 = vector.broadcast %177 : vector<2x1x32xf32> to vector<2x8x32xf32>
    %179 = arith.select %174, %176, %178 : vector<2x8x32xi1>, vector<2x8x32xf32>
    %180 = arith.addf %172, %179 : vector<2x8x32xf32>
    %181 = math.tanh %180 : vector<2x8x32xf32>
    %c0_70 = arith.constant 0 : index
    %c0_71 = arith.constant 0 : index
    %182 = vector.load %arg8[%c0_70, %c0_71] : memref<1x32xf32, #tpu.memory_space<vmem>>, vector<1x32xf32>
    %183 = vector.shape_cast %182 : vector<1x32xf32> to vector<1x1x32xf32>
    %184 = vector.broadcast %183 : vector<1x1x32xf32> to vector<2x8x32xf32>
    %185 = arith.mulf %181, %184 : vector<2x8x32xf32>
    %cst_72 = arith.constant dense<0.000000e+00> : vector<2x8xf32>
    %186 = vector.multi_reduction <add>, %185, %cst_72 [2] : vector<2x8x32xf32> to vector<2x8xf32>
    %187 = vector.shape_cast %186 : vector<2x8xf32> to vector<2x8x1xf32>
    %cst_73 = arith.constant dense<0xFF800000> : vector<2x1xf32>
    %188 = vector.multi_reduction <maximumf>, %187, %cst_73 [1] : vector<2x8x1xf32> to vector<2x1xf32>
    %189 = vector.shape_cast %188 : vector<2x1xf32> to vector<2x1x1xf32>
    %190 = vector.broadcast %189 : vector<2x1x1xf32> to vector<2x8x1xf32>
    %191 = arith.subf %187, %190 : vector<2x8x1xf32>
    %192 = math.exp %191 : vector<2x8x1xf32>
    %cst_74 = arith.constant dense<0.000000e+00> : vector<2x1xf32>
    %193 = vector.multi_reduction <add>, %192, %cst_74 [1] : vector<2x8x1xf32> to vector<2x1xf32>
    %194 = vector.shape_cast %193 : vector<2x1xf32> to vector<2x1x1xf32>
    %195 = tpu.reciprocal %194 {approx = true} : vector<2x1x1xf32> -> vector<2x1x1xf32>
    %196 = vector.broadcast %195 : vector<2x1x1xf32> to vector<2x8x1xf32>
    %197 = arith.mulf %192, %196 : vector<2x8x1xf32>
    %198 = arith.addf %133, %197 : vector<2x8x1xf32>
    %c0_75 = arith.constant 0 : index
    %c0_76 = arith.constant 0 : index
    %c0_77 = arith.constant 0 : index
    %199 = vector.load %arg16[%c0_75, %c0_76, %c0_77] : memref<2x8x2xf32, #tpu.memory_space<vmem>>, vector<2x8x1xf32>
    %200 = arith.mulf %197, %199 : vector<2x8x1xf32>
    %cst_78 = arith.constant dense<0.000000e+00> : vector<2x1xf32>
    %201 = vector.multi_reduction <add>, %200, %cst_78 [1] : vector<2x8x1xf32> to vector<2x1xf32>
    %c0_79 = arith.constant 0 : index
    %c2 = arith.constant 2 : index
    %202 = vector.load %arg2[%c0_79, %c2] : memref<2x8xf32, #tpu.memory_space<vmem>>, vector<2x1xf32>
    %203 = arith.addf %201, %202 : vector<2x1xf32>
    %c0_80 = arith.constant 0 : index
    %c0_81 = arith.constant 0 : index
    %204 = vector.load %arg9[%c0_80, %c0_81] : memref<1x256xf32, #tpu.memory_space<vmem>>, vector<1x256xf32>
    %205 = vector.broadcast %203 : vector<2x1xf32> to vector<2x256xf32>
    %206 = vector.broadcast %204 : vector<1x256xf32> to vector<2x256xf32>
    %207 = arith.mulf %205, %206 : vector<2x256xf32>
    %208 = arith.addf %167, %207 : vector<2x256xf32>
    %c0_82 = arith.constant 0 : index
    %c0_83 = arith.constant 0 : index
    %209 = vector.load %arg10[%c0_82, %c0_83] : memref<1x256xf32, #tpu.memory_space<vmem>>, vector<1x256xf32>
    %210 = vector.broadcast %209 : vector<1x256xf32> to vector<2x256xf32>
    %211 = arith.addf %208, %210 : vector<2x256xf32>
    %212 = vector.extract_strided_slice %211 {offsets = [0, 0], sizes = [2, 192], strides = [1, 1]} : vector<2x256xf32> to vector<2x192xf32>
    %213 = arith.negf %212 : vector<2x192xf32>
    %214 = math.exp %213 : vector<2x192xf32>
    %cst_84 = arith.constant 1.000000e+00 : f32
    %215 = vector.broadcast %cst_84 : f32 to vector<2x192xf32>
    %216 = arith.addf %215, %214 : vector<2x192xf32>
    %217 = arith.divf %215, %216 : vector<2x192xf32>
    %218 = vector.extract_strided_slice %211 {offsets = [0, 192], sizes = [2, 64], strides = [1, 1]} : vector<2x256xf32> to vector<2x64xf32>
    %219 = math.tanh %218 : vector<2x64xf32>
    %220 = vector.extract_strided_slice %217 {offsets = [0, 0], sizes = [2, 64], strides = [1, 1]} : vector<2x192xf32> to vector<2x64xf32>
    %221 = vector.extract_strided_slice %217 {offsets = [0, 64], sizes = [2, 64], strides = [1, 1]} : vector<2x192xf32> to vector<2x64xf32>
    %222 = vector.extract_strided_slice %217 {offsets = [0, 128], sizes = [2, 64], strides = [1, 1]} : vector<2x192xf32> to vector<2x64xf32>
    %223 = arith.mulf %221, %160 : vector<2x64xf32>
    %224 = arith.mulf %220, %219 : vector<2x64xf32>
    %225 = arith.addf %223, %224 : vector<2x64xf32>
    %226 = math.tanh %225 : vector<2x64xf32>
    %227 = arith.mulf %222, %226 : vector<2x64xf32>
    %228 = tpu.concatenate %227, %225 in 1 : vector<2x64xf32>, vector<2x64xf32> -> vector<2x128xf32>
    %229 = arith.truncf %228 : vector<2x128xf32> to vector<2x128xbf16>
    %c0_85 = arith.constant 0 : index
    %c0_86 = arith.constant 0 : index
    %230 = vector.load %arg7[%c0_85, %c0_86] : memref<128x320xbf16, #tpu.memory_space<vmem>>, vector<128x320xbf16>
    %cst_87 = arith.constant dense<0.000000e+00> : vector<2x320xf32>
    %231 = tpu.matmul %229, %230, %cst_87 {dimension_numbers = #tpu.dot_dimension_numbers<[1], [0], [0], [1], [0, 0, 1, 1], [], []>} : vector<2x128xbf16>, vector<128x320xbf16>, vector<2x320xf32> -> vector<2x320xf32>
    %232 = vector.extract_strided_slice %231 {offsets = [0, 0], sizes = [2, 256], strides = [1, 1]} : vector<2x320xf32> to vector<2x256xf32>
    %233 = vector.extract_strided_slice %231 {offsets = [0, 256], sizes = [2, 32], strides = [1, 1]} : vector<2x320xf32> to vector<2x32xf32>
    %234 = vector.shape_cast %233 : vector<2x32xf32> to vector<2x1x32xf32>
    %235 = vector.extract_strided_slice %231 {offsets = [0, 288], sizes = [2, 32], strides = [1, 1]} : vector<2x320xf32> to vector<2x32xf32>
    %236 = vector.shape_cast %235 : vector<2x32xf32> to vector<2x1x32xf32>
    %c0_88 = arith.constant 0 : index
    %c0_89 = arith.constant 0 : index
    %c0_90 = arith.constant 0 : index
    %237 = vector.load %arg15[%c0_88, %c0_89, %c0_90] : memref<2x8x32xf32, #tpu.memory_space<vmem>>, vector<2x8x32xf32>
    %238 = vector.shape_cast %29 : vector<1x8x1xi1> to vector<1x8x1xi1>
    %239 = vector.broadcast %238 : vector<1x8x1xi1> to vector<2x8x32xi1>
    %240 = vector.shape_cast %234 : vector<2x1x32xf32> to vector<2x1x32xf32>
    %241 = vector.broadcast %240 : vector<2x1x32xf32> to vector<2x8x32xf32>
    %242 = vector.shape_cast %236 : vector<2x1x32xf32> to vector<2x1x32xf32>
    %243 = vector.broadcast %242 : vector<2x1x32xf32> to vector<2x8x32xf32>
    %244 = arith.select %239, %241, %243 : vector<2x8x32xi1>, vector<2x8x32xf32>
    %245 = arith.addf %237, %244 : vector<2x8x32xf32>
    %246 = math.tanh %245 : vector<2x8x32xf32>
    %c0_91 = arith.constant 0 : index
    %c0_92 = arith.constant 0 : index
    %247 = vector.load %arg8[%c0_91, %c0_92] : memref<1x32xf32, #tpu.memory_space<vmem>>, vector<1x32xf32>
    %248 = vector.shape_cast %247 : vector<1x32xf32> to vector<1x1x32xf32>
    %249 = vector.broadcast %248 : vector<1x1x32xf32> to vector<2x8x32xf32>
    %250 = arith.mulf %246, %249 : vector<2x8x32xf32>
    %cst_93 = arith.constant dense<0.000000e+00> : vector<2x8xf32>
    %251 = vector.multi_reduction <add>, %250, %cst_93 [2] : vector<2x8x32xf32> to vector<2x8xf32>
    %252 = vector.shape_cast %251 : vector<2x8xf32> to vector<2x8x1xf32>
    %cst_94 = arith.constant dense<0xFF800000> : vector<2x1xf32>
    %253 = vector.multi_reduction <maximumf>, %252, %cst_94 [1] : vector<2x8x1xf32> to vector<2x1xf32>
    %254 = vector.shape_cast %253 : vector<2x1xf32> to vector<2x1x1xf32>
    %255 = vector.broadcast %254 : vector<2x1x1xf32> to vector<2x8x1xf32>
    %256 = arith.subf %252, %255 : vector<2x8x1xf32>
    %257 = math.exp %256 : vector<2x8x1xf32>
    %cst_95 = arith.constant dense<0.000000e+00> : vector<2x1xf32>
    %258 = vector.multi_reduction <add>, %257, %cst_95 [1] : vector<2x8x1xf32> to vector<2x1xf32>
    %259 = vector.shape_cast %258 : vector<2x1xf32> to vector<2x1x1xf32>
    %260 = tpu.reciprocal %259 {approx = true} : vector<2x1x1xf32> -> vector<2x1x1xf32>
    %261 = vector.broadcast %260 : vector<2x1x1xf32> to vector<2x8x1xf32>
    %262 = arith.mulf %257, %261 : vector<2x8x1xf32>
    %263 = arith.addf %198, %262 : vector<2x8x1xf32>
    %c0_96 = arith.constant 0 : index
    %c0_97 = arith.constant 0 : index
    %c0_98 = arith.constant 0 : index
    %264 = vector.load %arg16[%c0_96, %c0_97, %c0_98] : memref<2x8x2xf32, #tpu.memory_space<vmem>>, vector<2x8x1xf32>
    %265 = arith.mulf %262, %264 : vector<2x8x1xf32>
    %cst_99 = arith.constant dense<0.000000e+00> : vector<2x1xf32>
    %266 = vector.multi_reduction <add>, %265, %cst_99 [1] : vector<2x8x1xf32> to vector<2x1xf32>
    %c0_100 = arith.constant 0 : index
    %c3 = arith.constant 3 : index
    %267 = vector.load %arg2[%c0_100, %c3] : memref<2x8xf32, #tpu.memory_space<vmem>>, vector<2x1xf32>
    %268 = arith.addf %266, %267 : vector<2x1xf32>
    %c0_101 = arith.constant 0 : index
    %c0_102 = arith.constant 0 : index
    %269 = vector.load %arg9[%c0_101, %c0_102] : memref<1x256xf32, #tpu.memory_space<vmem>>, vector<1x256xf32>
    %270 = vector.broadcast %268 : vector<2x1xf32> to vector<2x256xf32>
    %271 = vector.broadcast %269 : vector<1x256xf32> to vector<2x256xf32>
    %272 = arith.mulf %270, %271 : vector<2x256xf32>
    %273 = arith.addf %232, %272 : vector<2x256xf32>
    %c0_103 = arith.constant 0 : index
    %c0_104 = arith.constant 0 : index
    %274 = vector.load %arg10[%c0_103, %c0_104] : memref<1x256xf32, #tpu.memory_space<vmem>>, vector<1x256xf32>
    %275 = vector.broadcast %274 : vector<1x256xf32> to vector<2x256xf32>
    %276 = arith.addf %273, %275 : vector<2x256xf32>
    %277 = vector.extract_strided_slice %276 {offsets = [0, 0], sizes = [2, 192], strides = [1, 1]} : vector<2x256xf32> to vector<2x192xf32>
    %278 = arith.negf %277 : vector<2x192xf32>
    %279 = math.exp %278 : vector<2x192xf32>
    %cst_105 = arith.constant 1.000000e+00 : f32
    %280 = vector.broadcast %cst_105 : f32 to vector<2x192xf32>
    %281 = arith.addf %280, %279 : vector<2x192xf32>
    %282 = arith.divf %280, %281 : vector<2x192xf32>
    %283 = vector.extract_strided_slice %276 {offsets = [0, 192], sizes = [2, 64], strides = [1, 1]} : vector<2x256xf32> to vector<2x64xf32>
    %284 = math.tanh %283 : vector<2x64xf32>
    %285 = vector.extract_strided_slice %282 {offsets = [0, 0], sizes = [2, 64], strides = [1, 1]} : vector<2x192xf32> to vector<2x64xf32>
    %286 = vector.extract_strided_slice %282 {offsets = [0, 64], sizes = [2, 64], strides = [1, 1]} : vector<2x192xf32> to vector<2x64xf32>
    %287 = vector.extract_strided_slice %282 {offsets = [0, 128], sizes = [2, 64], strides = [1, 1]} : vector<2x192xf32> to vector<2x64xf32>
    %288 = arith.mulf %286, %225 : vector<2x64xf32>
    %289 = arith.mulf %285, %284 : vector<2x64xf32>
    %290 = arith.addf %288, %289 : vector<2x64xf32>
    %291 = math.tanh %290 : vector<2x64xf32>
    %292 = arith.mulf %287, %291 : vector<2x64xf32>
    %293 = tpu.concatenate %292, %290 in 1 : vector<2x64xf32>, vector<2x64xf32> -> vector<2x128xf32>
    %294 = arith.truncf %293 : vector<2x128xf32> to vector<2x128xbf16>
    %c0_106 = arith.constant 0 : index
    %c0_107 = arith.constant 0 : index
    %295 = vector.load %arg7[%c0_106, %c0_107] : memref<128x320xbf16, #tpu.memory_space<vmem>>, vector<128x320xbf16>
    %cst_108 = arith.constant dense<0.000000e+00> : vector<2x320xf32>
    %296 = tpu.matmul %294, %295, %cst_108 {dimension_numbers = #tpu.dot_dimension_numbers<[1], [0], [0], [1], [0, 0, 1, 1], [], []>} : vector<2x128xbf16>, vector<128x320xbf16>, vector<2x320xf32> -> vector<2x320xf32>
    %297 = vector.extract_strided_slice %296 {offsets = [0, 0], sizes = [2, 256], strides = [1, 1]} : vector<2x320xf32> to vector<2x256xf32>
    %298 = vector.extract_strided_slice %296 {offsets = [0, 256], sizes = [2, 32], strides = [1, 1]} : vector<2x320xf32> to vector<2x32xf32>
    %299 = vector.shape_cast %298 : vector<2x32xf32> to vector<2x1x32xf32>
    %300 = vector.extract_strided_slice %296 {offsets = [0, 288], sizes = [2, 32], strides = [1, 1]} : vector<2x320xf32> to vector<2x32xf32>
    %301 = vector.shape_cast %300 : vector<2x32xf32> to vector<2x1x32xf32>
    %c0_109 = arith.constant 0 : index
    %c0_110 = arith.constant 0 : index
    %c0_111 = arith.constant 0 : index
    %302 = vector.load %arg15[%c0_109, %c0_110, %c0_111] : memref<2x8x32xf32, #tpu.memory_space<vmem>>, vector<2x8x32xf32>
    %303 = vector.shape_cast %29 : vector<1x8x1xi1> to vector<1x8x1xi1>
    %304 = vector.broadcast %303 : vector<1x8x1xi1> to vector<2x8x32xi1>
    %305 = vector.shape_cast %299 : vector<2x1x32xf32> to vector<2x1x32xf32>
    %306 = vector.broadcast %305 : vector<2x1x32xf32> to vector<2x8x32xf32>
    %307 = vector.shape_cast %301 : vector<2x1x32xf32> to vector<2x1x32xf32>
    %308 = vector.broadcast %307 : vector<2x1x32xf32> to vector<2x8x32xf32>
    %309 = arith.select %304, %306, %308 : vector<2x8x32xi1>, vector<2x8x32xf32>
    %310 = arith.addf %302, %309 : vector<2x8x32xf32>
    %311 = math.tanh %310 : vector<2x8x32xf32>
    %c0_112 = arith.constant 0 : index
    %c0_113 = arith.constant 0 : index
    %312 = vector.load %arg8[%c0_112, %c0_113] : memref<1x32xf32, #tpu.memory_space<vmem>>, vector<1x32xf32>
    %313 = vector.shape_cast %312 : vector<1x32xf32> to vector<1x1x32xf32>
    %314 = vector.broadcast %313 : vector<1x1x32xf32> to vector<2x8x32xf32>
    %315 = arith.mulf %311, %314 : vector<2x8x32xf32>
    %cst_114 = arith.constant dense<0.000000e+00> : vector<2x8xf32>
    %316 = vector.multi_reduction <add>, %315, %cst_114 [2] : vector<2x8x32xf32> to vector<2x8xf32>
    %317 = vector.shape_cast %316 : vector<2x8xf32> to vector<2x8x1xf32>
    %cst_115 = arith.constant dense<0xFF800000> : vector<2x1xf32>
    %318 = vector.multi_reduction <maximumf>, %317, %cst_115 [1] : vector<2x8x1xf32> to vector<2x1xf32>
    %319 = vector.shape_cast %318 : vector<2x1xf32> to vector<2x1x1xf32>
    %320 = vector.broadcast %319 : vector<2x1x1xf32> to vector<2x8x1xf32>
    %321 = arith.subf %317, %320 : vector<2x8x1xf32>
    %322 = math.exp %321 : vector<2x8x1xf32>
    %cst_116 = arith.constant dense<0.000000e+00> : vector<2x1xf32>
    %323 = vector.multi_reduction <add>, %322, %cst_116 [1] : vector<2x8x1xf32> to vector<2x1xf32>
    %324 = vector.shape_cast %323 : vector<2x1xf32> to vector<2x1x1xf32>
    %325 = tpu.reciprocal %324 {approx = true} : vector<2x1x1xf32> -> vector<2x1x1xf32>
    %326 = vector.broadcast %325 : vector<2x1x1xf32> to vector<2x8x1xf32>
    %327 = arith.mulf %322, %326 : vector<2x8x1xf32>
    %328 = arith.addf %263, %327 : vector<2x8x1xf32>
    %c0_117 = arith.constant 0 : index
    %c0_118 = arith.constant 0 : index
    %c0_119 = arith.constant 0 : index
    %329 = vector.load %arg16[%c0_117, %c0_118, %c0_119] : memref<2x8x2xf32, #tpu.memory_space<vmem>>, vector<2x8x1xf32>
    %330 = arith.mulf %327, %329 : vector<2x8x1xf32>
    %cst_120 = arith.constant dense<0.000000e+00> : vector<2x1xf32>
    %331 = vector.multi_reduction <add>, %330, %cst_120 [1] : vector<2x8x1xf32> to vector<2x1xf32>
    %c0_121 = arith.constant 0 : index
    %c4 = arith.constant 4 : index
    %332 = vector.load %arg2[%c0_121, %c4] : memref<2x8xf32, #tpu.memory_space<vmem>>, vector<2x1xf32>
    %333 = arith.addf %331, %332 : vector<2x1xf32>
    %c0_122 = arith.constant 0 : index
    %c0_123 = arith.constant 0 : index
    %334 = vector.load %arg9[%c0_122, %c0_123] : memref<1x256xf32, #tpu.memory_space<vmem>>, vector<1x256xf32>
    %335 = vector.broadcast %333 : vector<2x1xf32> to vector<2x256xf32>
    %336 = vector.broadcast %334 : vector<1x256xf32> to vector<2x256xf32>
    %337 = arith.mulf %335, %336 : vector<2x256xf32>
    %338 = arith.addf %297, %337 : vector<2x256xf32>
    %c0_124 = arith.constant 0 : index
    %c0_125 = arith.constant 0 : index
    %339 = vector.load %arg10[%c0_124, %c0_125] : memref<1x256xf32, #tpu.memory_space<vmem>>, vector<1x256xf32>
    %340 = vector.broadcast %339 : vector<1x256xf32> to vector<2x256xf32>
    %341 = arith.addf %338, %340 : vector<2x256xf32>
    %342 = vector.extract_strided_slice %341 {offsets = [0, 0], sizes = [2, 192], strides = [1, 1]} : vector<2x256xf32> to vector<2x192xf32>
    %343 = arith.negf %342 : vector<2x192xf32>
    %344 = math.exp %343 : vector<2x192xf32>
    %cst_126 = arith.constant 1.000000e+00 : f32
    %345 = vector.broadcast %cst_126 : f32 to vector<2x192xf32>
    %346 = arith.addf %345, %344 : vector<2x192xf32>
    %347 = arith.divf %345, %346 : vector<2x192xf32>
    %348 = vector.extract_strided_slice %341 {offsets = [0, 192], sizes = [2, 64], strides = [1, 1]} : vector<2x256xf32> to vector<2x64xf32>
    %349 = math.tanh %348 : vector<2x64xf32>
    %350 = vector.extract_strided_slice %347 {offsets = [0, 0], sizes = [2, 64], strides = [1, 1]} : vector<2x192xf32> to vector<2x64xf32>
    %351 = vector.extract_strided_slice %347 {offsets = [0, 64], sizes = [2, 64], strides = [1, 1]} : vector<2x192xf32> to vector<2x64xf32>
    %352 = vector.extract_strided_slice %347 {offsets = [0, 128], sizes = [2, 64], strides = [1, 1]} : vector<2x192xf32> to vector<2x64xf32>
    %353 = arith.mulf %351, %290 : vector<2x64xf32>
    %354 = arith.mulf %350, %349 : vector<2x64xf32>
    %355 = arith.addf %353, %354 : vector<2x64xf32>
    %356 = math.tanh %355 : vector<2x64xf32>
    %357 = arith.mulf %352, %356 : vector<2x64xf32>
    %358 = tpu.concatenate %357, %355 in 1 : vector<2x64xf32>, vector<2x64xf32> -> vector<2x128xf32>
    %359 = arith.truncf %358 : vector<2x128xf32> to vector<2x128xbf16>
    %c0_127 = arith.constant 0 : index
    %c0_128 = arith.constant 0 : index
    %360 = vector.load %arg7[%c0_127, %c0_128] : memref<128x320xbf16, #tpu.memory_space<vmem>>, vector<128x320xbf16>
    %cst_129 = arith.constant dense<0.000000e+00> : vector<2x320xf32>
    %361 = tpu.matmul %359, %360, %cst_129 {dimension_numbers = #tpu.dot_dimension_numbers<[1], [0], [0], [1], [0, 0, 1, 1], [], []>} : vector<2x128xbf16>, vector<128x320xbf16>, vector<2x320xf32> -> vector<2x320xf32>
    %362 = vector.extract_strided_slice %361 {offsets = [0, 0], sizes = [2, 256], strides = [1, 1]} : vector<2x320xf32> to vector<2x256xf32>
    %363 = vector.extract_strided_slice %361 {offsets = [0, 256], sizes = [2, 32], strides = [1, 1]} : vector<2x320xf32> to vector<2x32xf32>
    %364 = vector.shape_cast %363 : vector<2x32xf32> to vector<2x1x32xf32>
    %365 = vector.extract_strided_slice %361 {offsets = [0, 288], sizes = [2, 32], strides = [1, 1]} : vector<2x320xf32> to vector<2x32xf32>
    %366 = vector.shape_cast %365 : vector<2x32xf32> to vector<2x1x32xf32>
    %c0_130 = arith.constant 0 : index
    %c0_131 = arith.constant 0 : index
    %c0_132 = arith.constant 0 : index
    %367 = vector.load %arg15[%c0_130, %c0_131, %c0_132] : memref<2x8x32xf32, #tpu.memory_space<vmem>>, vector<2x8x32xf32>
    %368 = vector.shape_cast %29 : vector<1x8x1xi1> to vector<1x8x1xi1>
    %369 = vector.broadcast %368 : vector<1x8x1xi1> to vector<2x8x32xi1>
    %370 = vector.shape_cast %364 : vector<2x1x32xf32> to vector<2x1x32xf32>
    %371 = vector.broadcast %370 : vector<2x1x32xf32> to vector<2x8x32xf32>
    %372 = vector.shape_cast %366 : vector<2x1x32xf32> to vector<2x1x32xf32>
    %373 = vector.broadcast %372 : vector<2x1x32xf32> to vector<2x8x32xf32>
    %374 = arith.select %369, %371, %373 : vector<2x8x32xi1>, vector<2x8x32xf32>
    %375 = arith.addf %367, %374 : vector<2x8x32xf32>
    %376 = math.tanh %375 : vector<2x8x32xf32>
    %c0_133 = arith.constant 0 : index
    %c0_134 = arith.constant 0 : index
    %377 = vector.load %arg8[%c0_133, %c0_134] : memref<1x32xf32, #tpu.memory_space<vmem>>, vector<1x32xf32>
    %378 = vector.shape_cast %377 : vector<1x32xf32> to vector<1x1x32xf32>
    %379 = vector.broadcast %378 : vector<1x1x32xf32> to vector<2x8x32xf32>
    %380 = arith.mulf %376, %379 : vector<2x8x32xf32>
    %cst_135 = arith.constant dense<0.000000e+00> : vector<2x8xf32>
    %381 = vector.multi_reduction <add>, %380, %cst_135 [2] : vector<2x8x32xf32> to vector<2x8xf32>
    %382 = vector.shape_cast %381 : vector<2x8xf32> to vector<2x8x1xf32>
    %cst_136 = arith.constant dense<0xFF800000> : vector<2x1xf32>
    %383 = vector.multi_reduction <maximumf>, %382, %cst_136 [1] : vector<2x8x1xf32> to vector<2x1xf32>
    %384 = vector.shape_cast %383 : vector<2x1xf32> to vector<2x1x1xf32>
    %385 = vector.broadcast %384 : vector<2x1x1xf32> to vector<2x8x1xf32>
    %386 = arith.subf %382, %385 : vector<2x8x1xf32>
    %387 = math.exp %386 : vector<2x8x1xf32>
    %cst_137 = arith.constant dense<0.000000e+00> : vector<2x1xf32>
    %388 = vector.multi_reduction <add>, %387, %cst_137 [1] : vector<2x8x1xf32> to vector<2x1xf32>
    %389 = vector.shape_cast %388 : vector<2x1xf32> to vector<2x1x1xf32>
    %390 = tpu.reciprocal %389 {approx = true} : vector<2x1x1xf32> -> vector<2x1x1xf32>
    %391 = vector.broadcast %390 : vector<2x1x1xf32> to vector<2x8x1xf32>
    %392 = arith.mulf %387, %391 : vector<2x8x1xf32>
    %393 = arith.addf %328, %392 : vector<2x8x1xf32>
    %c0_138 = arith.constant 0 : index
    %c0_139 = arith.constant 0 : index
    %c0_140 = arith.constant 0 : index
    %394 = vector.load %arg16[%c0_138, %c0_139, %c0_140] : memref<2x8x2xf32, #tpu.memory_space<vmem>>, vector<2x8x1xf32>
    %395 = arith.mulf %392, %394 : vector<2x8x1xf32>
    %cst_141 = arith.constant dense<0.000000e+00> : vector<2x1xf32>
    %396 = vector.multi_reduction <add>, %395, %cst_141 [1] : vector<2x8x1xf32> to vector<2x1xf32>
    %c0_142 = arith.constant 0 : index
    %c5 = arith.constant 5 : index
    %397 = vector.load %arg2[%c0_142, %c5] : memref<2x8xf32, #tpu.memory_space<vmem>>, vector<2x1xf32>
    %398 = arith.addf %396, %397 : vector<2x1xf32>
    %c0_143 = arith.constant 0 : index
    %c0_144 = arith.constant 0 : index
    %399 = vector.load %arg9[%c0_143, %c0_144] : memref<1x256xf32, #tpu.memory_space<vmem>>, vector<1x256xf32>
    %400 = vector.broadcast %398 : vector<2x1xf32> to vector<2x256xf32>
    %401 = vector.broadcast %399 : vector<1x256xf32> to vector<2x256xf32>
    %402 = arith.mulf %400, %401 : vector<2x256xf32>
    %403 = arith.addf %362, %402 : vector<2x256xf32>
    %c0_145 = arith.constant 0 : index
    %c0_146 = arith.constant 0 : index
    %404 = vector.load %arg10[%c0_145, %c0_146] : memref<1x256xf32, #tpu.memory_space<vmem>>, vector<1x256xf32>
    %405 = vector.broadcast %404 : vector<1x256xf32> to vector<2x256xf32>
    %406 = arith.addf %403, %405 : vector<2x256xf32>
    %407 = vector.extract_strided_slice %406 {offsets = [0, 0], sizes = [2, 192], strides = [1, 1]} : vector<2x256xf32> to vector<2x192xf32>
    %408 = arith.negf %407 : vector<2x192xf32>
    %409 = math.exp %408 : vector<2x192xf32>
    %cst_147 = arith.constant 1.000000e+00 : f32
    %410 = vector.broadcast %cst_147 : f32 to vector<2x192xf32>
    %411 = arith.addf %410, %409 : vector<2x192xf32>
    %412 = arith.divf %410, %411 : vector<2x192xf32>
    %413 = vector.extract_strided_slice %406 {offsets = [0, 192], sizes = [2, 64], strides = [1, 1]} : vector<2x256xf32> to vector<2x64xf32>
    %414 = math.tanh %413 : vector<2x64xf32>
    %415 = vector.extract_strided_slice %412 {offsets = [0, 0], sizes = [2, 64], strides = [1, 1]} : vector<2x192xf32> to vector<2x64xf32>
    %416 = vector.extract_strided_slice %412 {offsets = [0, 64], sizes = [2, 64], strides = [1, 1]} : vector<2x192xf32> to vector<2x64xf32>
    %417 = vector.extract_strided_slice %412 {offsets = [0, 128], sizes = [2, 64], strides = [1, 1]} : vector<2x192xf32> to vector<2x64xf32>
    %418 = arith.mulf %416, %355 : vector<2x64xf32>
    %419 = arith.mulf %415, %414 : vector<2x64xf32>
    %420 = arith.addf %418, %419 : vector<2x64xf32>
    %421 = math.tanh %420 : vector<2x64xf32>
    %422 = arith.mulf %417, %421 : vector<2x64xf32>
    %423 = tpu.concatenate %422, %420 in 1 : vector<2x64xf32>, vector<2x64xf32> -> vector<2x128xf32>
    %424 = arith.truncf %423 : vector<2x128xf32> to vector<2x128xbf16>
    %c0_148 = arith.constant 0 : index
    %c0_149 = arith.constant 0 : index
    %425 = vector.load %arg7[%c0_148, %c0_149] : memref<128x320xbf16, #tpu.memory_space<vmem>>, vector<128x320xbf16>
    %cst_150 = arith.constant dense<0.000000e+00> : vector<2x320xf32>
    %426 = tpu.matmul %424, %425, %cst_150 {dimension_numbers = #tpu.dot_dimension_numbers<[1], [0], [0], [1], [0, 0, 1, 1], [], []>} : vector<2x128xbf16>, vector<128x320xbf16>, vector<2x320xf32> -> vector<2x320xf32>
    %427 = vector.extract_strided_slice %426 {offsets = [0, 0], sizes = [2, 256], strides = [1, 1]} : vector<2x320xf32> to vector<2x256xf32>
    %428 = vector.extract_strided_slice %426 {offsets = [0, 256], sizes = [2, 32], strides = [1, 1]} : vector<2x320xf32> to vector<2x32xf32>
    %429 = vector.shape_cast %428 : vector<2x32xf32> to vector<2x1x32xf32>
    %430 = vector.extract_strided_slice %426 {offsets = [0, 288], sizes = [2, 32], strides = [1, 1]} : vector<2x320xf32> to vector<2x32xf32>
    %431 = vector.shape_cast %430 : vector<2x32xf32> to vector<2x1x32xf32>
    %c0_151 = arith.constant 0 : index
    %c0_152 = arith.constant 0 : index
    %c0_153 = arith.constant 0 : index
    %432 = vector.load %arg15[%c0_151, %c0_152, %c0_153] : memref<2x8x32xf32, #tpu.memory_space<vmem>>, vector<2x8x32xf32>
    %433 = vector.shape_cast %29 : vector<1x8x1xi1> to vector<1x8x1xi1>
    %434 = vector.broadcast %433 : vector<1x8x1xi1> to vector<2x8x32xi1>
    %435 = vector.shape_cast %429 : vector<2x1x32xf32> to vector<2x1x32xf32>
    %436 = vector.broadcast %435 : vector<2x1x32xf32> to vector<2x8x32xf32>
    %437 = vector.shape_cast %431 : vector<2x1x32xf32> to vector<2x1x32xf32>
    %438 = vector.broadcast %437 : vector<2x1x32xf32> to vector<2x8x32xf32>
    %439 = arith.select %434, %436, %438 : vector<2x8x32xi1>, vector<2x8x32xf32>
    %440 = arith.addf %432, %439 : vector<2x8x32xf32>
    %441 = math.tanh %440 : vector<2x8x32xf32>
    %c0_154 = arith.constant 0 : index
    %c0_155 = arith.constant 0 : index
    %442 = vector.load %arg8[%c0_154, %c0_155] : memref<1x32xf32, #tpu.memory_space<vmem>>, vector<1x32xf32>
    %443 = vector.shape_cast %442 : vector<1x32xf32> to vector<1x1x32xf32>
    %444 = vector.broadcast %443 : vector<1x1x32xf32> to vector<2x8x32xf32>
    %445 = arith.mulf %441, %444 : vector<2x8x32xf32>
    %cst_156 = arith.constant dense<0.000000e+00> : vector<2x8xf32>
    %446 = vector.multi_reduction <add>, %445, %cst_156 [2] : vector<2x8x32xf32> to vector<2x8xf32>
    %447 = vector.shape_cast %446 : vector<2x8xf32> to vector<2x8x1xf32>
    %cst_157 = arith.constant dense<0xFF800000> : vector<2x1xf32>
    %448 = vector.multi_reduction <maximumf>, %447, %cst_157 [1] : vector<2x8x1xf32> to vector<2x1xf32>
    %449 = vector.shape_cast %448 : vector<2x1xf32> to vector<2x1x1xf32>
    %450 = vector.broadcast %449 : vector<2x1x1xf32> to vector<2x8x1xf32>
    %451 = arith.subf %447, %450 : vector<2x8x1xf32>
    %452 = math.exp %451 : vector<2x8x1xf32>
    %cst_158 = arith.constant dense<0.000000e+00> : vector<2x1xf32>
    %453 = vector.multi_reduction <add>, %452, %cst_158 [1] : vector<2x8x1xf32> to vector<2x1xf32>
    %454 = vector.shape_cast %453 : vector<2x1xf32> to vector<2x1x1xf32>
    %455 = tpu.reciprocal %454 {approx = true} : vector<2x1x1xf32> -> vector<2x1x1xf32>
    %456 = vector.broadcast %455 : vector<2x1x1xf32> to vector<2x8x1xf32>
    %457 = arith.mulf %452, %456 : vector<2x8x1xf32>
    %458 = arith.addf %393, %457 : vector<2x8x1xf32>
    %c0_159 = arith.constant 0 : index
    %c0_160 = arith.constant 0 : index
    %c0_161 = arith.constant 0 : index
    %459 = vector.load %arg16[%c0_159, %c0_160, %c0_161] : memref<2x8x2xf32, #tpu.memory_space<vmem>>, vector<2x8x1xf32>
    %460 = arith.mulf %457, %459 : vector<2x8x1xf32>
    %cst_162 = arith.constant dense<0.000000e+00> : vector<2x1xf32>
    %461 = vector.multi_reduction <add>, %460, %cst_162 [1] : vector<2x8x1xf32> to vector<2x1xf32>
    %c0_163 = arith.constant 0 : index
    %c6 = arith.constant 6 : index
    %462 = vector.load %arg2[%c0_163, %c6] : memref<2x8xf32, #tpu.memory_space<vmem>>, vector<2x1xf32>
    %463 = arith.addf %461, %462 : vector<2x1xf32>
    %c0_164 = arith.constant 0 : index
    %c0_165 = arith.constant 0 : index
    %464 = vector.load %arg9[%c0_164, %c0_165] : memref<1x256xf32, #tpu.memory_space<vmem>>, vector<1x256xf32>
    %465 = vector.broadcast %463 : vector<2x1xf32> to vector<2x256xf32>
    %466 = vector.broadcast %464 : vector<1x256xf32> to vector<2x256xf32>
    %467 = arith.mulf %465, %466 : vector<2x256xf32>
    %468 = arith.addf %427, %467 : vector<2x256xf32>
    %c0_166 = arith.constant 0 : index
    %c0_167 = arith.constant 0 : index
    %469 = vector.load %arg10[%c0_166, %c0_167] : memref<1x256xf32, #tpu.memory_space<vmem>>, vector<1x256xf32>
    %470 = vector.broadcast %469 : vector<1x256xf32> to vector<2x256xf32>
    %471 = arith.addf %468, %470 : vector<2x256xf32>
    %472 = vector.extract_strided_slice %471 {offsets = [0, 0], sizes = [2, 192], strides = [1, 1]} : vector<2x256xf32> to vector<2x192xf32>
    %473 = arith.negf %472 : vector<2x192xf32>
    %474 = math.exp %473 : vector<2x192xf32>
    %cst_168 = arith.constant 1.000000e+00 : f32
    %475 = vector.broadcast %cst_168 : f32 to vector<2x192xf32>
    %476 = arith.addf %475, %474 : vector<2x192xf32>
    %477 = arith.divf %475, %476 : vector<2x192xf32>
    %478 = vector.extract_strided_slice %471 {offsets = [0, 192], sizes = [2, 64], strides = [1, 1]} : vector<2x256xf32> to vector<2x64xf32>
    %479 = math.tanh %478 : vector<2x64xf32>
    %480 = vector.extract_strided_slice %477 {offsets = [0, 0], sizes = [2, 64], strides = [1, 1]} : vector<2x192xf32> to vector<2x64xf32>
    %481 = vector.extract_strided_slice %477 {offsets = [0, 64], sizes = [2, 64], strides = [1, 1]} : vector<2x192xf32> to vector<2x64xf32>
    %482 = vector.extract_strided_slice %477 {offsets = [0, 128], sizes = [2, 64], strides = [1, 1]} : vector<2x192xf32> to vector<2x64xf32>
    %483 = arith.mulf %481, %420 : vector<2x64xf32>
    %484 = arith.mulf %480, %479 : vector<2x64xf32>
    %485 = arith.addf %483, %484 : vector<2x64xf32>
    %486 = math.tanh %485 : vector<2x64xf32>
    %487 = arith.mulf %482, %486 : vector<2x64xf32>
    %488 = tpu.concatenate %487, %485 in 1 : vector<2x64xf32>, vector<2x64xf32> -> vector<2x128xf32>
    %489 = arith.truncf %488 : vector<2x128xf32> to vector<2x128xbf16>
    %c0_169 = arith.constant 0 : index
    %c0_170 = arith.constant 0 : index
    %490 = vector.load %arg7[%c0_169, %c0_170] : memref<128x320xbf16, #tpu.memory_space<vmem>>, vector<128x320xbf16>
    %cst_171 = arith.constant dense<0.000000e+00> : vector<2x320xf32>
    %491 = tpu.matmul %489, %490, %cst_171 {dimension_numbers = #tpu.dot_dimension_numbers<[1], [0], [0], [1], [0, 0, 1, 1], [], []>} : vector<2x128xbf16>, vector<128x320xbf16>, vector<2x320xf32> -> vector<2x320xf32>
    %492 = vector.extract_strided_slice %491 {offsets = [0, 0], sizes = [2, 256], strides = [1, 1]} : vector<2x320xf32> to vector<2x256xf32>
    %493 = vector.extract_strided_slice %491 {offsets = [0, 256], sizes = [2, 32], strides = [1, 1]} : vector<2x320xf32> to vector<2x32xf32>
    %494 = vector.shape_cast %493 : vector<2x32xf32> to vector<2x1x32xf32>
    %495 = vector.extract_strided_slice %491 {offsets = [0, 288], sizes = [2, 32], strides = [1, 1]} : vector<2x320xf32> to vector<2x32xf32>
    %496 = vector.shape_cast %495 : vector<2x32xf32> to vector<2x1x32xf32>
    %c0_172 = arith.constant 0 : index
    %c0_173 = arith.constant 0 : index
    %c0_174 = arith.constant 0 : index
    %497 = vector.load %arg15[%c0_172, %c0_173, %c0_174] : memref<2x8x32xf32, #tpu.memory_space<vmem>>, vector<2x8x32xf32>
    %498 = vector.shape_cast %29 : vector<1x8x1xi1> to vector<1x8x1xi1>
    %499 = vector.broadcast %498 : vector<1x8x1xi1> to vector<2x8x32xi1>
    %500 = vector.shape_cast %494 : vector<2x1x32xf32> to vector<2x1x32xf32>
    %501 = vector.broadcast %500 : vector<2x1x32xf32> to vector<2x8x32xf32>
    %502 = vector.shape_cast %496 : vector<2x1x32xf32> to vector<2x1x32xf32>
    %503 = vector.broadcast %502 : vector<2x1x32xf32> to vector<2x8x32xf32>
    %504 = arith.select %499, %501, %503 : vector<2x8x32xi1>, vector<2x8x32xf32>
    %505 = arith.addf %497, %504 : vector<2x8x32xf32>
    %506 = math.tanh %505 : vector<2x8x32xf32>
    %c0_175 = arith.constant 0 : index
    %c0_176 = arith.constant 0 : index
    %507 = vector.load %arg8[%c0_175, %c0_176] : memref<1x32xf32, #tpu.memory_space<vmem>>, vector<1x32xf32>
    %508 = vector.shape_cast %507 : vector<1x32xf32> to vector<1x1x32xf32>
    %509 = vector.broadcast %508 : vector<1x1x32xf32> to vector<2x8x32xf32>
    %510 = arith.mulf %506, %509 : vector<2x8x32xf32>
    %cst_177 = arith.constant dense<0.000000e+00> : vector<2x8xf32>
    %511 = vector.multi_reduction <add>, %510, %cst_177 [2] : vector<2x8x32xf32> to vector<2x8xf32>
    %512 = vector.shape_cast %511 : vector<2x8xf32> to vector<2x8x1xf32>
    %cst_178 = arith.constant dense<0xFF800000> : vector<2x1xf32>
    %513 = vector.multi_reduction <maximumf>, %512, %cst_178 [1] : vector<2x8x1xf32> to vector<2x1xf32>
    %514 = vector.shape_cast %513 : vector<2x1xf32> to vector<2x1x1xf32>
    %515 = vector.broadcast %514 : vector<2x1x1xf32> to vector<2x8x1xf32>
    %516 = arith.subf %512, %515 : vector<2x8x1xf32>
    %517 = math.exp %516 : vector<2x8x1xf32>
    %cst_179 = arith.constant dense<0.000000e+00> : vector<2x1xf32>
    %518 = vector.multi_reduction <add>, %517, %cst_179 [1] : vector<2x8x1xf32> to vector<2x1xf32>
    %519 = vector.shape_cast %518 : vector<2x1xf32> to vector<2x1x1xf32>
    %520 = tpu.reciprocal %519 {approx = true} : vector<2x1x1xf32> -> vector<2x1x1xf32>
    %521 = vector.broadcast %520 : vector<2x1x1xf32> to vector<2x8x1xf32>
    %522 = arith.mulf %517, %521 : vector<2x8x1xf32>
    %523 = arith.addf %458, %522 : vector<2x8x1xf32>
    %c0_180 = arith.constant 0 : index
    %c0_181 = arith.constant 0 : index
    %c0_182 = arith.constant 0 : index
    %524 = vector.load %arg16[%c0_180, %c0_181, %c0_182] : memref<2x8x2xf32, #tpu.memory_space<vmem>>, vector<2x8x1xf32>
    %525 = arith.mulf %522, %524 : vector<2x8x1xf32>
    %cst_183 = arith.constant dense<0.000000e+00> : vector<2x1xf32>
    %526 = vector.multi_reduction <add>, %525, %cst_183 [1] : vector<2x8x1xf32> to vector<2x1xf32>
    %c0_184 = arith.constant 0 : index
    %c7 = arith.constant 7 : index
    %527 = vector.load %arg2[%c0_184, %c7] : memref<2x8xf32, #tpu.memory_space<vmem>>, vector<2x1xf32>
    %528 = arith.addf %526, %527 : vector<2x1xf32>
    %c0_185 = arith.constant 0 : index
    %c0_186 = arith.constant 0 : index
    %529 = vector.load %arg9[%c0_185, %c0_186] : memref<1x256xf32, #tpu.memory_space<vmem>>, vector<1x256xf32>
    %530 = vector.broadcast %528 : vector<2x1xf32> to vector<2x256xf32>
    %531 = vector.broadcast %529 : vector<1x256xf32> to vector<2x256xf32>
    %532 = arith.mulf %530, %531 : vector<2x256xf32>
    %533 = arith.addf %492, %532 : vector<2x256xf32>
    %c0_187 = arith.constant 0 : index
    %c0_188 = arith.constant 0 : index
    %534 = vector.load %arg10[%c0_187, %c0_188] : memref<1x256xf32, #tpu.memory_space<vmem>>, vector<1x256xf32>
    %535 = vector.broadcast %534 : vector<1x256xf32> to vector<2x256xf32>
    %536 = arith.addf %533, %535 : vector<2x256xf32>
    %537 = vector.extract_strided_slice %536 {offsets = [0, 0], sizes = [2, 192], strides = [1, 1]} : vector<2x256xf32> to vector<2x192xf32>
    %538 = arith.negf %537 : vector<2x192xf32>
    %539 = math.exp %538 : vector<2x192xf32>
    %cst_189 = arith.constant 1.000000e+00 : f32
    %540 = vector.broadcast %cst_189 : f32 to vector<2x192xf32>
    %541 = arith.addf %540, %539 : vector<2x192xf32>
    %542 = arith.divf %540, %541 : vector<2x192xf32>
    %543 = vector.extract_strided_slice %536 {offsets = [0, 192], sizes = [2, 64], strides = [1, 1]} : vector<2x256xf32> to vector<2x64xf32>
    %544 = math.tanh %543 : vector<2x64xf32>
    %545 = vector.extract_strided_slice %542 {offsets = [0, 0], sizes = [2, 64], strides = [1, 1]} : vector<2x192xf32> to vector<2x64xf32>
    %546 = vector.extract_strided_slice %542 {offsets = [0, 64], sizes = [2, 64], strides = [1, 1]} : vector<2x192xf32> to vector<2x64xf32>
    %547 = vector.extract_strided_slice %542 {offsets = [0, 128], sizes = [2, 64], strides = [1, 1]} : vector<2x192xf32> to vector<2x64xf32>
    %548 = arith.mulf %546, %485 : vector<2x64xf32>
    %549 = arith.mulf %545, %544 : vector<2x64xf32>
    %550 = arith.addf %548, %549 : vector<2x64xf32>
    %551 = math.tanh %550 : vector<2x64xf32>
    %552 = arith.mulf %547, %551 : vector<2x64xf32>
    %cst_190 = arith.constant 1.250000e-01 : f32
    %553 = vector.broadcast %cst_190 : f32 to vector<2x8x1xf32>
    %554 = arith.mulf %523, %553 : vector<2x8x1xf32>
    %c0_191 = arith.constant 0 : index
    %c0_192 = arith.constant 0 : index
    %c0_193 = arith.constant 0 : index
    %555 = vector.load %arg13[%c0_191, %c0_192, %c0_193] : memref<2x8x1xf32, #tpu.memory_space<vmem>>, vector<2x8x1xf32>
    tpu.vector_store %arg13[%c0_191, %c0_192, %c0_193], %554 {strides = array<i32>} : memref<2x8x1xf32, #tpu.memory_space<vmem>>, vector<2x8x1xf32>,
    %c0_194 = arith.constant 0 : index
    %c0_195 = arith.constant 0 : index
    %c1_196 = arith.constant 1 : index
    %556 = vector.load %arg16[%c0_194, %c0_195, %c1_196] : memref<2x8x2xf32, #tpu.memory_space<vmem>>, vector<2x8x1xf32>
    %557 = arith.mulf %522, %556 : vector<2x8x1xf32>
    %cst_197 = arith.constant dense<0.000000e+00> : vector<2x1xf32>
    %558 = vector.multi_reduction <add>, %557, %cst_197 [1] : vector<2x8x1xf32> to vector<2x1xf32>
    %559 = vector.extract_strided_slice %552 {offsets = [0, 0], sizes = [2, 32], strides = [1, 1]} : vector<2x64xf32> to vector<2x32xf32>
    %c0_198 = arith.constant 0 : index
    %c0_199 = arith.constant 0 : index
    %560 = vector.load %arg11[%c0_198, %c0_199] : memref<1x32xf32, #tpu.memory_space<vmem>>, vector<1x32xf32>
    %561 = vector.broadcast %560 : vector<1x32xf32> to vector<2x32xf32>
    %562 = arith.mulf %559, %561 : vector<2x32xf32>
    %cst_200 = arith.constant dense<0.000000e+00> : vector<2xf32>
    %563 = vector.multi_reduction <add>, %562, %cst_200 [1] : vector<2x32xf32> to vector<2xf32>
    %564 = vector.shape_cast %563 : vector<2xf32> to vector<2x1xf32>
    %565 = arith.addf %564, %558 : vector<2x1xf32>
    %c0_201 = arith.constant 0 : index
    %c0_202 = arith.constant 0 : index
    %566 = vector.load %arg12[%c0_201, %c0_202] : memref<1x1xf32, #tpu.memory_space<vmem>>, vector<1x1xf32>
    %567 = vector.broadcast %566 : vector<1x1xf32> to vector<2x1xf32>
    %568 = arith.addf %565, %567 : vector<2x1xf32>
    %c0_203 = arith.constant 0 : index
    %c0_204 = arith.constant 0 : index
    %569 = vector.load %arg14[%c0_203, %c0_204] : memref<2x1xf32, #tpu.memory_space<vmem>>, vector<2x1xf32>
    tpu.vector_store %arg14[%c0_203, %c0_204], %568 {strides = array<i32>} : memref<2x1xf32, #tpu.memory_space<vmem>>, vector<2x1xf32>,
    return
  }
  func.func @transform_0(%arg0: i32) -> (i32, i32, i32) {
    %c0_i32 = arith.constant 0 : i32
    %c0_i32_0 = arith.constant 0 : i32
    %c0_i32_1 = arith.constant 0 : i32
    return %arg0, %c0_i32, %c0_i32_0 : i32, i32, i32
  }
  func.func @transform_1(%arg0: i32) -> (i32, i32) {
    %c0_i32 = arith.constant 0 : i32
    %c0_i32_0 = arith.constant 0 : i32
    return %arg0, %c0_i32 : i32, i32
  }
  func.func @transform_2(%arg0: i32) -> (i32, i32) {
    %c0_i32 = arith.constant 0 : i32
    %c0_i32_0 = arith.constant 0 : i32
    return %arg0, %c0_i32 : i32, i32
  }
  func.func @transform_3(%arg0: i32) -> (i32, i32) {
    %c0_i32 = arith.constant 0 : i32
    %c0_i32_0 = arith.constant 0 : i32
    return %arg0, %c0_i32 : i32, i32
  }
  func.func @transform_4(%arg0: i32) -> (i32, i32) {
    %c0_i32 = arith.constant 0 : i32
    %c0_i32_0 = arith.constant 0 : i32
    %c0_i32_1 = arith.constant 0 : i32
    return %c0_i32, %c0_i32_0 : i32, i32
  }
  func.func @transform_5(%arg0: i32) -> (i32, i32) {
    %c0_i32 = arith.constant 0 : i32
    %c0_i32_0 = arith.constant 0 : i32
    %c0_i32_1 = arith.constant 0 : i32
    return %c0_i32, %c0_i32_0 : i32, i32
  }
  func.func @transform_6(%arg0: i32) -> (i32, i32) {
    %c0_i32 = arith.constant 0 : i32
    %c0_i32_0 = arith.constant 0 : i32
    %c0_i32_1 = arith.constant 0 : i32
    return %c0_i32, %c0_i32_0 : i32, i32
  }
  func.func @transform_7(%arg0: i32) -> (i32, i32) {
    %c0_i32 = arith.constant 0 : i32
    %c0_i32_0 = arith.constant 0 : i32
    %c0_i32_1 = arith.constant 0 : i32
    return %c0_i32, %c0_i32_0 : i32, i32
  }
  func.func @transform_8(%arg0: i32) -> (i32, i32) {
    %c0_i32 = arith.constant 0 : i32
    %c0_i32_0 = arith.constant 0 : i32
    %c0_i32_1 = arith.constant 0 : i32
    return %c0_i32, %c0_i32_0 : i32, i32
  }
  func.func @transform_9(%arg0: i32) -> (i32, i32) {
    %c0_i32 = arith.constant 0 : i32
    %c0_i32_0 = arith.constant 0 : i32
    %c0_i32_1 = arith.constant 0 : i32
    return %c0_i32, %c0_i32_0 : i32, i32
  }
  func.func @transform_10(%arg0: i32) -> (i32, i32) {
    %c0_i32 = arith.constant 0 : i32
    %c0_i32_0 = arith.constant 0 : i32
    %c0_i32_1 = arith.constant 0 : i32
    return %c0_i32, %c0_i32_0 : i32, i32
  }
  func.func @transform_11(%arg0: i32) -> (i32, i32) {
    %c0_i32 = arith.constant 0 : i32
    %c0_i32_0 = arith.constant 0 : i32
    %c0_i32_1 = arith.constant 0 : i32
    return %c0_i32, %c0_i32_0 : i32, i32
  }
  func.func @transform_12(%arg0: i32) -> (i32, i32, i32) {
    %c0_i32 = arith.constant 0 : i32
    %c0_i32_0 = arith.constant 0 : i32
    %c0_i32_1 = arith.constant 0 : i32
    return %arg0, %c0_i32, %c0_i32_0 : i32, i32, i32
  }
  func.func @transform_13(%arg0: i32) -> (i32, i32) {
    %c0_i32 = arith.constant 0 : i32
    %c0_i32_0 = arith.constant 0 : i32
    return %arg0, %c0_i32 : i32, i32
  }
}

</mosaic_0001>

<llo_original>
// kernel: tpu_custom_call.1
$region0: #{tpu_custom_call.1}
  #allocation0 [shape = 'u32[]', space=smem, size = 0x4, offset = 0x4, fixed_abs, tag = 'smem constant byte address 0x4 - core index']
  #allocation1 [shape = 'u32[144,128]{1,0:T(1,128)}', space=vmem, size = 0x12000, scoped, tag = 'internal scratch']
  #allocation2 [shape = 'f32[2,8,32]{2,1,0:T(8,128)}', space=vmem, size = 0x2000, scoped, tag = 'scratch operand']
  #allocation3 [shape = 'f32[2,8,2]{2,1,0:T(8,128)}', space=vmem, size = 0x2000, scoped, tag = 'scratch operand']
  #allocation4 [shape = 'f32[1,1]{1,0:T(1,128)S(1)}', space=vmem, size = 0x200, scoped, tag = 'scoped memory for tpu_custom_call.1']
  %s0 = inlined_call_operand.vmem [shape: bf16[2,8,64], index: 0, kind: input, shape index: {}]
  %s1 = inlined_call_operand.vmem [shape: f32[2,8], index: 1, kind: input, shape index: {}]
  %s2 = inlined_call_operand.vmem [shape: f32[2,64], index: 2, kind: input, shape index: {}]
  %s3 = inlined_call_operand.vmem [shape: f32[2,64], index: 3, kind: input, shape index: {}]
  %s4 = inlined_call_operand.vmem [shape: bf16[64,34], index: 4, kind: input, shape index: {}]
  %s5 = inlined_call_operand.vmem [shape: f32[1,32], index: 5, kind: input, shape index: {}]
  %s6 = inlined_call_operand.vmem [shape: bf16[128,320], index: 6, kind: input, shape index: {}]
  %s7 = inlined_call_operand.vmem [shape: f32[1,32], index: 7, kind: input, shape index: {}]
  %s8 = inlined_call_operand.vmem [shape: f32[1,256], index: 8, kind: input, shape index: {}]
  %s9 = inlined_call_operand.vmem [shape: f32[1,256], index: 9, kind: input, shape index: {}]
  %s10 = inlined_call_operand.vmem [shape: f32[1,32], index: 10, kind: input, shape index: {}]
  %s11 = inlined_call_operand.<no memory space> [shape: f32[1,1], index: 11, kind: input, shape index: {}]
  %s12 = inlined_call_operand.vmem [shape: f32[2,8,1], index: 12, kind: output, shape index: {0}]
  %s13 = inlined_call_operand.vmem [shape: f32[2,1], index: 13, kind: output, shape index: {1}]
  %14 = xla_tuple %s12, %s13
  %s15 = sld [smem:[#allocation0]]
  $region66: #{tpu_custom_call.1} parent=0
    _
  %s17 = ssub.s32 1, %s15
  %s18 = scalar_select 0, %s17, %s15
  %v19 = vstv %s11
  %20 = vst [vmem:[#allocation4] sm:$0x1] %v19
  // Predicated region
  $region2: #{tpu_custom_call.1} parent=0 // pred_check
    _
  $region3: #{tpu_custom_call.1} parent=0 // pred_check_branch
    %22 = sbr.rel (0) target = $region5
  $region4: #{tpu_custom_call.1} parent=0 // pred_region
    _
  $region5: #{tpu_custom_call.1} parent=0 // pred_fallthru
    _
  // Predicated region
  $region6: #{tpu_custom_call.1} parent=0 // pred_check
    _
  $region7: #{tpu_custom_call.1} parent=0 // pred_check_branch
    %24 = sbr.rel (0) target = $region9
  $region8: #{tpu_custom_call.1} parent=0 // pred_region
    _
  $region9: #{tpu_custom_call.1} parent=0 // pred_fallthru
    _
  // Predicated region
  $region10: #{tpu_custom_call.1} parent=0 // pred_check
    _
  $region11: #{tpu_custom_call.1} parent=0 // pred_check_branch
    %26 = sbr.rel (0) target = $region13
  $region12: #{tpu_custom_call.1} parent=0 // pred_region
    _
  $region13: #{tpu_custom_call.1} parent=0 // pred_fallthru
    _
  // Predicated region
  $region14: #{tpu_custom_call.1} parent=0 // pred_check
    _
  $region15: #{tpu_custom_call.1} parent=0 // pred_check_branch
    %28 = sbr.rel (0) target = $region17
  $region16: #{tpu_custom_call.1} parent=0 // pred_region
    _
  $region17: #{tpu_custom_call.1} parent=0 // pred_fallthru
    _
  // Predicated region
  $region18: #{tpu_custom_call.1} parent=0 // pred_check
    _
  $region19: #{tpu_custom_call.1} parent=0 // pred_check_branch
    %30 = sbr.rel (0) target = $region21
  $region20: #{tpu_custom_call.1} parent=0 // pred_region
    _
  $region21: #{tpu_custom_call.1} parent=0 // pred_fallthru
    _
  // Predicated region
  $region22: #{tpu_custom_call.1} parent=0 // pred_check
    _
  $region23: #{tpu_custom_call.1} parent=0 // pred_check_branch
    %32 = sbr.rel (0) target = $region25
  $region24: #{tpu_custom_call.1} parent=0 // pred_region
    _
  $region25: #{tpu_custom_call.1} parent=0 // pred_fallthru
    _
  // Predicated region
  $region26: #{tpu_custom_call.1} parent=0 // pred_check
    _
  $region27: #{tpu_custom_call.1} parent=0 // pred_check_branch
    %34 = sbr.rel (0) target = $region29
  $region28: #{tpu_custom_call.1} parent=0 // pred_region
    _
  $region29: #{tpu_custom_call.1} parent=0 // pred_fallthru
    _
  // Predicated region
  $region30: #{tpu_custom_call.1} parent=0 // pred_check
    _
  $region31: #{tpu_custom_call.1} parent=0 // pred_check_branch
    %36 = sbr.rel (0) target = $region33
  $region32: #{tpu_custom_call.1} parent=0 // pred_region
    _
  $region33: #{tpu_custom_call.1} parent=0 // pred_fallthru
    _
  // Predicated region
  $region34: #{tpu_custom_call.1} parent=0 // pred_check
    _
  $region35: #{tpu_custom_call.1} parent=0 // pred_check_branch
    %38 = sbr.rel (0) target = $region37
  $region36: #{tpu_custom_call.1} parent=0 // pred_region
    _
  $region37: #{tpu_custom_call.1} parent=0 // pred_fallthru
    _
  // Predicated region
  $region38: #{tpu_custom_call.1} parent=0 // pred_check
    _
  $region39: #{tpu_custom_call.1} parent=0 // pred_check_branch
    %40 = sbr.rel (0) target = $region41
  $region40: #{tpu_custom_call.1} parent=0 // pred_region
    _
  $region41: #{tpu_custom_call.1} parent=0 // pred_fallthru
    _
  // Predicated region
  $region42: #{tpu_custom_call.1} parent=0 // pred_check
    _
  $region43: #{tpu_custom_call.1} parent=0 // pred_check_branch
    %42 = sbr.rel (0) target = $region45
  $region44: #{tpu_custom_call.1} parent=0 // pred_region
    _
  $region45: #{tpu_custom_call.1} parent=0 // pred_fallthru
    _
  // Predicated region
  $region46: #{tpu_custom_call.1} parent=0 // pred_check
    _
  $region47: #{tpu_custom_call.1} parent=0 // pred_check_branch
    %44 = sbr.rel (0) target = $region49
  $region48: #{tpu_custom_call.1} parent=0 // pred_region
    _
  $region49: #{tpu_custom_call.1} parent=0 // pred_fallthru
    _
  %v46 = vld [vmem:[%s0] sm:$0xf]
  %v47 = vld [vmem:[%s0 + $0x4] sm:$0xf]
  %v48 = vld [vmem:[%s4] sm:$0xf]
  %v49 = vld [vmem:[%s4 + $0x4] sm:$0xf]
  %v50 = vld [vmem:[%s4 + $0x8] sm:$0xf]
  %v51 = vld [vmem:[%s4 + $0xc] sm:$0xf]
  %v52 = vld [vmem:[%s4 + $0x10] sm:$0xf]
  %v53 = vld [vmem:[%s4 + $0x14] sm:$0xf]
  %v54 = vld [vmem:[%s4 + $0x18] sm:$0xf]
  %v55 = vld [vmem:[%s4 + $0x1c] sm:$0xf]
  %v58 = vunpack.c.l.b16 %v46
  %v59 = vunpack.c.l.b16 %v47
  %v60 = vpack.c.b16 %v59, %v58
  %v69 = vunpack.c.l.b16 %v48
  %v70 = vunpack.c.l.b16 %v49
  %v71 = vunpack.c.l.b16 %v50
  %v72 = vunpack.c.l.b16 %v51
  %v73 = vunpack.c.l.b16 %v52
  %v74 = vunpack.c.l.b16 %v53
  %v75 = vunpack.c.l.b16 %v54
  %v76 = vunpack.c.l.b16 %v55
  %v77 = vpack.c.b16 %v70, %v69
  %v78 = vpack.c.b16 %v72, %v71
  %v79 = vpack.c.b16 %v74, %v73
  %v80 = vpack.c.b16 %v76, %v75
  %vm85 = vcmask 523264
  %v87 = vsel %vm85, %v60, 0
  %89 = vmatprep.subr.bf16.mxu0 0
  %90 = vmatpush1.bf16.msra.mxu0 %v77
  %91 = vmatprep.subr.bf16.mxu0 0
  %92 = vmatpush1.bf16.msra.mxu0 %v78
  %93 = vmatprep.subr.bf16.mxu0 0
  %94 = vmatpush1.bf16.msra.mxu0 %v79
  %95 = vmatprep.subr.bf16.mxu0 0
  %96 = vmatpush1.bf16.msra.mxu0 %v80
  %97 = vmatprep.subr.bf16.mxu0 0
  %98 = vmatpush1.bf16.msra.mxu0 0
  %99 = vmatprep.subr.bf16.mxu0 0
  %100 = vmatpush1.bf16.msra.mxu0 0
  %101 = vmatprep.subr.bf16.mxu0 0
  %102 = vmatpush1.bf16.msra.mxu0 0
  %103 = vmatprep.subr.bf16.mxu0 0
  %104 = vmatpush1.bf16.msra.mxu0 0
  %105 = vmatprep.subr.bf16.mxu0 0
  %106 = vmatpush1.bf16.msra.mxu0 0
  %107 = vmatprep.subr.bf16.mxu0 0
  %108 = vmatpush1.bf16.msra.mxu0 0
  %109 = vmatprep.subr.bf16.mxu0 0
  %110 = vmatpush1.bf16.msra.mxu0 0
  %111 = vmatprep.subr.bf16.mxu0 0
  %112 = vmatpush1.bf16.msra.mxu0 0
  %113 = vmatprep.subr.bf16.mxu0 0
  %114 = vmatpush1.bf16.msra.mxu0 0
  %115 = vmatprep.subr.bf16.mxu0 0
  %116 = vmatpush1.bf16.msra.mxu0 0
  %117 = vmatprep.subr.bf16.mxu0 0
  %118 = vmatpush1.bf16.msra.mxu0 0
  %119 = vmatprep.subr.bf16.mxu0 0
  %120 = vmatpush1.bf16.msra.mxu0 0
  %121 = vmatprep.mubr.bf16.mxu0 0
  %122 = vmatmul.mubr.bf16.gmra.mrb[0].mxu0 %v87
  %v123 = vpop.f32.mrb[0].mxu0
  %v124 = vadd.f32 0.0, %v123
  %v125 = vpop.f32.mrb[0].mxu0
  %v126 = vpop.f32.mrb[0].mxu0
  %v127 = vadd.f32 0.0, %v126
  %v128 = vpop.f32.mrb[0].mxu0
  %129 = vdwg.mxu0
  %v130 = vld [vmem:[%s5] sm:$0x1]
  %v132 = vlaneseq
  %v133 = vshrl.u32 %v132, 7
  %v134 = vsub.s32 0, %v133
  %v135 = vrot.slane %v130, %v134
  %v137 = vadd.f32 %v124, %v135
  %v138 = vadd.f32 %v127, %v135
  %vm139 = vcmask 261120
  %140 = vst.msk [vmem:[#allocation2] sm:$0xff] %vm139, %v137
  %141 = vst.msk [vmem:[#allocation2 + $0x8] sm:$0xff] %vm139, %v138
  %144 = vrot.lane.b32.xlu0 %v124, 96
  %v145 = vpop.permute.xlu0 %144
  %146 = vrot.lane.b32.xlu0 %v127, 96
  %v147 = vpop.permute.xlu0 %146
  %vm150 = vcmask 15360
  %151 = vst.msk [vmem:[#allocation3] sm:$0xff] %vm150, %v145
  %152 = vst.msk [vmem:[#allocation3 + $0x8] sm:$0xff] %vm150, %v147
  %v153 = vlaneseq
  %v154 = vshrl.u32 %v153, 7
  %vm155 = vcmp.lt.s32.totalorder %v154, 0
  %v156 = vsub.s32 0, %v154
  %v157 = vsel %vm155, %v156, %v154
  %v158 = vshrl.u32 %v157, 1
  %v159 = vand.u32 %v157, 1
  %v160 = vsub.s32 0, %v159
  %v161 = vsel %vm155, %v160, %v159
  %vm162 = vcmp.ne.s32.totalorder %v161, 0
  %vm163 = vcmp.lt.s32.totalorder %v161, 0
  %vm164 = vmand %vm163, %vm162
  %v165 = vadd.s32 %v161, 2
  %v166 = vsel %vm164, %v165, %v161
  %vm167 = vcmp.eq.s32.totalorder %v166, 0
  %v168 = vld [vmem:[%s2] sm:$0x3]
  %v169 = vld [vmem:[%s3] sm:$0x3]
  %171 = vrot.lane.b32.xlu0 %v169, 64
  %v172 = vpop.permute.xlu0 %171
  %v174 = vsel %vm85, %v168, %v172
  %v175 = vpack.c.bf16 %v174, %v174
  %v176 = vld [vmem:[%s6] sm:$0xff]
  %v177 = vld [vmem:[%s6 + $0x8] sm:$0xf]
  %v178 = vld [vmem:[%s6 + $0xc] sm:$0xff]
  %v179 = vld [vmem:[%s6 + $0x14] sm:$0xf]
  %v180 = vld [vmem:[%s6 + $0x18] sm:$0xff]
  %v181 = vld [vmem:[%s6 + $0x20] sm:$0xf]
  %v182 = vld [vmem:[%s6 + $0x24] sm:$0xff]
  %v183 = vld [vmem:[%s6 + $0x2c] sm:$0xf]
  %v184 = vld [vmem:[%s6 + $0x30] sm:$0xff]
  %v185 = vld [vmem:[%s6 + $0x38] sm:$0xf]
  %v186 = vld [vmem:[%s6 + $0x3c] sm:$0xff]
  %v187 = vld [vmem:[%s6 + $0x44] sm:$0xf]
  %v188 = vld [vmem:[%s6 + $0x48] sm:$0xff]
  %v189 = vld [vmem:[%s6 + $0x50] sm:$0xf]
  %v190 = vld [vmem:[%s6 + $0x54] sm:$0xff]
  %v191 = vld [vmem:[%s6 + $0x5c] sm:$0xf]
  %v192 = vld [vmem:[%s6 + $0x60] sm:$0xff]
  %v193 = vld [vmem:[%s6 + $0x68] sm:$0xf]
  %v194 = vld [vmem:[%s6 + $0x6c] sm:$0xff]
  %v195 = vld [vmem:[%s6 + $0x74] sm:$0xf]
  %v196 = vld [vmem:[%s6 + $0x78] sm:$0xff]
  %v197 = vld [vmem:[%s6 + $0x80] sm:$0xf]
  %v198 = vld [vmem:[%s6 + $0x84] sm:$0xff]
  %v199 = vld [vmem:[%s6 + $0x8c] sm:$0xf]
  %v200 = vld [vmem:[%s6 + $0x90] sm:$0xff]
  %v201 = vld [vmem:[%s6 + $0x98] sm:$0xf]
  %v202 = vld [vmem:[%s6 + $0x9c] sm:$0xff]
  %v203 = vld [vmem:[%s6 + $0xa4] sm:$0xf]
  %v204 = vld [vmem:[%s6 + $0xa8] sm:$0xff]
  %v205 = vld [vmem:[%s6 + $0xb0] sm:$0xf]
  %v206 = vld [vmem:[%s6 + $0xb4] sm:$0xff]
  %v207 = vld [vmem:[%s6 + $0xbc] sm:$0xf]
  %v240 = vunpack.c.l.b16 %v176
  %v241 = vunpack.c.h.b16 %v176
  %v242 = vunpack.c.l.b16 %v177
  %v243 = vunpack.c.l.b16 %v178
  %v244 = vunpack.c.h.b16 %v178
  %v245 = vunpack.c.l.b16 %v179
  %v246 = vunpack.c.l.b16 %v180
  %v247 = vunpack.c.h.b16 %v180
  %v248 = vunpack.c.l.b16 %v181
  %v249 = vunpack.c.l.b16 %v182
  %v250 = vunpack.c.h.b16 %v182
  %v251 = vunpack.c.l.b16 %v183
  %v252 = vunpack.c.l.b16 %v184
  %v253 = vunpack.c.h.b16 %v184
  %v254 = vunpack.c.l.b16 %v185
  %v255 = vunpack.c.l.b16 %v186
  %v256 = vunpack.c.h.b16 %v186
  %v257 = vunpack.c.l.b16 %v187
  %v258 = vunpack.c.l.b16 %v188
  %v259 = vunpack.c.h.b16 %v188
  %v260 = vunpack.c.l.b16 %v189
  %v261 = vunpack.c.l.b16 %v190
  %v262 = vunpack.c.h.b16 %v190
  %v263 = vunpack.c.l.b16 %v191
  %v264 = vunpack.c.l.b16 %v192
  %v265 = vunpack.c.h.b16 %v192
  %v266 = vunpack.c.l.b16 %v193
  %v267 = vunpack.c.l.b16 %v194
  %v268 = vunpack.c.h.b16 %v194
  %v269 = vunpack.c.l.b16 %v195
  %v270 = vunpack.c.l.b16 %v196
  %v271 = vunpack.c.h.b16 %v196
  %v272 = vunpack.c.l.b16 %v197
  %v273 = vunpack.c.l.b16 %v198
  %v274 = vunpack.c.h.b16 %v198
  %v275 = vunpack.c.l.b16 %v199
  %v276 = vunpack.c.l.b16 %v200
  %v277 = vunpack.c.h.b16 %v200
  %v278 = vunpack.c.l.b16 %v201
  %v279 = vunpack.c.l.b16 %v202
  %v280 = vunpack.c.h.b16 %v202
  %v281 = vunpack.c.l.b16 %v203
  %v282 = vunpack.c.l.b16 %v204
  %v283 = vunpack.c.h.b16 %v204
  %v284 = vunpack.c.l.b16 %v205
  %v285 = vunpack.c.l.b16 %v206
  %v286 = vunpack.c.h.b16 %v206
  %v287 = vunpack.c.l.b16 %v207
  %v288 = vpack.c.b16 %v243, %v240
  %v289 = vpack.c.b16 %v244, %v241
  %v290 = vpack.c.b16 %v245, %v242
  %v291 = vpack.c.b16 %v249, %v246
  %v292 = vpack.c.b16 %v250, %v247
  %v293 = vpack.c.b16 %v251, %v248
  %v294 = vpack.c.b16 %v255, %v252
  %v295 = vpack.c.b16 %v256, %v253
  %v296 = vpack.c.b16 %v257, %v254
  %v297 = vpack.c.b16 %v261, %v258
  %v298 = vpack.c.b16 %v262, %v259
  %v299 = vpack.c.b16 %v263, %v260
  %v300 = vpack.c.b16 %v267, %v264
  %v301 = vpack.c.b16 %v268, %v265
  %v302 = vpack.c.b16 %v269, %v266
  %v303 = vpack.c.b16 %v273, %v270
  %v304 = vpack.c.b16 %v274, %v271
  %v305 = vpack.c.b16 %v275, %v272
  %v306 = vpack.c.b16 %v279, %v276
  %v307 = vpack.c.b16 %v280, %v277
  %v308 = vpack.c.b16 %v281, %v278
  %v309 = vpack.c.b16 %v285, %v282
  %v310 = vpack.c.b16 %v286, %v283
  %v311 = vpack.c.b16 %v287, %v284
  %336 = vmatprep.subr.bf16.mxu0 %v289
  %337 = vmatpush1.bf16.msra.mxu0 %v288
  %338 = vmatprep.subr.bf16.mxu0 %v292
  %339 = vmatpush1.bf16.msra.mxu0 %v291
  %340 = vmatprep.subr.bf16.mxu0 %v295
  %341 = vmatpush1.bf16.msra.mxu0 %v294
  %342 = vmatprep.subr.bf16.mxu0 %v298
  %343 = vmatpush1.bf16.msra.mxu0 %v297
  %344 = vmatprep.subr.bf16.mxu0 %v301
  %345 = vmatpush1.bf16.msra.mxu0 %v300
  %346 = vmatprep.subr.bf16.mxu0 %v304
  %347 = vmatpush1.bf16.msra.mxu0 %v303
  %348 = vmatprep.subr.bf16.mxu0 %v307
  %349 = vmatpush1.bf16.msra.mxu0 %v306
  %350 = vmatprep.subr.bf16.mxu0 %v310
  %351 = vmatpush1.bf16.msra.mxu0 %v309
  %352 = vmatprep.subr.bf16.mxu0 0
  %353 = vmatpush1.bf16.msra.mxu0 0
  %354 = vmatprep.subr.bf16.mxu0 0
  %355 = vmatpush1.bf16.msra.mxu0 0
  %356 = vmatprep.subr.bf16.mxu0 0
  %357 = vmatpush1.bf16.msra.mxu0 0
  %358 = vmatprep.subr.bf16.mxu0 0
  %359 = vmatpush1.bf16.msra.mxu0 0
  %360 = vmatprep.subr.bf16.mxu0 0
  %361 = vmatpush1.bf16.msra.mxu0 0
  %362 = vmatprep.subr.bf16.mxu0 0
  %363 = vmatpush1.bf16.msra.mxu0 0
  %364 = vmatprep.subr.bf16.mxu0 0
  %365 = vmatpush1.bf16.msra.mxu0 0
  %366 = vmatprep.subr.bf16.mxu0 0
  %367 = vmatpush1.bf16.msra.mxu0 0
  %368 = vmatprep.mubr.bf16.mxu0 0
  %369 = vmatmul.mubr.bf16.gmra.mrb[0].mxu0 %v175
  %v370 = vpop.f32.mrb[0].mxu0
  %v371 = vadd.f32 0.0, %v370
  %v372 = vpop.f32.mrb[0].mxu0
  %v373 = vadd.f32 0.0, %v372
  %v374 = vpop.f32.mrb[0].mxu0
  %v375 = vpop.f32.mrb[0].mxu0
  %376 = vdwg.mxu0
  %377 = vmatprep.subr.bf16.mxu0 0
  %378 = vmatpush1.bf16.msra.mxu0 %v290
  %379 = vmatprep.subr.bf16.mxu0 0
  %380 = vmatpush1.bf16.msra.mxu0 %v293
  %381 = vmatprep.subr.bf16.mxu0 0
  %382 = vmatpush1.bf16.msra.mxu0 %v296
  %383 = vmatprep.subr.bf16.mxu0 0
  %384 = vmatpush1.bf16.msra.mxu0 %v299
  %385 = vmatprep.subr.bf16.mxu0 0
  %386 = vmatpush1.bf16.msra.mxu0 %v302
  %387 = vmatprep.subr.bf16.mxu0 0
  %388 = vmatpush1.bf16.msra.mxu0 %v305
  %389 = vmatprep.subr.bf16.mxu0 0
  %390 = vmatpush1.bf16.msra.mxu0 %v308
  %391 = vmatprep.subr.bf16.mxu0 0
  %392 = vmatpush1.bf16.msra.mxu0 %v311
  %393 = vmatprep.subr.bf16.mxu0 0
  %394 = vmatpush1.bf16.msra.mxu0 0
  %395 = vmatprep.subr.bf16.mxu0 0
  %396 = vmatpush1.bf16.msra.mxu0 0
  %397 = vmatprep.subr.bf16.mxu0 0
  %398 = vmatpush1.bf16.msra.mxu0 0
  %399 = vmatprep.subr.bf16.mxu0 0
  %400 = vmatpush1.bf16.msra.mxu0 0
  %401 = vmatprep.subr.bf16.mxu0 0
  %402 = vmatpush1.bf16.msra.mxu0 0
  %403 = vmatprep.subr.bf16.mxu0 0
  %404 = vmatpush1.bf16.msra.mxu0 0
  %405 = vmatprep.subr.bf16.mxu0 0
  %406 = vmatpush1.bf16.msra.mxu0 0
  %407 = vmatprep.subr.bf16.mxu0 0
  %408 = vmatpush1.bf16.msra.mxu0 0
  %409 = vmatprep.mubr.bf16.mxu0 0
  %410 = vmatmul.mubr.bf16.gmra.mrb[0].mxu0 %v175
  %v411 = vpop.f32.mrb[0].mxu0
  %v412 = vadd.f32 0.0, %v411
  %v413 = vpop.f32.mrb[0].mxu0
  %v414 = vpop.f32.mrb[0].mxu0
  %v415 = vpop.f32.mrb[0].mxu0
  %416 = vdwg.mxu0
  %v419 = vunpack.c.l.s4 1966171168
  %v420 = vunpack.c.0.s8 %v419
  %v421 = vlaneseq
  %v422 = vshrl.u32 %v421, 7
  %v423 = vsub.s32 %v420, %v422
  %v424 = vrot.slane %v412, %v423
  %v425 = vcombine.high %v424, %v424
  %v427 = vunpack.c.l.s4 1966171168
  %v428 = vunpack.c.0.s8 %v427
  %v429 = vlaneseq
  %v430 = vshrl.u32 %v429, 7
  %v431 = vsub.s32 %v428, %v430
  %v432 = vrot.slane %v424, %v431
  %v434 = vunpack.c.l.s4 1966171168
  %v435 = vunpack.c.0.s8 %v434
  %v436 = vlaneseq
  %v437 = vshrl.u32 %v436, 7
  %v438 = vsub.s32 %v435, %v437
  %v439 = vrot.slane %v425, %v438
  %v440 = vld [vmem:[#allocation2] sm:$0xff]
  %v441 = vld [vmem:[#allocation2 + $0x8] sm:$0xff]
  %v442 = vsel %vm167, 1, 0
  %vm443 = vcmp.eq.s32.totalorder %v442, 1
  %v444 = vlaneseq
  %v445 = vshrl.u32 %v444, 7
  %v446 = vsub.s32 0, %v445
  %v447 = vrot.slane %v432, %v446
  %v448 = vlaneseq
  %v449 = vshrl.u32 %v448, 7
  %v450 = vsub.s32 0, %v449
  %v451 = vrot.slane %v439, %v450
  %454 = vrot.lane.b32.xlu0 %v447, 96
  %v455 = vpop.permute.xlu0 %454
  %456 = vrot.lane.b32.xlu0 %v451, 96
  %v457 = vpop.permute.xlu0 %456
  %v460 = vsel %vm443, %v447, %v455
  %v461 = vsel %vm443, %v451, %v457
  %v462 = vadd.f32 %v440, %v460
  %v463 = vadd.f32 %v441, %v461
  %v464 = vtanh.pop %v462
  %v465 = vtanh.pop %v463
  %v466 = vld [vmem:[%s7] sm:$0x1]
  %v468 = vlaneseq
  %v469 = vshrl.u32 %v468, 7
  %v470 = vsub.s32 0, %v469
  %v471 = vrot.slane %v466, %v470
  %v473 = vmul.f32 %v464, %v471
  %v474 = vmul.f32 %v465, %v471
  %v475 = vsel %vm139, %v473, 0.0
  %476 = vadd.xlane.f32.xlu0 %v475
  %v477 = vpop.xlane.xlu0 %476
  %v478 = vsel %vm139, %v474, 0.0
  %479 = vadd.xlane.f32.xlu0 %v478
  %v480 = vpop.xlane.xlu0 %479
  %v481 = vrot.slane %v477, 4
  %v482 = vmax.f32 %v477, %v481
  %v483 = vrot.slane %v482, 2
  %v484 = vmax.f32 %v482, %v483
  %v485 = vrot.slane %v484, 1
  %v486 = vmax.f32 %v484, %v485
  %v487 = vrot.slane %v480, 4
  %v488 = vmax.f32 %v480, %v487
  %v489 = vrot.slane %v488, 2
  %v490 = vmax.f32 %v488, %v489
  %v491 = vrot.slane %v490, 1
  %v492 = vmax.f32 %v490, %v491
  %v493 = vsub.f32 %v477, %v486
  %v494 = vsub.f32 %v480, %v492
  %v495 = vmul.f32 %v493, 1.442695
  %v496 = vpow.pop %v495
  %v497 = vmul.f32 %v494, 1.442695
  %v498 = vpow.pop %v497
  %v499 = vrot.slane %v496, 4
  %v500 = vadd.f32 %v496, %v499
  %v501 = vrot.slane %v500, 2
  %v502 = vadd.f32 %v500, %v501
  %v503 = vrot.slane %v502, 1
  %v504 = vadd.f32 %v502, %v503
  %v505 = vrot.slane %v498, 4
  %v506 = vadd.f32 %v498, %v505
  %v507 = vrot.slane %v506, 2
  %v508 = vadd.f32 %v506, %v507
  %v509 = vrot.slane %v508, 1
  %v510 = vadd.f32 %v508, %v509
  %v511 = vrcp.pop %v504
  %v512 = vrcp.pop %v510
  %v513 = vmul.f32 %v496, %v511
  %v514 = vmul.f32 %v498, %v512
  %v515 = vadd.f32 %v513, 0.0
  %v516 = vadd.f32 %v514, 0.0
  %v517 = vld [vmem:[#allocation3] sm:$0xff]
  %v518 = vld [vmem:[#allocation3 + $0x8] sm:$0xff]
  %v519 = vmul.f32 %v513, %v517
  %v520 = vmul.f32 %v514, %v518
  %vm521 = vcmask 7168
  %v522 = vsel %vm521, %v519, 0.0
  %v523 = vrot.slane %v522, 4
  %v524 = vadd.f32 %v522, %v523
  %v525 = vrot.slane %v524, 2
  %v526 = vadd.f32 %v524, %v525
  %v527 = vrot.slane %v526, 1
  %v528 = vadd.f32 %v526, %v527
  %v529 = vsel %vm521, %v520, 0.0
  %v530 = vrot.slane %v529, 4
  %v531 = vadd.f32 %v529, %v530
  %v532 = vrot.slane %v531, 2
  %v533 = vadd.f32 %v531, %v532
  %v534 = vrot.slane %v533, 1
  %v535 = vadd.f32 %v533, %v534
  %v536 = vld [vmem:[%s1] sm:$0x3]
  %v538 = vrot.slane %v536, 1
  %v541 = vadd.f32 %v528, %v536
  %v542 = vadd.f32 %v535, %v538
  %v543 = vld [vmem:[%s8] sm:$0x3]
  %545 = vset.pattern.permute.xlu0 0
  %546 = vperm.xlu0 %545, %v541
  %v547 = vpop.permute.xlu0 %546
  %550 = vset.pattern.permute.xlu0 0
  %551 = vperm.xlu0 %550, %v542
  %v552 = vpop.permute.xlu0 %551
  %v555 = vlaneseq
  %v556 = vshrl.u32 %v555, 7
  %v557 = vsub.s32 0, %v556
  %v558 = vrot.slane %v543, %v557
  %v559 = vlaneseq
  %v560 = vshrl.u32 %v559, 7
  %v561 = vsub.s32 1, %v560
  %v562 = vrot.slane %v543, %v561
  %v565 = vmul.f32 %v547, %v558
  %v566 = vmul.f32 %v547, %v562
  %v567 = vmul.f32 %v552, %v558
  %v568 = vmul.f32 %v552, %v562
  %v573 = vrot.slane %v567, 7
  %vm574 = vcmask 1041409
  %v575 = vsel %vm574, %v573, %v565
  %v576 = vrot.slane %v568, 7
  %v577 = vsel %vm574, %v576, %v566
  %v580 = vadd.f32 %v371, %v575
  %v581 = vadd.f32 %v373, %v577
  %v582 = vld [vmem:[%s9] sm:$0x3]
  %v584 = vlaneseq
  %v585 = vshrl.u32 %v584, 7
  %v586 = vsub.s32 0, %v585
  %v587 = vrot.slane %v582, %v586
  %v588 = vlaneseq
  %v589 = vshrl.u32 %v588, 7
  %v590 = vsub.s32 1, %v589
  %v591 = vrot.slane %v582, %v590
  %v594 = vadd.f32 %v580, %v587
  %v595 = vadd.f32 %v581, %v591
  %v596 = vxor.u32 %v594, 2147483648
  %v597 = vxor.u32 %v595, 2147483648
  %v598 = vmul.f32 %v596, 1.442695
  %v599 = vpow.pop %v598
  %v600 = vmul.f32 %v597, 1.442695
  %v601 = vpow.pop %v600
  %v602 = vadd.f32 %v599, 1.0
  %v603 = vadd.f32 %v601, 1.0
  %v604 = vrcp.pop %v602
  %v605 = vmul.f32 1.0, %v604
  %v606 = vrcp.pop %v603
  %v607 = vmul.f32 1.0, %v606
  %v608 = vtanh.pop %v595
  %v609 = vmul.f32 %v605, %v172
  %611 = vrot.lane.b32.xlu0 %v608, 64
  %v612 = vpop.permute.xlu0 %611
  %v614 = vmul.f32 %v605, %v612
  %616 = vrot.lane.b32.xlu0 %v614, 64
  %v617 = vpop.permute.xlu0 %616
  %v619 = vadd.f32 %v609, %v617
  %v620 = vtanh.pop %v619
  %622 = vrot.lane.b32.xlu0 %v620, 64
  %v623 = vpop.permute.xlu0 %622
  %v625 = vmul.f32 %v607, %v623
  %v626 = vsel %vm85, %v625, %v619
  %v627 = vpack.c.bf16 %v626, %v626
  %628 = vmatprep.subr.bf16.mxu0 %v289
  %629 = vmatpush1.bf16.msra.mxu0 %v288
  %630 = vmatprep.subr.bf16.mxu0 %v292
  %631 = vmatpush1.bf16.msra.mxu0 %v291
  %632 = vmatprep.subr.bf16.mxu0 %v295
  %633 = vmatpush1.bf16.msra.mxu0 %v294
  %634 = vmatprep.subr.bf16.mxu0 %v298
  %635 = vmatpush1.bf16.msra.mxu0 %v297
  %636 = vmatprep.subr.bf16.mxu0 %v301
  %637 = vmatpush1.bf16.msra.mxu0 %v300
  %638 = vmatprep.subr.bf16.mxu0 %v304
  %639 = vmatpush1.bf16.msra.mxu0 %v303
  %640 = vmatprep.subr.bf16.mxu0 %v307
  %641 = vmatpush1.bf16.msra.mxu0 %v306
  %642 = vmatprep.subr.bf16.mxu0 %v310
  %643 = vmatpush1.bf16.msra.mxu0 %v309
  %644 = vmatprep.subr.bf16.mxu0 0
  %645 = vmatpush1.bf16.msra.mxu0 0
  %646 = vmatprep.subr.bf16.mxu0 0
  %647 = vmatpush1.bf16.msra.mxu0 0
  %648 = vmatprep.subr.bf16.mxu0 0
  %649 = vmatpush1.bf16.msra.mxu0 0
  %650 = vmatprep.subr.bf16.mxu0 0
  %651 = vmatpush1.bf16.msra.mxu0 0
  %652 = vmatprep.subr.bf16.mxu0 0
  %653 = vmatpush1.bf16.msra.mxu0 0
  %654 = vmatprep.subr.bf16.mxu0 0
  %655 = vmatpush1.bf16.msra.mxu0 0
  %656 = vmatprep.subr.bf16.mxu0 0
  %657 = vmatpush1.bf16.msra.mxu0 0
  %658 = vmatprep.subr.bf16.mxu0 0
  %659 = vmatpush1.bf16.msra.mxu0 0
  %660 = vmatprep.mubr.bf16.mxu0 0
  %661 = vmatmul.mubr.bf16.gmra.mrb[0].mxu0 %v627
  %v662 = vpop.f32.mrb[0].mxu0
  %v663 = vadd.f32 0.0, %v662
  %v664 = vpop.f32.mrb[0].mxu0
  %v665 = vadd.f32 0.0, %v664
  %v666 = vpop.f32.mrb[0].mxu0
  %v667 = vpop.f32.mrb[0].mxu0
  %668 = vdwg.mxu0
  %669 = vmatprep.subr.bf16.mxu0 0
  %670 = vmatpush1.bf16.msra.mxu0 %v290
  %671 = vmatprep.subr.bf16.mxu0 0
  %672 = vmatpush1.bf16.msra.mxu0 %v293
  %673 = vmatprep.subr.bf16.mxu0 0
  %674 = vmatpush1.bf16.msra.mxu0 %v296
  %675 = vmatprep.subr.bf16.mxu0 0
  %676 = vmatpush1.bf16.msra.mxu0 %v299
  %677 = vmatprep.subr.bf16.mxu0 0
  %678 = vmatpush1.bf16.msra.mxu0 %v302
  %679 = vmatprep.subr.bf16.mxu0 0
  %680 = vmatpush1.bf16.msra.mxu0 %v305
  %681 = vmatprep.subr.bf16.mxu0 0
  %682 = vmatpush1.bf16.msra.mxu0 %v308
  %683 = vmatprep.subr.bf16.mxu0 0
  %684 = vmatpush1.bf16.msra.mxu0 %v311
  %685 = vmatprep.subr.bf16.mxu0 0
  %686 = vmatpush1.bf16.msra.mxu0 0
  %687 = vmatprep.subr.bf16.mxu0 0
  %688 = vmatpush1.bf16.msra.mxu0 0
  %689 = vmatprep.subr.bf16.mxu0 0
  %690 = vmatpush1.bf16.msra.mxu0 0
  %691 = vmatprep.subr.bf16.mxu0 0
  %692 = vmatpush1.bf16.msra.mxu0 0
  %693 = vmatprep.subr.bf16.mxu0 0
  %694 = vmatpush1.bf16.msra.mxu0 0
  %695 = vmatprep.subr.bf16.mxu0 0
  %696 = vmatpush1.bf16.msra.mxu0 0
  %697 = vmatprep.subr.bf16.mxu0 0
  %698 = vmatpush1.bf16.msra.mxu0 0
  %699 = vmatprep.subr.bf16.mxu0 0
  %700 = vmatpush1.bf16.msra.mxu0 0
  %701 = vmatprep.mubr.bf16.mxu0 0
  %702 = vmatmul.mubr.bf16.gmra.mrb[0].mxu0 %v627
  %v703 = vpop.f32.mrb[0].mxu0
  %v704 = vadd.f32 0.0, %v703
  %v705 = vpop.f32.mrb[0].mxu0
  %v706 = vpop.f32.mrb[0].mxu0
  %v707 = vpop.f32.mrb[0].mxu0
  %708 = vdwg.mxu0
  %v711 = vunpack.c.l.s4 1966171168
  %v712 = vunpack.c.0.s8 %v711
  %v713 = vlaneseq
  %v714 = vshrl.u32 %v713, 7
  %v715 = vsub.s32 %v712, %v714
  %v716 = vrot.slane %v704, %v715
  %v717 = vcombine.high %v716, %v716
  %v719 = vunpack.c.l.s4 1966171168
  %v720 = vunpack.c.0.s8 %v719
  %v721 = vlaneseq
  %v722 = vshrl.u32 %v721, 7
  %v723 = vsub.s32 %v720, %v722
  %v724 = vrot.slane %v716, %v723
  %v726 = vunpack.c.l.s4 1966171168
  %v727 = vunpack.c.0.s8 %v726
  %v728 = vlaneseq
  %v729 = vshrl.u32 %v728, 7
  %v730 = vsub.s32 %v727, %v729
  %v731 = vrot.slane %v717, %v730
  %v732 = vlaneseq
  %v733 = vshrl.u32 %v732, 7
  %v734 = vsub.s32 0, %v733
  %v735 = vrot.slane %v724, %v734
  %v736 = vlaneseq
  %v737 = vshrl.u32 %v736, 7
  %v738 = vsub.s32 0, %v737
  %v739 = vrot.slane %v731, %v738
  %742 = vrot.lane.b32.xlu0 %v735, 96
  %v743 = vpop.permute.xlu0 %742
  %744 = vrot.lane.b32.xlu0 %v739, 96
  %v745 = vpop.permute.xlu0 %744
  %v748 = vsel %vm443, %v735, %v743
  %v749 = vsel %vm443, %v739, %v745
  %v750 = vadd.f32 %v440, %v748
  %v751 = vadd.f32 %v441, %v749
  %v752 = vtanh.pop %v750
  %v753 = vtanh.pop %v751
  %v754 = vmul.f32 %v752, %v471
  %v755 = vmul.f32 %v753, %v471
  %v756 = vsel %vm139, %v754, 0.0
  %757 = vadd.xlane.f32.xlu0 %v756
  %v758 = vpop.xlane.xlu0 %757
  %v759 = vsel %vm139, %v755, 0.0
  %760 = vadd.xlane.f32.xlu0 %v759
  %v761 = vpop.xlane.xlu0 %760
  %v762 = vrot.slane %v758, 4
  %v763 = vmax.f32 %v758, %v762
  %v764 = vrot.slane %v763, 2
  %v765 = vmax.f32 %v763, %v764
  %v766 = vrot.slane %v765, 1
  %v767 = vmax.f32 %v765, %v766
  %v768 = vrot.slane %v761, 4
  %v769 = vmax.f32 %v761, %v768
  %v770 = vrot.slane %v769, 2
  %v771 = vmax.f32 %v769, %v770
  %v772 = vrot.slane %v771, 1
  %v773 = vmax.f32 %v771, %v772
  %v774 = vsub.f32 %v758, %v767
  %v775 = vsub.f32 %v761, %v773
  %v776 = vmul.f32 %v774, 1.442695
  %v777 = vpow.pop %v776
  %v778 = vmul.f32 %v775, 1.442695
  %v779 = vpow.pop %v778
  %v780 = vrot.slane %v777, 4
  %v781 = vadd.f32 %v777, %v780
  %v782 = vrot.slane %v781, 2
  %v783 = vadd.f32 %v781, %v782
  %v784 = vrot.slane %v783, 1
  %v785 = vadd.f32 %v783, %v784
  %v786 = vrot.slane %v779, 4
  %v787 = vadd.f32 %v779, %v786
  %v788 = vrot.slane %v787, 2
  %v789 = vadd.f32 %v787, %v788
  %v790 = vrot.slane %v789, 1
  %v791 = vadd.f32 %v789, %v790
  %v792 = vrcp.pop %v785
  %v793 = vrcp.pop %v791
  %v794 = vmul.f32 %v777, %v792
  %v795 = vmul.f32 %v779, %v793
  %v796 = vadd.f32 %v515, %v794
  %v797 = vadd.f32 %v516, %v795
  %v798 = vmul.f32 %v794, %v517
  %v799 = vmul.f32 %v795, %v518
  %v800 = vsel %vm521, %v798, 0.0
  %v801 = vrot.slane %v800, 4
  %v802 = vadd.f32 %v800, %v801
  %v803 = vrot.slane %v802, 2
  %v804 = vadd.f32 %v802, %v803
  %v805 = vrot.slane %v804, 1
  %v806 = vadd.f32 %v804, %v805
  %v807 = vsel %vm521, %v799, 0.0
  %v808 = vrot.slane %v807, 4
  %v809 = vadd.f32 %v807, %v808
  %v810 = vrot.slane %v809, 2
  %v811 = vadd.f32 %v809, %v810
  %v812 = vrot.slane %v811, 1
  %v813 = vadd.f32 %v811, %v812
  %v814 = vld [vmem:[%s1] sm:$0x3]
  %v816 = vrot.slane %v814, 1
  %817 = vrot.lane.b32.xlu0 %v814, 127
  %v818 = vpop.permute.xlu0 %817
  %819 = vrot.lane.b32.xlu0 %v816, 127
  %v820 = vpop.permute.xlu0 %819
  %v823 = vadd.f32 %v806, %v818
  %v824 = vadd.f32 %v813, %v820
  %826 = vset.pattern.permute.xlu0 0
  %827 = vperm.xlu0 %826, %v823
  %v828 = vpop.permute.xlu0 %827
  %831 = vset.pattern.permute.xlu0 0
  %832 = vperm.xlu0 %831, %v824
  %v833 = vpop.permute.xlu0 %832
  %v835 = vmul.f32 %v828, %v558
  %v836 = vmul.f32 %v828, %v562
  %v837 = vmul.f32 %v833, %v558
  %v838 = vmul.f32 %v833, %v562
  %v843 = vrot.slane %v837, 7
  %v844 = vsel %vm574, %v843, %v835
  %v845 = vrot.slane %v838, 7
  %v846 = vsel %vm574, %v845, %v836
  %v849 = vadd.f32 %v663, %v844
  %v850 = vadd.f32 %v665, %v846
  %v851 = vadd.f32 %v849, %v587
  %v852 = vadd.f32 %v850, %v591
  %v853 = vxor.u32 %v851, 2147483648
  %v854 = vxor.u32 %v852, 2147483648
  %v855 = vmul.f32 %v853, 1.442695
  %v856 = vpow.pop %v855
  %v857 = vmul.f32 %v854, 1.442695
  %v858 = vpow.pop %v857
  %v859 = vadd.f32 %v856, 1.0
  %v860 = vadd.f32 %v858, 1.0
  %v861 = vrcp.pop %v859
  %v862 = vmul.f32 1.0, %v861
  %v863 = vrcp.pop %v860
  %v864 = vmul.f32 1.0, %v863
  %v865 = vtanh.pop %v852
  %v866 = vmul.f32 %v862, %v619
  %868 = vrot.lane.b32.xlu0 %v865, 64
  %v869 = vpop.permute.xlu0 %868
  %v871 = vmul.f32 %v862, %v869
  %873 = vrot.lane.b32.xlu0 %v871, 64
  %v874 = vpop.permute.xlu0 %873
  %v876 = vadd.f32 %v866, %v874
  %v877 = vtanh.pop %v876
  %879 = vrot.lane.b32.xlu0 %v877, 64
  %v880 = vpop.permute.xlu0 %879
  %v882 = vmul.f32 %v864, %v880
  %v883 = vsel %vm85, %v882, %v876
  %v884 = vpack.c.bf16 %v883, %v883
  %885 = vmatprep.subr.bf16.mxu0 %v289
  %886 = vmatpush1.bf16.msra.mxu0 %v288
  %887 = vmatprep.subr.bf16.mxu0 %v292
  %888 = vmatpush1.bf16.msra.mxu0 %v291
  %889 = vmatprep.subr.bf16.mxu0 %v295
  %890 = vmatpush1.bf16.msra.mxu0 %v294
  %891 = vmatprep.subr.bf16.mxu0 %v298
  %892 = vmatpush1.bf16.msra.mxu0 %v297
  %893 = vmatprep.subr.bf16.mxu0 %v301
  %894 = vmatpush1.bf16.msra.mxu0 %v300
  %895 = vmatprep.subr.bf16.mxu0 %v304
  %896 = vmatpush1.bf16.msra.mxu0 %v303
  %897 = vmatprep.subr.bf16.mxu0 %v307
  %898 = vmatpush1.bf16.msra.mxu0 %v306
  %899 = vmatprep.subr.bf16.mxu0 %v310
  %900 = vmatpush1.bf16.msra.mxu0 %v309
  %901 = vmatprep.subr.bf16.mxu0 0
  %902 = vmatpush1.bf16.msra.mxu0 0
  %903 = vmatprep.subr.bf16.mxu0 0
  %904 = vmatpush1.bf16.msra.mxu0 0
  %905 = vmatprep.subr.bf16.mxu0 0
  %906 = vmatpush1.bf16.msra.mxu0 0
  %907 = vmatprep.subr.bf16.mxu0 0
  %908 = vmatpush1.bf16.msra.mxu0 0
  %909 = vmatprep.subr.bf16.mxu0 0
  %910 = vmatpush1.bf16.msra.mxu0 0
  %911 = vmatprep.subr.bf16.mxu0 0
  %912 = vmatpush1.bf16.msra.mxu0 0
  %913 = vmatprep.subr.bf16.mxu0 0
  %914 = vmatpush1.bf16.msra.mxu0 0
  %915 = vmatprep.subr.bf16.mxu0 0
  %916 = vmatpush1.bf16.msra.mxu0 0
  %917 = vmatprep.mubr.bf16.mxu0 0
  %918 = vmatmul.mubr.bf16.gmra.mrb[0].mxu0 %v884
  %v919 = vpop.f32.mrb[0].mxu0
  %v920 = vadd.f32 0.0, %v919
  %v921 = vpop.f32.mrb[0].mxu0
  %v922 = vadd.f32 0.0, %v921
  %v923 = vpop.f32.mrb[0].mxu0
  %v924 = vpop.f32.mrb[0].mxu0
  %925 = vdwg.mxu0
  %926 = vmatprep.subr.bf16.mxu0 0
  %927 = vmatpush1.bf16.msra.mxu0 %v290
  %928 = vmatprep.subr.bf16.mxu0 0
  %929 = vmatpush1.bf16.msra.mxu0 %v293
  %930 = vmatprep.subr.bf16.mxu0 0
  %931 = vmatpush1.bf16.msra.mxu0 %v296
  %932 = vmatprep.subr.bf16.mxu0 0
  %933 = vmatpush1.bf16.msra.mxu0 %v299
  %934 = vmatprep.subr.bf16.mxu0 0
  %935 = vmatpush1.bf16.msra.mxu0 %v302
  %936 = vmatprep.subr.bf16.mxu0 0
  %937 = vmatpush1.bf16.msra.mxu0 %v305
  %938 = vmatprep.subr.bf16.mxu0 0
  %939 = vmatpush1.bf16.msra.mxu0 %v308
  %940 = vmatprep.subr.bf16.mxu0 0
  %941 = vmatpush1.bf16.msra.mxu0 %v311
  %942 = vmatprep.subr.bf16.mxu0 0
  %943 = vmatpush1.bf16.msra.mxu0 0
  %944 = vmatprep.subr.bf16.mxu0 0
  %945 = vmatpush1.bf16.msra.mxu0 0
  %946 = vmatprep.subr.bf16.mxu0 0
  %947 = vmatpush1.bf16.msra.mxu0 0
  %948 = vmatprep.subr.bf16.mxu0 0
  %949 = vmatpush1.bf16.msra.mxu0 0
  %950 = vmatprep.subr.bf16.mxu0 0
  %951 = vmatpush1.bf16.msra.mxu0 0
  %952 = vmatprep.subr.bf16.mxu0 0
  %953 = vmatpush1.bf16.msra.mxu0 0
  %954 = vmatprep.subr.bf16.mxu0 0
  %955 = vmatpush1.bf16.msra.mxu0 0
  %956 = vmatprep.subr.bf16.mxu0 0
  %957 = vmatpush1.bf16.msra.mxu0 0
  %958 = vmatprep.mubr.bf16.mxu0 0
  %959 = vmatmul.mubr.bf16.gmra.mrb[0].mxu0 %v884
  %v960 = vpop.f32.mrb[0].mxu0
  %v961 = vadd.f32 0.0, %v960
  %v962 = vpop.f32.mrb[0].mxu0
  %v963 = vpop.f32.mrb[0].mxu0
  %v964 = vpop.f32.mrb[0].mxu0
  %965 = vdwg.mxu0
  %v968 = vunpack.c.l.s4 1966171168
  %v969 = vunpack.c.0.s8 %v968
  %v970 = vlaneseq
  %v971 = vshrl.u32 %v970, 7
  %v972 = vsub.s32 %v969, %v971
  %v973 = vrot.slane %v961, %v972
  %v974 = vcombine.high %v973, %v973
  %v976 = vunpack.c.l.s4 1966171168
  %v977 = vunpack.c.0.s8 %v976
  %v978 = vlaneseq
  %v979 = vshrl.u32 %v978, 7
  %v980 = vsub.s32 %v977, %v979
  %v981 = vrot.slane %v973, %v980
  %v983 = vunpack.c.l.s4 1966171168
  %v984 = vunpack.c.0.s8 %v983
  %v985 = vlaneseq
  %v986 = vshrl.u32 %v985, 7
  %v987 = vsub.s32 %v984, %v986
  %v988 = vrot.slane %v974, %v987
  %v989 = vlaneseq
  %v990 = vshrl.u32 %v989, 7
  %v991 = vsub.s32 0, %v990
  %v992 = vrot.slane %v981, %v991
  %v993 = vlaneseq
  %v994 = vshrl.u32 %v993, 7
  %v995 = vsub.s32 0, %v994
  %v996 = vrot.slane %v988, %v995
  %999 = vrot.lane.b32.xlu0 %v992, 96
  %v1000 = vpop.permute.xlu0 %999
  %1001 = vrot.lane.b32.xlu0 %v996, 96
  %v1002 = vpop.permute.xlu0 %1001
  %v1005 = vsel %vm443, %v992, %v1000
  %v1006 = vsel %vm443, %v996, %v1002
  %v1007 = vadd.f32 %v440, %v1005
  %v1008 = vadd.f32 %v441, %v1006
  %v1009 = vtanh.pop %v1007
  %v1010 = vtanh.pop %v1008
  %v1011 = vmul.f32 %v1009, %v471
  %v1012 = vmul.f32 %v1010, %v471
  %v1013 = vsel %vm139, %v1011, 0.0
  %1014 = vadd.xlane.f32.xlu0 %v1013
  %v1015 = vpop.xlane.xlu0 %1014
  %v1016 = vsel %vm139, %v1012, 0.0
  %1017 = vadd.xlane.f32.xlu0 %v1016
  %v1018 = vpop.xlane.xlu0 %1017
  %v1019 = vrot.slane %v1015, 4
  %v1020 = vmax.f32 %v1015, %v1019
  %v1021 = vrot.slane %v1020, 2
  %v1022 = vmax.f32 %v1020, %v1021
  %v1023 = vrot.slane %v1022, 1
  %v1024 = vmax.f32 %v1022, %v1023
  %v1025 = vrot.slane %v1018, 4
  %v1026 = vmax.f32 %v1018, %v1025
  %v1027 = vrot.slane %v1026, 2
  %v1028 = vmax.f32 %v1026, %v1027
  %v1029 = vrot.slane %v1028, 1
  %v1030 = vmax.f32 %v1028, %v1029
  %v1031 = vsub.f32 %v1015, %v1024
  %v1032 = vsub.f32 %v1018, %v1030
  %v1033 = vmul.f32 %v1031, 1.442695
  %v1034 = vpow.pop %v1033
  %v1035 = vmul.f32 %v1032, 1.442695
  %v1036 = vpow.pop %v1035
  %v1037 = vrot.slane %v1034, 4
  %v1038 = vadd.f32 %v1034, %v1037
  %v1039 = vrot.slane %v1038, 2
  %v1040 = vadd.f32 %v1038, %v1039
  %v1041 = vrot.slane %v1040, 1
  %v1042 = vadd.f32 %v1040, %v1041
  %v1043 = vrot.slane %v1036, 4
  %v1044 = vadd.f32 %v1036, %v1043
  %v1045 = vrot.slane %v1044, 2
  %v1046 = vadd.f32 %v1044, %v1045
  %v1047 = vrot.slane %v1046, 1
  %v1048 = vadd.f32 %v1046, %v1047
  %v1049 = vrcp.pop %v1042
  %v1050 = vrcp.pop %v1048
  %v1051 = vmul.f32 %v1034, %v1049
  %v1052 = vmul.f32 %v1036, %v1050
  %v1053 = vadd.f32 %v796, %v1051
  %v1054 = vadd.f32 %v797, %v1052
  %v1055 = vmul.f32 %v1051, %v517
  %v1056 = vmul.f32 %v1052, %v518
  %v1057 = vsel %vm521, %v1055, 0.0
  %v1058 = vrot.slane %v1057, 4
  %v1059 = vadd.f32 %v1057, %v1058
  %v1060 = vrot.slane %v1059, 2
  %v1061 = vadd.f32 %v1059, %v1060
  %v1062 = vrot.slane %v1061, 1
  %v1063 = vadd.f32 %v1061, %v1062
  %v1064 = vsel %vm521, %v1056, 0.0
  %v1065 = vrot.slane %v1064, 4
  %v1066 = vadd.f32 %v1064, %v1065
  %v1067 = vrot.slane %v1066, 2
  %v1068 = vadd.f32 %v1066, %v1067
  %v1069 = vrot.slane %v1068, 1
  %v1070 = vadd.f32 %v1068, %v1069
  %v1071 = vld [vmem:[%s1] sm:$0x3]
  %v1073 = vrot.slane %v1071, 1
  %1074 = vrot.lane.b32.xlu0 %v1071, 126
  %v1075 = vpop.permute.xlu0 %1074
  %1076 = vrot.lane.b32.xlu0 %v1073, 126
  %v1077 = vpop.permute.xlu0 %1076
  %v1080 = vadd.f32 %v1063, %v1075
  %v1081 = vadd.f32 %v1070, %v1077
  %1083 = vset.pattern.permute.xlu0 0
  %1084 = vperm.xlu0 %1083, %v1080
  %v1085 = vpop.permute.xlu0 %1084
  %1088 = vset.pattern.permute.xlu0 0
  %1089 = vperm.xlu0 %1088, %v1081
  %v1090 = vpop.permute.xlu0 %1089
  %v1092 = vmul.f32 %v1085, %v558
  %v1093 = vmul.f32 %v1085, %v562
  %v1094 = vmul.f32 %v1090, %v558
  %v1095 = vmul.f32 %v1090, %v562
  %v1100 = vrot.slane %v1094, 7
  %v1101 = vsel %vm574, %v1100, %v1092
  %v1102 = vrot.slane %v1095, 7
  %v1103 = vsel %vm574, %v1102, %v1093
  %v1106 = vadd.f32 %v920, %v1101
  %v1107 = vadd.f32 %v922, %v1103
  %v1108 = vadd.f32 %v1106, %v587
  %v1109 = vadd.f32 %v1107, %v591
  %v1110 = vxor.u32 %v1108, 2147483648
  %v1111 = vxor.u32 %v1109, 2147483648
  %v1112 = vmul.f32 %v1110, 1.442695
  %v1113 = vpow.pop %v1112
  %v1114 = vmul.f32 %v1111, 1.442695
  %v1115 = vpow.pop %v1114
  %v1116 = vadd.f32 %v1113, 1.0
  %v1117 = vadd.f32 %v1115, 1.0
  %v1118 = vrcp.pop %v1116
  %v1119 = vmul.f32 1.0, %v1118
  %v1120 = vrcp.pop %v1117
  %v1121 = vmul.f32 1.0, %v1120
  %v1122 = vtanh.pop %v1109
  %v1123 = vmul.f32 %v1119, %v876
  %1125 = vrot.lane.b32.xlu0 %v1122, 64
  %v1126 = vpop.permute.xlu0 %1125
  %v1128 = vmul.f32 %v1119, %v1126
  %1130 = vrot.lane.b32.xlu0 %v1128, 64
  %v1131 = vpop.permute.xlu0 %1130
  %v1133 = vadd.f32 %v1123, %v1131
  %v1134 = vtanh.pop %v1133
  %1136 = vrot.lane.b32.xlu0 %v1134, 64
  %v1137 = vpop.permute.xlu0 %1136
  %v1139 = vmul.f32 %v1121, %v1137
  %v1140 = vsel %vm85, %v1139, %v1133
  %v1141 = vpack.c.bf16 %v1140, %v1140
  %1142 = vmatprep.subr.bf16.mxu0 %v289
  %1143 = vmatpush1.bf16.msra.mxu0 %v288
  %1144 = vmatprep.subr.bf16.mxu0 %v292
  %1145 = vmatpush1.bf16.msra.mxu0 %v291
  %1146 = vmatprep.subr.bf16.mxu0 %v295
  %1147 = vmatpush1.bf16.msra.mxu0 %v294
  %1148 = vmatprep.subr.bf16.mxu0 %v298
  %1149 = vmatpush1.bf16.msra.mxu0 %v297
  %1150 = vmatprep.subr.bf16.mxu0 %v301
  %1151 = vmatpush1.bf16.msra.mxu0 %v300
  %1152 = vmatprep.subr.bf16.mxu0 %v304
  %1153 = vmatpush1.bf16.msra.mxu0 %v303
  %1154 = vmatprep.subr.bf16.mxu0 %v307
  %1155 = vmatpush1.bf16.msra.mxu0 %v306
  %1156 = vmatprep.subr.bf16.mxu0 %v310
  %1157 = vmatpush1.bf16.msra.mxu0 %v309
  %1158 = vmatprep.subr.bf16.mxu0 0
  %1159 = vmatpush1.bf16.msra.mxu0 0
  %1160 = vmatprep.subr.bf16.mxu0 0
  %1161 = vmatpush1.bf16.msra.mxu0 0
  %1162 = vmatprep.subr.bf16.mxu0 0
  %1163 = vmatpush1.bf16.msra.mxu0 0
  %1164 = vmatprep.subr.bf16.mxu0 0
  %1165 = vmatpush1.bf16.msra.mxu0 0
  %1166 = vmatprep.subr.bf16.mxu0 0
  %1167 = vmatpush1.bf16.msra.mxu0 0
  %1168 = vmatprep.subr.bf16.mxu0 0
  %1169 = vmatpush1.bf16.msra.mxu0 0
  %1170 = vmatprep.subr.bf16.mxu0 0
  %1171 = vmatpush1.bf16.msra.mxu0 0
  %1172 = vmatprep.subr.bf16.mxu0 0
  %1173 = vmatpush1.bf16.msra.mxu0 0
  %1174 = vmatprep.mubr.bf16.mxu0 0
  %1175 = vmatmul.mubr.bf16.gmra.mrb[0].mxu0 %v1141
  %v1176 = vpop.f32.mrb[0].mxu0
  %v1177 = vadd.f32 0.0, %v1176
  %v1178 = vpop.f32.mrb[0].mxu0
  %v1179 = vadd.f32 0.0, %v1178
  %v1180 = vpop.f32.mrb[0].mxu0
  %v1181 = vpop.f32.mrb[0].mxu0
  %1182 = vdwg.mxu0
  %1183 = vmatprep.subr.bf16.mxu0 0
  %1184 = vmatpush1.bf16.msra.mxu0 %v290
  %1185 = vmatprep.subr.bf16.mxu0 0
  %1186 = vmatpush1.bf16.msra.mxu0 %v293
  %1187 = vmatprep.subr.bf16.mxu0 0
  %1188 = vmatpush1.bf16.msra.mxu0 %v296
  %1189 = vmatprep.subr.bf16.mxu0 0
  %1190 = vmatpush1.bf16.msra.mxu0 %v299
  %1191 = vmatprep.subr.bf16.mxu0 0
  %1192 = vmatpush1.bf16.msra.mxu0 %v302
  %1193 = vmatprep.subr.bf16.mxu0 0
  %1194 = vmatpush1.bf16.msra.mxu0 %v305
  %1195 = vmatprep.subr.bf16.mxu0 0
  %1196 = vmatpush1.bf16.msra.mxu0 %v308
  %1197 = vmatprep.subr.bf16.mxu0 0
  %1198 = vmatpush1.bf16.msra.mxu0 %v311
  %1199 = vmatprep.subr.bf16.mxu0 0
  %1200 = vmatpush1.bf16.msra.mxu0 0
  %1201 = vmatprep.subr.bf16.mxu0 0
  %1202 = vmatpush1.bf16.msra.mxu0 0
  %1203 = vmatprep.subr.bf16.mxu0 0
  %1204 = vmatpush1.bf16.msra.mxu0 0
  %1205 = vmatprep.subr.bf16.mxu0 0
  %1206 = vmatpush1.bf16.msra.mxu0 0
  %1207 = vmatprep.subr.bf16.mxu0 0
  %1208 = vmatpush1.bf16.msra.mxu0 0
  %1209 = vmatprep.subr.bf16.mxu0 0
  %1210 = vmatpush1.bf16.msra.mxu0 0
  %1211 = vmatprep.subr.bf16.mxu0 0
  %1212 = vmatpush1.bf16.msra.mxu0 0
  %1213 = vmatprep.subr.bf16.mxu0 0
  %1214 = vmatpush1.bf16.msra.mxu0 0
  %1215 = vmatprep.mubr.bf16.mxu0 0
  %1216 = vmatmul.mubr.bf16.gmra.mrb[0].mxu0 %v1141
  %v1217 = vpop.f32.mrb[0].mxu0
  %v1218 = vadd.f32 0.0, %v1217
  %v1219 = vpop.f32.mrb[0].mxu0
  %v1220 = vpop.f32.mrb[0].mxu0
  %v1221 = vpop.f32.mrb[0].mxu0
  %1222 = vdwg.mxu0
  %v1225 = vunpack.c.l.s4 1966171168
  %v1226 = vunpack.c.0.s8 %v1225
  %v1227 = vlaneseq
  %v1228 = vshrl.u32 %v1227, 7
  %v1229 = vsub.s32 %v1226, %v1228
  %v1230 = vrot.slane %v1218, %v1229
  %v1231 = vcombine.high %v1230, %v1230
  %v1233 = vunpack.c.l.s4 1966171168
  %v1234 = vunpack.c.0.s8 %v1233
  %v1235 = vlaneseq
  %v1236 = vshrl.u32 %v1235, 7
  %v1237 = vsub.s32 %v1234, %v1236
  %v1238 = vrot.slane %v1230, %v1237
  %v1240 = vunpack.c.l.s4 1966171168
  %v1241 = vunpack.c.0.s8 %v1240
  %v1242 = vlaneseq
  %v1243 = vshrl.u32 %v1242, 7
  %v1244 = vsub.s32 %v1241, %v1243
  %v1245 = vrot.slane %v1231, %v1244
  %v1246 = vlaneseq
  %v1247 = vshrl.u32 %v1246, 7
  %v1248 = vsub.s32 0, %v1247
  %v1249 = vrot.slane %v1238, %v1248
  %v1250 = vlaneseq
  %v1251 = vshrl.u32 %v1250, 7
  %v1252 = vsub.s32 0, %v1251
  %v1253 = vrot.slane %v1245, %v1252
  %1256 = vrot.lane.b32.xlu0 %v1249, 96
  %v1257 = vpop.permute.xlu0 %1256
  %1258 = vrot.lane.b32.xlu0 %v1253, 96
  %v1259 = vpop.permute.xlu0 %1258
  %v1262 = vsel %vm443, %v1249, %v1257
  %v1263 = vsel %vm443, %v1253, %v1259
  %v1264 = vadd.f32 %v440, %v1262
  %v1265 = vadd.f32 %v441, %v1263
  %v1266 = vtanh.pop %v1264
  %v1267 = vtanh.pop %v1265
  %v1268 = vmul.f32 %v1266, %v471
  %v1269 = vmul.f32 %v1267, %v471
  %v1270 = vsel %vm139, %v1268, 0.0
  %1271 = vadd.xlane.f32.xlu0 %v1270
  %v1272 = vpop.xlane.xlu0 %1271
  %v1273 = vsel %vm139, %v1269, 0.0
  %1274 = vadd.xlane.f32.xlu0 %v1273
  %v1275 = vpop.xlane.xlu0 %1274
  %v1276 = vrot.slane %v1272, 4
  %v1277 = vmax.f32 %v1272, %v1276
  %v1278 = vrot.slane %v1277, 2
  %v1279 = vmax.f32 %v1277, %v1278
  %v1280 = vrot.slane %v1279, 1
  %v1281 = vmax.f32 %v1279, %v1280
  %v1282 = vrot.slane %v1275, 4
  %v1283 = vmax.f32 %v1275, %v1282
  %v1284 = vrot.slane %v1283, 2
  %v1285 = vmax.f32 %v1283, %v1284
  %v1286 = vrot.slane %v1285, 1
  %v1287 = vmax.f32 %v1285, %v1286
  %v1288 = vsub.f32 %v1272, %v1281
  %v1289 = vsub.f32 %v1275, %v1287
  %v1290 = vmul.f32 %v1288, 1.442695
  %v1291 = vpow.pop %v1290
  %v1292 = vmul.f32 %v1289, 1.442695
  %v1293 = vpow.pop %v1292
  %v1294 = vrot.slane %v1291, 4
  %v1295 = vadd.f32 %v1291, %v1294
  %v1296 = vrot.slane %v1295, 2
  %v1297 = vadd.f32 %v1295, %v1296
  %v1298 = vrot.slane %v1297, 1
  %v1299 = vadd.f32 %v1297, %v1298
  %v1300 = vrot.slane %v1293, 4
  %v1301 = vadd.f32 %v1293, %v1300
  %v1302 = vrot.slane %v1301, 2
  %v1303 = vadd.f32 %v1301, %v1302
  %v1304 = vrot.slane %v1303, 1
  %v1305 = vadd.f32 %v1303, %v1304
  %v1306 = vrcp.pop %v1299
  %v1307 = vrcp.pop %v1305
  %v1308 = vmul.f32 %v1291, %v1306
  %v1309 = vmul.f32 %v1293, %v1307
  %v1310 = vadd.f32 %v1053, %v1308
  %v1311 = vadd.f32 %v1054, %v1309
  %v1312 = vmul.f32 %v1308, %v517
  %v1313 = vmul.f32 %v1309, %v518
  %v1314 = vsel %vm521, %v1312, 0.0
  %v1315 = vrot.slane %v1314, 4
  %v1316 = vadd.f32 %v1314, %v1315
  %v1317 = vrot.slane %v1316, 2
  %v1318 = vadd.f32 %v1316, %v1317
  %v1319 = vrot.slane %v1318, 1
  %v1320 = vadd.f32 %v1318, %v1319
  %v1321 = vsel %vm521, %v1313, 0.0
  %v1322 = vrot.slane %v1321, 4
  %v1323 = vadd.f32 %v1321, %v1322
  %v1324 = vrot.slane %v1323, 2
  %v1325 = vadd.f32 %v1323, %v1324
  %v1326 = vrot.slane %v1325, 1
  %v1327 = vadd.f32 %v1325, %v1326
  %v1328 = vld [vmem:[%s1] sm:$0x3]
  %v1330 = vrot.slane %v1328, 1
  %1331 = vrot.lane.b32.xlu0 %v1328, 125
  %v1332 = vpop.permute.xlu0 %1331
  %1333 = vrot.lane.b32.xlu0 %v1330, 125
  %v1334 = vpop.permute.xlu0 %1333
  %v1337 = vadd.f32 %v1320, %v1332
  %v1338 = vadd.f32 %v1327, %v1334
  %1340 = vset.pattern.permute.xlu0 0
  %1341 = vperm.xlu0 %1340, %v1337
  %v1342 = vpop.permute.xlu0 %1341
  %1345 = vset.pattern.permute.xlu0 0
  %1346 = vperm.xlu0 %1345, %v1338
  %v1347 = vpop.permute.xlu0 %1346
  %v1349 = vmul.f32 %v1342, %v558
  %v1350 = vmul.f32 %v1342, %v562
  %v1351 = vmul.f32 %v1347, %v558
  %v1352 = vmul.f32 %v1347, %v562
  %v1357 = vrot.slane %v1351, 7
  %v1358 = vsel %vm574, %v1357, %v1349
  %v1359 = vrot.slane %v1352, 7
  %v1360 = vsel %vm574, %v1359, %v1350
  %v1363 = vadd.f32 %v1177, %v1358
  %v1364 = vadd.f32 %v1179, %v1360
  %v1365 = vadd.f32 %v1363, %v587
  %v1366 = vadd.f32 %v1364, %v591
  %v1367 = vxor.u32 %v1365, 2147483648
  %v1368 = vxor.u32 %v1366, 2147483648
  %v1369 = vmul.f32 %v1367, 1.442695
  %v1370 = vpow.pop %v1369
  %v1371 = vmul.f32 %v1368, 1.442695
  %v1372 = vpow.pop %v1371
  %v1373 = vadd.f32 %v1370, 1.0
  %v1374 = vadd.f32 %v1372, 1.0
  %v1375 = vrcp.pop %v1373
  %v1376 = vmul.f32 1.0, %v1375
  %v1377 = vrcp.pop %v1374
  %v1378 = vmul.f32 1.0, %v1377
  %v1379 = vtanh.pop %v1366
  %v1380 = vmul.f32 %v1376, %v1133
  %1382 = vrot.lane.b32.xlu0 %v1379, 64
  %v1383 = vpop.permute.xlu0 %1382
  %v1385 = vmul.f32 %v1376, %v1383
  %1387 = vrot.lane.b32.xlu0 %v1385, 64
  %v1388 = vpop.permute.xlu0 %1387
  %v1390 = vadd.f32 %v1380, %v1388
  %v1391 = vtanh.pop %v1390
  %1393 = vrot.lane.b32.xlu0 %v1391, 64
  %v1394 = vpop.permute.xlu0 %1393
  %v1396 = vmul.f32 %v1378, %v1394
  %v1397 = vsel %vm85, %v1396, %v1390
  %v1398 = vpack.c.bf16 %v1397, %v1397
  %1399 = vmatprep.subr.bf16.mxu0 %v289
  %1400 = vmatpush1.bf16.msra.mxu0 %v288
  %1401 = vmatprep.subr.bf16.mxu0 %v292
  %1402 = vmatpush1.bf16.msra.mxu0 %v291
  %1403 = vmatprep.subr.bf16.mxu0 %v295
  %1404 = vmatpush1.bf16.msra.mxu0 %v294
  %1405 = vmatprep.subr.bf16.mxu0 %v298
  %1406 = vmatpush1.bf16.msra.mxu0 %v297
  %1407 = vmatprep.subr.bf16.mxu0 %v301
  %1408 = vmatpush1.bf16.msra.mxu0 %v300
  %1409 = vmatprep.subr.bf16.mxu0 %v304
  %1410 = vmatpush1.bf16.msra.mxu0 %v303
  %1411 = vmatprep.subr.bf16.mxu0 %v307
  %1412 = vmatpush1.bf16.msra.mxu0 %v306
  %1413 = vmatprep.subr.bf16.mxu0 %v310
  %1414 = vmatpush1.bf16.msra.mxu0 %v309
  %1415 = vmatprep.subr.bf16.mxu0 0
  %1416 = vmatpush1.bf16.msra.mxu0 0
  %1417 = vmatprep.subr.bf16.mxu0 0
  %1418 = vmatpush1.bf16.msra.mxu0 0
  %1419 = vmatprep.subr.bf16.mxu0 0
  %1420 = vmatpush1.bf16.msra.mxu0 0
  %1421 = vmatprep.subr.bf16.mxu0 0
  %1422 = vmatpush1.bf16.msra.mxu0 0
  %1423 = vmatprep.subr.bf16.mxu0 0
  %1424 = vmatpush1.bf16.msra.mxu0 0
  %1425 = vmatprep.subr.bf16.mxu0 0
  %1426 = vmatpush1.bf16.msra.mxu0 0
  %1427 = vmatprep.subr.bf16.mxu0 0
  %1428 = vmatpush1.bf16.msra.mxu0 0
  %1429 = vmatprep.subr.bf16.mxu0 0
  %1430 = vmatpush1.bf16.msra.mxu0 0
  %1431 = vmatprep.mubr.bf16.mxu0 0
  %1432 = vmatmul.mubr.bf16.gmra.mrb[0].mxu0 %v1398
  %v1433 = vpop.f32.mrb[0].mxu0
  %v1434 = vadd.f32 0.0, %v1433
  %v1435 = vpop.f32.mrb[0].mxu0
  %v1436 = vadd.f32 0.0, %v1435
  %v1437 = vpop.f32.mrb[0].mxu0
  %v1438 = vpop.f32.mrb[0].mxu0
  %1439 = vdwg.mxu0
  %1440 = vmatprep.subr.bf16.mxu0 0
  %1441 = vmatpush1.bf16.msra.mxu0 %v290
  %1442 = vmatprep.subr.bf16.mxu0 0
  %1443 = vmatpush1.bf16.msra.mxu0 %v293
  %1444 = vmatprep.subr.bf16.mxu0 0
  %1445 = vmatpush1.bf16.msra.mxu0 %v296
  %1446 = vmatprep.subr.bf16.mxu0 0
  %1447 = vmatpush1.bf16.msra.mxu0 %v299
  %1448 = vmatprep.subr.bf16.mxu0 0
  %1449 = vmatpush1.bf16.msra.mxu0 %v302
  %1450 = vmatprep.subr.bf16.mxu0 0
  %1451 = vmatpush1.bf16.msra.mxu0 %v305
  %1452 = vmatprep.subr.bf16.mxu0 0
  %1453 = vmatpush1.bf16.msra.mxu0 %v308
  %1454 = vmatprep.subr.bf16.mxu0 0
  %1455 = vmatpush1.bf16.msra.mxu0 %v311
  %1456 = vmatprep.subr.bf16.mxu0 0
  %1457 = vmatpush1.bf16.msra.mxu0 0
  %1458 = vmatprep.subr.bf16.mxu0 0
  %1459 = vmatpush1.bf16.msra.mxu0 0
  %1460 = vmatprep.subr.bf16.mxu0 0
  %1461 = vmatpush1.bf16.msra.mxu0 0
  %1462 = vmatprep.subr.bf16.mxu0 0
  %1463 = vmatpush1.bf16.msra.mxu0 0
  %1464 = vmatprep.subr.bf16.mxu0 0
  %1465 = vmatpush1.bf16.msra.mxu0 0
  %1466 = vmatprep.subr.bf16.mxu0 0
  %1467 = vmatpush1.bf16.msra.mxu0 0
  %1468 = vmatprep.subr.bf16.mxu0 0
  %1469 = vmatpush1.bf16.msra.mxu0 0
  %1470 = vmatprep.subr.bf16.mxu0 0
  %1471 = vmatpush1.bf16.msra.mxu0 0
  %1472 = vmatprep.mubr.bf16.mxu0 0
  %1473 = vmatmul.mubr.bf16.gmra.mrb[0].mxu0 %v1398
  %v1474 = vpop.f32.mrb[0].mxu0
  %v1475 = vadd.f32 0.0, %v1474
  %v1476 = vpop.f32.mrb[0].mxu0
  %v1477 = vpop.f32.mrb[0].mxu0
  %v1478 = vpop.f32.mrb[0].mxu0
  %1479 = vdwg.mxu0
  %v1482 = vunpack.c.l.s4 1966171168
  %v1483 = vunpack.c.0.s8 %v1482
  %v1484 = vlaneseq
  %v1485 = vshrl.u32 %v1484, 7
  %v1486 = vsub.s32 %v1483, %v1485
  %v1487 = vrot.slane %v1475, %v1486
  %v1488 = vcombine.high %v1487, %v1487
  %v1490 = vunpack.c.l.s4 1966171168
  %v1491 = vunpack.c.0.s8 %v1490
  %v1492 = vlaneseq
  %v1493 = vshrl.u32 %v1492, 7
  %v1494 = vsub.s32 %v1491, %v1493
  %v1495 = vrot.slane %v1487, %v1494
  %v1497 = vunpack.c.l.s4 1966171168
  %v1498 = vunpack.c.0.s8 %v1497
  %v1499 = vlaneseq
  %v1500 = vshrl.u32 %v1499, 7
  %v1501 = vsub.s32 %v1498, %v1500
  %v1502 = vrot.slane %v1488, %v1501
  %v1503 = vlaneseq
  %v1504 = vshrl.u32 %v1503, 7
  %v1505 = vsub.s32 0, %v1504
  %v1506 = vrot.slane %v1495, %v1505
  %v1507 = vlaneseq
  %v1508 = vshrl.u32 %v1507, 7
  %v1509 = vsub.s32 0, %v1508
  %v1510 = vrot.slane %v1502, %v1509
  %1513 = vrot.lane.b32.xlu0 %v1506, 96
  %v1514 = vpop.permute.xlu0 %1513
  %1515 = vrot.lane.b32.xlu0 %v1510, 96
  %v1516 = vpop.permute.xlu0 %1515
  %v1519 = vsel %vm443, %v1506, %v1514
  %v1520 = vsel %vm443, %v1510, %v1516
  %v1521 = vadd.f32 %v440, %v1519
  %v1522 = vadd.f32 %v441, %v1520
  %v1523 = vtanh.pop %v1521
  %v1524 = vtanh.pop %v1522
  %v1525 = vmul.f32 %v1523, %v471
  %v1526 = vmul.f32 %v1524, %v471
  %v1527 = vsel %vm139, %v1525, 0.0
  %1528 = vadd.xlane.f32.xlu0 %v1527
  %v1529 = vpop.xlane.xlu0 %1528
  %v1530 = vsel %vm139, %v1526, 0.0
  %1531 = vadd.xlane.f32.xlu0 %v1530
  %v1532 = vpop.xlane.xlu0 %1531
  %v1533 = vrot.slane %v1529, 4
  %v1534 = vmax.f32 %v1529, %v1533
  %v1535 = vrot.slane %v1534, 2
  %v1536 = vmax.f32 %v1534, %v1535
  %v1537 = vrot.slane %v1536, 1
  %v1538 = vmax.f32 %v1536, %v1537
  %v1539 = vrot.slane %v1532, 4
  %v1540 = vmax.f32 %v1532, %v1539
  %v1541 = vrot.slane %v1540, 2
  %v1542 = vmax.f32 %v1540, %v1541
  %v1543 = vrot.slane %v1542, 1
  %v1544 = vmax.f32 %v1542, %v1543
  %v1545 = vsub.f32 %v1529, %v1538
  %v1546 = vsub.f32 %v1532, %v1544
  %v1547 = vmul.f32 %v1545, 1.442695
  %v1548 = vpow.pop %v1547
  %v1549 = vmul.f32 %v1546, 1.442695
  %v1550 = vpow.pop %v1549
  %v1551 = vrot.slane %v1548, 4
  %v1552 = vadd.f32 %v1548, %v1551
  %v1553 = vrot.slane %v1552, 2
  %v1554 = vadd.f32 %v1552, %v1553
  %v1555 = vrot.slane %v1554, 1
  %v1556 = vadd.f32 %v1554, %v1555
  %v1557 = vrot.slane %v1550, 4
  %v1558 = vadd.f32 %v1550, %v1557
  %v1559 = vrot.slane %v1558, 2
  %v1560 = vadd.f32 %v1558, %v1559
  %v1561 = vrot.slane %v1560, 1
  %v1562 = vadd.f32 %v1560, %v1561
  %v1563 = vrcp.pop %v1556
  %v1564 = vrcp.pop %v1562
  %v1565 = vmul.f32 %v1548, %v1563
  %v1566 = vmul.f32 %v1550, %v1564
  %v1567 = vadd.f32 %v1310, %v1565
  %v1568 = vadd.f32 %v1311, %v1566
  %v1569 = vmul.f32 %v1565, %v517
  %v1570 = vmul.f32 %v1566, %v518
  %v1571 = vsel %vm521, %v1569, 0.0
  %v1572 = vrot.slane %v1571, 4
  %v1573 = vadd.f32 %v1571, %v1572
  %v1574 = vrot.slane %v1573, 2
  %v1575 = vadd.f32 %v1573, %v1574
  %v1576 = vrot.slane %v1575, 1
  %v1577 = vadd.f32 %v1575, %v1576
  %v1578 = vsel %vm521, %v1570, 0.0
  %v1579 = vrot.slane %v1578, 4
  %v1580 = vadd.f32 %v1578, %v1579
  %v1581 = vrot.slane %v1580, 2
  %v1582 = vadd.f32 %v1580, %v1581
  %v1583 = vrot.slane %v1582, 1
  %v1584 = vadd.f32 %v1582, %v1583
  %v1585 = vld [vmem:[%s1] sm:$0x3]
  %v1587 = vrot.slane %v1585, 1
  %1588 = vrot.lane.b32.xlu0 %v1585, 124
  %v1589 = vpop.permute.xlu0 %1588
  %1590 = vrot.lane.b32.xlu0 %v1587, 124
  %v1591 = vpop.permute.xlu0 %1590
  %v1594 = vadd.f32 %v1577, %v1589
  %v1595 = vadd.f32 %v1584, %v1591
  %1597 = vset.pattern.permute.xlu0 0
  %1598 = vperm.xlu0 %1597, %v1594
  %v1599 = vpop.permute.xlu0 %1598
  %1602 = vset.pattern.permute.xlu0 0
  %1603 = vperm.xlu0 %1602, %v1595
  %v1604 = vpop.permute.xlu0 %1603
  %v1606 = vmul.f32 %v1599, %v558
  %v1607 = vmul.f32 %v1599, %v562
  %v1608 = vmul.f32 %v1604, %v558
  %v1609 = vmul.f32 %v1604, %v562
  %v1614 = vrot.slane %v1608, 7
  %v1615 = vsel %vm574, %v1614, %v1606
  %v1616 = vrot.slane %v1609, 7
  %v1617 = vsel %vm574, %v1616, %v1607
  %v1620 = vadd.f32 %v1434, %v1615
  %v1621 = vadd.f32 %v1436, %v1617
  %v1622 = vadd.f32 %v1620, %v587
  %v1623 = vadd.f32 %v1621, %v591
  %v1624 = vxor.u32 %v1622, 2147483648
  %v1625 = vxor.u32 %v1623, 2147483648
  %v1626 = vmul.f32 %v1624, 1.442695
  %v1627 = vpow.pop %v1626
  %v1628 = vmul.f32 %v1625, 1.442695
  %v1629 = vpow.pop %v1628
  %v1630 = vadd.f32 %v1627, 1.0
  %v1631 = vadd.f32 %v1629, 1.0
  %v1632 = vrcp.pop %v1630
  %v1633 = vmul.f32 1.0, %v1632
  %v1634 = vrcp.pop %v1631
  %v1635 = vmul.f32 1.0, %v1634
  %v1636 = vtanh.pop %v1623
  %v1637 = vmul.f32 %v1633, %v1390
  %1639 = vrot.lane.b32.xlu0 %v1636, 64
  %v1640 = vpop.permute.xlu0 %1639
  %v1642 = vmul.f32 %v1633, %v1640
  %1644 = vrot.lane.b32.xlu0 %v1642, 64
  %v1645 = vpop.permute.xlu0 %1644
  %v1647 = vadd.f32 %v1637, %v1645
  %v1648 = vtanh.pop %v1647
  %1650 = vrot.lane.b32.xlu0 %v1648, 64
  %v1651 = vpop.permute.xlu0 %1650
  %v1653 = vmul.f32 %v1635, %v1651
  %v1654 = vsel %vm85, %v1653, %v1647
  %v1655 = vpack.c.bf16 %v1654, %v1654
  %1656 = vmatprep.subr.bf16.mxu0 %v289
  %1657 = vmatpush1.bf16.msra.mxu0 %v288
  %1658 = vmatprep.subr.bf16.mxu0 %v292
  %1659 = vmatpush1.bf16.msra.mxu0 %v291
  %1660 = vmatprep.subr.bf16.mxu0 %v295
  %1661 = vmatpush1.bf16.msra.mxu0 %v294
  %1662 = vmatprep.subr.bf16.mxu0 %v298
  %1663 = vmatpush1.bf16.msra.mxu0 %v297
  %1664 = vmatprep.subr.bf16.mxu0 %v301
  %1665 = vmatpush1.bf16.msra.mxu0 %v300
  %1666 = vmatprep.subr.bf16.mxu0 %v304
  %1667 = vmatpush1.bf16.msra.mxu0 %v303
  %1668 = vmatprep.subr.bf16.mxu0 %v307
  %1669 = vmatpush1.bf16.msra.mxu0 %v306
  %1670 = vmatprep.subr.bf16.mxu0 %v310
  %1671 = vmatpush1.bf16.msra.mxu0 %v309
  %1672 = vmatprep.subr.bf16.mxu0 0
  %1673 = vmatpush1.bf16.msra.mxu0 0
  %1674 = vmatprep.subr.bf16.mxu0 0
  %1675 = vmatpush1.bf16.msra.mxu0 0
  %1676 = vmatprep.subr.bf16.mxu0 0
  %1677 = vmatpush1.bf16.msra.mxu0 0
  %1678 = vmatprep.subr.bf16.mxu0 0
  %1679 = vmatpush1.bf16.msra.mxu0 0
  %1680 = vmatprep.subr.bf16.mxu0 0
  %1681 = vmatpush1.bf16.msra.mxu0 0
  %1682 = vmatprep.subr.bf16.mxu0 0
  %1683 = vmatpush1.bf16.msra.mxu0 0
  %1684 = vmatprep.subr.bf16.mxu0 0
  %1685 = vmatpush1.bf16.msra.mxu0 0
  %1686 = vmatprep.subr.bf16.mxu0 0
  %1687 = vmatpush1.bf16.msra.mxu0 0
  %1688 = vmatprep.mubr.bf16.mxu0 0
  %1689 = vmatmul.mubr.bf16.gmra.mrb[0].mxu0 %v1655
  %v1690 = vpop.f32.mrb[0].mxu0
  %v1691 = vadd.f32 0.0, %v1690
  %v1692 = vpop.f32.mrb[0].mxu0
  %v1693 = vadd.f32 0.0, %v1692
  %v1694 = vpop.f32.mrb[0].mxu0
  %v1695 = vpop.f32.mrb[0].mxu0
  %1696 = vdwg.mxu0
  %1697 = vmatprep.subr.bf16.mxu0 0
  %1698 = vmatpush1.bf16.msra.mxu0 %v290
  %1699 = vmatprep.subr.bf16.mxu0 0
  %1700 = vmatpush1.bf16.msra.mxu0 %v293
  %1701 = vmatprep.subr.bf16.mxu0 0
  %1702 = vmatpush1.bf16.msra.mxu0 %v296
  %1703 = vmatprep.subr.bf16.mxu0 0
  %1704 = vmatpush1.bf16.msra.mxu0 %v299
  %1705 = vmatprep.subr.bf16.mxu0 0
  %1706 = vmatpush1.bf16.msra.mxu0 %v302
  %1707 = vmatprep.subr.bf16.mxu0 0
  %1708 = vmatpush1.bf16.msra.mxu0 %v305
  %1709 = vmatprep.subr.bf16.mxu0 0
  %1710 = vmatpush1.bf16.msra.mxu0 %v308
  %1711 = vmatprep.subr.bf16.mxu0 0
  %1712 = vmatpush1.bf16.msra.mxu0 %v311
  %1713 = vmatprep.subr.bf16.mxu0 0
  %1714 = vmatpush1.bf16.msra.mxu0 0
  %1715 = vmatprep.subr.bf16.mxu0 0
  %1716 = vmatpush1.bf16.msra.mxu0 0
  %1717 = vmatprep.subr.bf16.mxu0 0
  %1718 = vmatpush1.bf16.msra.mxu0 0
  %1719 = vmatprep.subr.bf16.mxu0 0
  %1720 = vmatpush1.bf16.msra.mxu0 0
  %1721 = vmatprep.subr.bf16.mxu0 0
  %1722 = vmatpush1.bf16.msra.mxu0 0
  %1723 = vmatprep.subr.bf16.mxu0 0
  %1724 = vmatpush1.bf16.msra.mxu0 0
  %1725 = vmatprep.subr.bf16.mxu0 0
  %1726 = vmatpush1.bf16.msra.mxu0 0
  %1727 = vmatprep.subr.bf16.mxu0 0
  %1728 = vmatpush1.bf16.msra.mxu0 0
  %1729 = vmatprep.mubr.bf16.mxu0 0
  %1730 = vmatmul.mubr.bf16.gmra.mrb[0].mxu0 %v1655
  %v1731 = vpop.f32.mrb[0].mxu0
  %v1732 = vadd.f32 0.0, %v1731
  %v1733 = vpop.f32.mrb[0].mxu0
  %v1734 = vpop.f32.mrb[0].mxu0
  %v1735 = vpop.f32.mrb[0].mxu0
  %1736 = vdwg.mxu0
  %v1739 = vunpack.c.l.s4 1966171168
  %v1740 = vunpack.c.0.s8 %v1739
  %v1741 = vlaneseq
  %v1742 = vshrl.u32 %v1741, 7
  %v1743 = vsub.s32 %v1740, %v1742
  %v1744 = vrot.slane %v1732, %v1743
  %v1745 = vcombine.high %v1744, %v1744
  %v1747 = vunpack.c.l.s4 1966171168
  %v1748 = vunpack.c.0.s8 %v1747
  %v1749 = vlaneseq
  %v1750 = vshrl.u32 %v1749, 7
  %v1751 = vsub.s32 %v1748, %v1750
  %v1752 = vrot.slane %v1744, %v1751
  %v1754 = vunpack.c.l.s4 1966171168
  %v1755 = vunpack.c.0.s8 %v1754
  %v1756 = vlaneseq
  %v1757 = vshrl.u32 %v1756, 7
  %v1758 = vsub.s32 %v1755, %v1757
  %v1759 = vrot.slane %v1745, %v1758
  %v1760 = vlaneseq
  %v1761 = vshrl.u32 %v1760, 7
  %v1762 = vsub.s32 0, %v1761
  %v1763 = vrot.slane %v1752, %v1762
  %v1764 = vlaneseq
  %v1765 = vshrl.u32 %v1764, 7
  %v1766 = vsub.s32 0, %v1765
  %v1767 = vrot.slane %v1759, %v1766
  %1770 = vrot.lane.b32.xlu0 %v1763, 96
  %v1771 = vpop.permute.xlu0 %1770
  %1772 = vrot.lane.b32.xlu0 %v1767, 96
  %v1773 = vpop.permute.xlu0 %1772
  %v1776 = vsel %vm443, %v1763, %v1771
  %v1777 = vsel %vm443, %v1767, %v1773
  %v1778 = vadd.f32 %v440, %v1776
  %v1779 = vadd.f32 %v441, %v1777
  %v1780 = vtanh.pop %v1778
  %v1781 = vtanh.pop %v1779
  %v1782 = vmul.f32 %v1780, %v471
  %v1783 = vmul.f32 %v1781, %v471
  %v1784 = vsel %vm139, %v1782, 0.0
  %1785 = vadd.xlane.f32.xlu0 %v1784
  %v1786 = vpop.xlane.xlu0 %1785
  %v1787 = vsel %vm139, %v1783, 0.0
  %1788 = vadd.xlane.f32.xlu0 %v1787
  %v1789 = vpop.xlane.xlu0 %1788
  %v1790 = vrot.slane %v1786, 4
  %v1791 = vmax.f32 %v1786, %v1790
  %v1792 = vrot.slane %v1791, 2
  %v1793 = vmax.f32 %v1791, %v1792
  %v1794 = vrot.slane %v1793, 1
  %v1795 = vmax.f32 %v1793, %v1794
  %v1796 = vrot.slane %v1789, 4
  %v1797 = vmax.f32 %v1789, %v1796
  %v1798 = vrot.slane %v1797, 2
  %v1799 = vmax.f32 %v1797, %v1798
  %v1800 = vrot.slane %v1799, 1
  %v1801 = vmax.f32 %v1799, %v1800
  %v1802 = vsub.f32 %v1786, %v1795
  %v1803 = vsub.f32 %v1789, %v1801
  %v1804 = vmul.f32 %v1802, 1.442695
  %v1805 = vpow.pop %v1804
  %v1806 = vmul.f32 %v1803, 1.442695
  %v1807 = vpow.pop %v1806
  %v1808 = vrot.slane %v1805, 4
  %v1809 = vadd.f32 %v1805, %v1808
  %v1810 = vrot.slane %v1809, 2
  %v1811 = vadd.f32 %v1809, %v1810
  %v1812 = vrot.slane %v1811, 1
  %v1813 = vadd.f32 %v1811, %v1812
  %v1814 = vrot.slane %v1807, 4
  %v1815 = vadd.f32 %v1807, %v1814
  %v1816 = vrot.slane %v1815, 2
  %v1817 = vadd.f32 %v1815, %v1816
  %v1818 = vrot.slane %v1817, 1
  %v1819 = vadd.f32 %v1817, %v1818
  %v1820 = vrcp.pop %v1813
  %v1821 = vrcp.pop %v1819
  %v1822 = vmul.f32 %v1805, %v1820
  %v1823 = vmul.f32 %v1807, %v1821
  %v1824 = vadd.f32 %v1567, %v1822
  %v1825 = vadd.f32 %v1568, %v1823
  %v1826 = vmul.f32 %v1822, %v517
  %v1827 = vmul.f32 %v1823, %v518
  %v1828 = vsel %vm521, %v1826, 0.0
  %v1829 = vrot.slane %v1828, 4
  %v1830 = vadd.f32 %v1828, %v1829
  %v1831 = vrot.slane %v1830, 2
  %v1832 = vadd.f32 %v1830, %v1831
  %v1833 = vrot.slane %v1832, 1
  %v1834 = vadd.f32 %v1832, %v1833
  %v1835 = vsel %vm521, %v1827, 0.0
  %v1836 = vrot.slane %v1835, 4
  %v1837 = vadd.f32 %v1835, %v1836
  %v1838 = vrot.slane %v1837, 2
  %v1839 = vadd.f32 %v1837, %v1838
  %v1840 = vrot.slane %v1839, 1
  %v1841 = vadd.f32 %v1839, %v1840
  %v1842 = vld [vmem:[%s1] sm:$0x3]
  %v1844 = vrot.slane %v1842, 1
  %1845 = vrot.lane.b32.xlu0 %v1842, 123
  %v1846 = vpop.permute.xlu0 %1845
  %1847 = vrot.lane.b32.xlu0 %v1844, 123
  %v1848 = vpop.permute.xlu0 %1847
  %v1851 = vadd.f32 %v1834, %v1846
  %v1852 = vadd.f32 %v1841, %v1848
  %1854 = vset.pattern.permute.xlu0 0
  %1855 = vperm.xlu0 %1854, %v1851
  %v1856 = vpop.permute.xlu0 %1855
  %1859 = vset.pattern.permute.xlu0 0
  %1860 = vperm.xlu0 %1859, %v1852
  %v1861 = vpop.permute.xlu0 %1860
  %v1863 = vmul.f32 %v1856, %v558
  %v1864 = vmul.f32 %v1856, %v562
  %v1865 = vmul.f32 %v1861, %v558
  %v1866 = vmul.f32 %v1861, %v562
  %v1871 = vrot.slane %v1865, 7
  %v1872 = vsel %vm574, %v1871, %v1863
  %v1873 = vrot.slane %v1866, 7
  %v1874 = vsel %vm574, %v1873, %v1864
  %v1877 = vadd.f32 %v1691, %v1872
  %v1878 = vadd.f32 %v1693, %v1874
  %v1879 = vadd.f32 %v1877, %v587
  %v1880 = vadd.f32 %v1878, %v591
  %v1881 = vxor.u32 %v1879, 2147483648
  %v1882 = vxor.u32 %v1880, 2147483648
  %v1883 = vmul.f32 %v1881, 1.442695
  %v1884 = vpow.pop %v1883
  %v1885 = vmul.f32 %v1882, 1.442695
  %v1886 = vpow.pop %v1885
  %v1887 = vadd.f32 %v1884, 1.0
  %v1888 = vadd.f32 %v1886, 1.0
  %v1889 = vrcp.pop %v1887
  %v1890 = vmul.f32 1.0, %v1889
  %v1891 = vrcp.pop %v1888
  %v1892 = vmul.f32 1.0, %v1891
  %v1893 = vtanh.pop %v1880
  %v1894 = vmul.f32 %v1890, %v1647
  %1896 = vrot.lane.b32.xlu0 %v1893, 64
  %v1897 = vpop.permute.xlu0 %1896
  %v1899 = vmul.f32 %v1890, %v1897
  %1901 = vrot.lane.b32.xlu0 %v1899, 64
  %v1902 = vpop.permute.xlu0 %1901
  %v1904 = vadd.f32 %v1894, %v1902
  %v1905 = vtanh.pop %v1904
  %1907 = vrot.lane.b32.xlu0 %v1905, 64
  %v1908 = vpop.permute.xlu0 %1907
  %v1910 = vmul.f32 %v1892, %v1908
  %v1911 = vsel %vm85, %v1910, %v1904
  %v1912 = vpack.c.bf16 %v1911, %v1911
  %1913 = vmatprep.subr.bf16.mxu0 %v289
  %1914 = vmatpush1.bf16.msra.mxu0 %v288
  %1915 = vmatprep.subr.bf16.mxu0 %v292
  %1916 = vmatpush1.bf16.msra.mxu0 %v291
  %1917 = vmatprep.subr.bf16.mxu0 %v295
  %1918 = vmatpush1.bf16.msra.mxu0 %v294
  %1919 = vmatprep.subr.bf16.mxu0 %v298
  %1920 = vmatpush1.bf16.msra.mxu0 %v297
  %1921 = vmatprep.subr.bf16.mxu0 %v301
  %1922 = vmatpush1.bf16.msra.mxu0 %v300
  %1923 = vmatprep.subr.bf16.mxu0 %v304
  %1924 = vmatpush1.bf16.msra.mxu0 %v303
  %1925 = vmatprep.subr.bf16.mxu0 %v307
  %1926 = vmatpush1.bf16.msra.mxu0 %v306
  %1927 = vmatprep.subr.bf16.mxu0 %v310
  %1928 = vmatpush1.bf16.msra.mxu0 %v309
  %1929 = vmatprep.subr.bf16.mxu0 0
  %1930 = vmatpush1.bf16.msra.mxu0 0
  %1931 = vmatprep.subr.bf16.mxu0 0
  %1932 = vmatpush1.bf16.msra.mxu0 0
  %1933 = vmatprep.subr.bf16.mxu0 0
  %1934 = vmatpush1.bf16.msra.mxu0 0
  %1935 = vmatprep.subr.bf16.mxu0 0
  %1936 = vmatpush1.bf16.msra.mxu0 0
  %1937 = vmatprep.subr.bf16.mxu0 0
  %1938 = vmatpush1.bf16.msra.mxu0 0
  %1939 = vmatprep.subr.bf16.mxu0 0
  %1940 = vmatpush1.bf16.msra.mxu0 0
  %1941 = vmatprep.subr.bf16.mxu0 0
  %1942 = vmatpush1.bf16.msra.mxu0 0
  %1943 = vmatprep.subr.bf16.mxu0 0
  %1944 = vmatpush1.bf16.msra.mxu0 0
  %1945 = vmatprep.mubr.bf16.mxu0 0
  %1946 = vmatmul.mubr.bf16.gmra.mrb[0].mxu0 %v1912
  %v1947 = vpop.f32.mrb[0].mxu0
  %v1948 = vadd.f32 0.0, %v1947
  %v1949 = vpop.f32.mrb[0].mxu0
  %v1950 = vadd.f32 0.0, %v1949
  %v1951 = vpop.f32.mrb[0].mxu0
  %v1952 = vpop.f32.mrb[0].mxu0
  %1953 = vdwg.mxu0
  %1954 = vmatprep.subr.bf16.mxu0 0
  %1955 = vmatpush1.bf16.msra.mxu0 %v290
  %1956 = vmatprep.subr.bf16.mxu0 0
  %1957 = vmatpush1.bf16.msra.mxu0 %v293
  %1958 = vmatprep.subr.bf16.mxu0 0
  %1959 = vmatpush1.bf16.msra.mxu0 %v296
  %1960 = vmatprep.subr.bf16.mxu0 0
  %1961 = vmatpush1.bf16.msra.mxu0 %v299
  %1962 = vmatprep.subr.bf16.mxu0 0
  %1963 = vmatpush1.bf16.msra.mxu0 %v302
  %1964 = vmatprep.subr.bf16.mxu0 0
  %1965 = vmatpush1.bf16.msra.mxu0 %v305
  %1966 = vmatprep.subr.bf16.mxu0 0
  %1967 = vmatpush1.bf16.msra.mxu0 %v308
  %1968 = vmatprep.subr.bf16.mxu0 0
  %1969 = vmatpush1.bf16.msra.mxu0 %v311
  %1970 = vmatprep.subr.bf16.mxu0 0
  %1971 = vmatpush1.bf16.msra.mxu0 0
  %1972 = vmatprep.subr.bf16.mxu0 0
  %1973 = vmatpush1.bf16.msra.mxu0 0
  %1974 = vmatprep.subr.bf16.mxu0 0
  %1975 = vmatpush1.bf16.msra.mxu0 0
  %1976 = vmatprep.subr.bf16.mxu0 0
  %1977 = vmatpush1.bf16.msra.mxu0 0
  %1978 = vmatprep.subr.bf16.mxu0 0
  %1979 = vmatpush1.bf16.msra.mxu0 0
  %1980 = vmatprep.subr.bf16.mxu0 0
  %1981 = vmatpush1.bf16.msra.mxu0 0
  %1982 = vmatprep.subr.bf16.mxu0 0
  %1983 = vmatpush1.bf16.msra.mxu0 0
  %1984 = vmatprep.subr.bf16.mxu0 0
  %1985 = vmatpush1.bf16.msra.mxu0 0
  %1986 = vmatprep.mubr.bf16.mxu0 0
  %1987 = vmatmul.mubr.bf16.gmra.mrb[0].mxu0 %v1912
  %v1988 = vpop.f32.mrb[0].mxu0
  %v1989 = vadd.f32 0.0, %v1988
  %v1990 = vpop.f32.mrb[0].mxu0
  %v1991 = vpop.f32.mrb[0].mxu0
  %v1992 = vpop.f32.mrb[0].mxu0
  %1993 = vdwg.mxu0
  %v1996 = vunpack.c.l.s4 1966171168
  %v1997 = vunpack.c.0.s8 %v1996
  %v1998 = vlaneseq
  %v1999 = vshrl.u32 %v1998, 7
  %v2000 = vsub.s32 %v1997, %v1999
  %v2001 = vrot.slane %v1989, %v2000
  %v2002 = vcombine.high %v2001, %v2001
  %v2004 = vunpack.c.l.s4 1966171168
  %v2005 = vunpack.c.0.s8 %v2004
  %v2006 = vlaneseq
  %v2007 = vshrl.u32 %v2006, 7
  %v2008 = vsub.s32 %v2005, %v2007
  %v2009 = vrot.slane %v2001, %v2008
  %v2011 = vunpack.c.l.s4 1966171168
  %v2012 = vunpack.c.0.s8 %v2011
  %v2013 = vlaneseq
  %v2014 = vshrl.u32 %v2013, 7
  %v2015 = vsub.s32 %v2012, %v2014
  %v2016 = vrot.slane %v2002, %v2015
  %v2017 = vlaneseq
  %v2018 = vshrl.u32 %v2017, 7
  %v2019 = vsub.s32 0, %v2018
  %v2020 = vrot.slane %v2009, %v2019
  %v2021 = vlaneseq
  %v2022 = vshrl.u32 %v2021, 7
  %v2023 = vsub.s32 0, %v2022
  %v2024 = vrot.slane %v2016, %v2023
  %2027 = vrot.lane.b32.xlu0 %v2020, 96
  %v2028 = vpop.permute.xlu0 %2027
  %2029 = vrot.lane.b32.xlu0 %v2024, 96
  %v2030 = vpop.permute.xlu0 %2029
  %v2033 = vsel %vm443, %v2020, %v2028
  %v2034 = vsel %vm443, %v2024, %v2030
  %v2035 = vadd.f32 %v440, %v2033
  %v2036 = vadd.f32 %v441, %v2034
  %v2037 = vtanh.pop %v2035
  %v2038 = vtanh.pop %v2036
  %v2039 = vmul.f32 %v2037, %v471
  %v2040 = vmul.f32 %v2038, %v471
  %v2041 = vsel %vm139, %v2039, 0.0
  %2042 = vadd.xlane.f32.xlu0 %v2041
  %v2043 = vpop.xlane.xlu0 %2042
  %v2044 = vsel %vm139, %v2040, 0.0
  %2045 = vadd.xlane.f32.xlu0 %v2044
  %v2046 = vpop.xlane.xlu0 %2045
  %v2047 = vrot.slane %v2043, 4
  %v2048 = vmax.f32 %v2043, %v2047
  %v2049 = vrot.slane %v2048, 2
  %v2050 = vmax.f32 %v2048, %v2049
  %v2051 = vrot.slane %v2050, 1
  %v2052 = vmax.f32 %v2050, %v2051
  %v2053 = vrot.slane %v2046, 4
  %v2054 = vmax.f32 %v2046, %v2053
  %v2055 = vrot.slane %v2054, 2
  %v2056 = vmax.f32 %v2054, %v2055
  %v2057 = vrot.slane %v2056, 1
  %v2058 = vmax.f32 %v2056, %v2057
  %v2059 = vsub.f32 %v2043, %v2052
  %v2060 = vsub.f32 %v2046, %v2058
  %v2061 = vmul.f32 %v2059, 1.442695
  %v2062 = vpow.pop %v2061
  %v2063 = vmul.f32 %v2060, 1.442695
  %v2064 = vpow.pop %v2063
  %v2065 = vrot.slane %v2062, 4
  %v2066 = vadd.f32 %v2062, %v2065
  %v2067 = vrot.slane %v2066, 2
  %v2068 = vadd.f32 %v2066, %v2067
  %v2069 = vrot.slane %v2068, 1
  %v2070 = vadd.f32 %v2068, %v2069
  %v2071 = vrot.slane %v2064, 4
  %v2072 = vadd.f32 %v2064, %v2071
  %v2073 = vrot.slane %v2072, 2
  %v2074 = vadd.f32 %v2072, %v2073
  %v2075 = vrot.slane %v2074, 1
  %v2076 = vadd.f32 %v2074, %v2075
  %v2077 = vrcp.pop %v2070
  %v2078 = vrcp.pop %v2076
  %v2079 = vmul.f32 %v2062, %v2077
  %v2080 = vmul.f32 %v2064, %v2078
  %v2081 = vadd.f32 %v1824, %v2079
  %v2082 = vadd.f32 %v1825, %v2080
  %v2083 = vmul.f32 %v2079, %v517
  %v2084 = vmul.f32 %v2080, %v518
  %v2085 = vsel %vm521, %v2083, 0.0
  %v2086 = vrot.slane %v2085, 4
  %v2087 = vadd.f32 %v2085, %v2086
  %v2088 = vrot.slane %v2087, 2
  %v2089 = vadd.f32 %v2087, %v2088
  %v2090 = vrot.slane %v2089, 1
  %v2091 = vadd.f32 %v2089, %v2090
  %v2092 = vsel %vm521, %v2084, 0.0
  %v2093 = vrot.slane %v2092, 4
  %v2094 = vadd.f32 %v2092, %v2093
  %v2095 = vrot.slane %v2094, 2
  %v2096 = vadd.f32 %v2094, %v2095
  %v2097 = vrot.slane %v2096, 1
  %v2098 = vadd.f32 %v2096, %v2097
  %v2099 = vld [vmem:[%s1] sm:$0x3]
  %v2101 = vrot.slane %v2099, 1
  %2102 = vrot.lane.b32.xlu0 %v2099, 122
  %v2103 = vpop.permute.xlu0 %2102
  %2104 = vrot.lane.b32.xlu0 %v2101, 122
  %v2105 = vpop.permute.xlu0 %2104
  %v2108 = vadd.f32 %v2091, %v2103
  %v2109 = vadd.f32 %v2098, %v2105
  %2111 = vset.pattern.permute.xlu0 0
  %2112 = vperm.xlu0 %2111, %v2108
  %v2113 = vpop.permute.xlu0 %2112
  %2116 = vset.pattern.permute.xlu0 0
  %2117 = vperm.xlu0 %2116, %v2109
  %v2118 = vpop.permute.xlu0 %2117
  %v2120 = vmul.f32 %v2113, %v558
  %v2121 = vmul.f32 %v2113, %v562
  %v2122 = vmul.f32 %v2118, %v558
  %v2123 = vmul.f32 %v2118, %v562
  %v2128 = vrot.slane %v2122, 7
  %v2129 = vsel %vm574, %v2128, %v2120
  %v2130 = vrot.slane %v2123, 7
  %v2131 = vsel %vm574, %v2130, %v2121
  %v2134 = vadd.f32 %v1948, %v2129
  %v2135 = vadd.f32 %v1950, %v2131
  %v2136 = vadd.f32 %v2134, %v587
  %v2137 = vadd.f32 %v2135, %v591
  %v2138 = vxor.u32 %v2136, 2147483648
  %v2139 = vxor.u32 %v2137, 2147483648
  %v2140 = vmul.f32 %v2138, 1.442695
  %v2141 = vpow.pop %v2140
  %v2142 = vmul.f32 %v2139, 1.442695
  %v2143 = vpow.pop %v2142
  %v2144 = vadd.f32 %v2141, 1.0
  %v2145 = vadd.f32 %v2143, 1.0
  %v2146 = vrcp.pop %v2144
  %v2147 = vmul.f32 1.0, %v2146
  %v2148 = vrcp.pop %v2145
  %v2149 = vmul.f32 1.0, %v2148
  %v2150 = vtanh.pop %v2137
  %v2151 = vmul.f32 %v2147, %v1904
  %2153 = vrot.lane.b32.xlu0 %v2150, 64
  %v2154 = vpop.permute.xlu0 %2153
  %v2156 = vmul.f32 %v2147, %v2154
  %2158 = vrot.lane.b32.xlu0 %v2156, 64
  %v2159 = vpop.permute.xlu0 %2158
  %v2161 = vadd.f32 %v2151, %v2159
  %v2162 = vtanh.pop %v2161
  %2164 = vrot.lane.b32.xlu0 %v2162, 64
  %v2165 = vpop.permute.xlu0 %2164
  %v2167 = vmul.f32 %v2149, %v2165
  %v2168 = vsel %vm85, %v2167, %v2161
  %v2169 = vpack.c.bf16 %v2168, %v2168
  %2170 = vmatprep.subr.bf16.mxu0 %v289
  %2171 = vmatpush1.bf16.msra.mxu0 %v288
  %2172 = vmatprep.subr.bf16.mxu0 %v292
  %2173 = vmatpush1.bf16.msra.mxu0 %v291
  %2174 = vmatprep.subr.bf16.mxu0 %v295
  %2175 = vmatpush1.bf16.msra.mxu0 %v294
  %2176 = vmatprep.subr.bf16.mxu0 %v298
  %2177 = vmatpush1.bf16.msra.mxu0 %v297
  %2178 = vmatprep.subr.bf16.mxu0 %v301
  %2179 = vmatpush1.bf16.msra.mxu0 %v300
  %2180 = vmatprep.subr.bf16.mxu0 %v304
  %2181 = vmatpush1.bf16.msra.mxu0 %v303
  %2182 = vmatprep.subr.bf16.mxu0 %v307
  %2183 = vmatpush1.bf16.msra.mxu0 %v306
  %2184 = vmatprep.subr.bf16.mxu0 %v310
  %2185 = vmatpush1.bf16.msra.mxu0 %v309
  %2186 = vmatprep.subr.bf16.mxu0 0
  %2187 = vmatpush1.bf16.msra.mxu0 0
  %2188 = vmatprep.subr.bf16.mxu0 0
  %2189 = vmatpush1.bf16.msra.mxu0 0
  %2190 = vmatprep.subr.bf16.mxu0 0
  %2191 = vmatpush1.bf16.msra.mxu0 0
  %2192 = vmatprep.subr.bf16.mxu0 0
  %2193 = vmatpush1.bf16.msra.mxu0 0
  %2194 = vmatprep.subr.bf16.mxu0 0
  %2195 = vmatpush1.bf16.msra.mxu0 0
  %2196 = vmatprep.subr.bf16.mxu0 0
  %2197 = vmatpush1.bf16.msra.mxu0 0
  %2198 = vmatprep.subr.bf16.mxu0 0
  %2199 = vmatpush1.bf16.msra.mxu0 0
  %2200 = vmatprep.subr.bf16.mxu0 0
  %2201 = vmatpush1.bf16.msra.mxu0 0
  %2202 = vmatprep.mubr.bf16.mxu0 0
  %2203 = vmatmul.mubr.bf16.gmra.mrb[0].mxu0 %v2169
  %v2204 = vpop.f32.mrb[0].mxu0
  %v2205 = vadd.f32 0.0, %v2204
  %v2206 = vpop.f32.mrb[0].mxu0
  %v2207 = vadd.f32 0.0, %v2206
  %v2208 = vpop.f32.mrb[0].mxu0
  %v2209 = vpop.f32.mrb[0].mxu0
  %2210 = vdwg.mxu0
  %2211 = vmatprep.subr.bf16.mxu0 0
  %2212 = vmatpush1.bf16.msra.mxu0 %v290
  %2213 = vmatprep.subr.bf16.mxu0 0
  %2214 = vmatpush1.bf16.msra.mxu0 %v293
  %2215 = vmatprep.subr.bf16.mxu0 0
  %2216 = vmatpush1.bf16.msra.mxu0 %v296
  %2217 = vmatprep.subr.bf16.mxu0 0
  %2218 = vmatpush1.bf16.msra.mxu0 %v299
  %2219 = vmatprep.subr.bf16.mxu0 0
  %2220 = vmatpush1.bf16.msra.mxu0 %v302
  %2221 = vmatprep.subr.bf16.mxu0 0
  %2222 = vmatpush1.bf16.msra.mxu0 %v305
  %2223 = vmatprep.subr.bf16.mxu0 0
  %2224 = vmatpush1.bf16.msra.mxu0 %v308
  %2225 = vmatprep.subr.bf16.mxu0 0
  %2226 = vmatpush1.bf16.msra.mxu0 %v311
  %2227 = vmatprep.subr.bf16.mxu0 0
  %2228 = vmatpush1.bf16.msra.mxu0 0
  %2229 = vmatprep.subr.bf16.mxu0 0
  %2230 = vmatpush1.bf16.msra.mxu0 0
  %2231 = vmatprep.subr.bf16.mxu0 0
  %2232 = vmatpush1.bf16.msra.mxu0 0
  %2233 = vmatprep.subr.bf16.mxu0 0
  %2234 = vmatpush1.bf16.msra.mxu0 0
  %2235 = vmatprep.subr.bf16.mxu0 0
  %2236 = vmatpush1.bf16.msra.mxu0 0
  %2237 = vmatprep.subr.bf16.mxu0 0
  %2238 = vmatpush1.bf16.msra.mxu0 0
  %2239 = vmatprep.subr.bf16.mxu0 0
  %2240 = vmatpush1.bf16.msra.mxu0 0
  %2241 = vmatprep.subr.bf16.mxu0 0
  %2242 = vmatpush1.bf16.msra.mxu0 0
  %2243 = vmatprep.mubr.bf16.mxu0 0
  %2244 = vmatmul.mubr.bf16.gmra.mrb[0].mxu0 %v2169
  %v2245 = vpop.f32.mrb[0].mxu0
  %v2246 = vadd.f32 0.0, %v2245
  %v2247 = vpop.f32.mrb[0].mxu0
  %v2248 = vpop.f32.mrb[0].mxu0
  %v2249 = vpop.f32.mrb[0].mxu0
  %2250 = vdwg.mxu0
  %v2253 = vunpack.c.l.s4 1966171168
  %v2254 = vunpack.c.0.s8 %v2253
  %v2255 = vlaneseq
  %v2256 = vshrl.u32 %v2255, 7
  %v2257 = vsub.s32 %v2254, %v2256
  %v2258 = vrot.slane %v2246, %v2257
  %v2259 = vcombine.high %v2258, %v2258
  %v2261 = vunpack.c.l.s4 1966171168
  %v2262 = vunpack.c.0.s8 %v2261
  %v2263 = vlaneseq
  %v2264 = vshrl.u32 %v2263, 7
  %v2265 = vsub.s32 %v2262, %v2264
  %v2266 = vrot.slane %v2258, %v2265
  %v2268 = vunpack.c.l.s4 1966171168
  %v2269 = vunpack.c.0.s8 %v2268
  %v2270 = vlaneseq
  %v2271 = vshrl.u32 %v2270, 7
  %v2272 = vsub.s32 %v2269, %v2271
  %v2273 = vrot.slane %v2259, %v2272
  %v2274 = vlaneseq
  %v2275 = vshrl.u32 %v2274, 7
  %v2276 = vsub.s32 0, %v2275
  %v2277 = vrot.slane %v2266, %v2276
  %v2278 = vlaneseq
  %v2279 = vshrl.u32 %v2278, 7
  %v2280 = vsub.s32 0, %v2279
  %v2281 = vrot.slane %v2273, %v2280
  %2284 = vrot.lane.b32.xlu0 %v2277, 96
  %v2285 = vpop.permute.xlu0 %2284
  %2286 = vrot.lane.b32.xlu0 %v2281, 96
  %v2287 = vpop.permute.xlu0 %2286
  %v2290 = vsel %vm443, %v2277, %v2285
  %v2291 = vsel %vm443, %v2281, %v2287
  %v2292 = vadd.f32 %v440, %v2290
  %v2293 = vadd.f32 %v441, %v2291
  %v2294 = vtanh.pop %v2292
  %v2295 = vtanh.pop %v2293
  %v2296 = vmul.f32 %v2294, %v471
  %v2297 = vmul.f32 %v2295, %v471
  %v2298 = vsel %vm139, %v2296, 0.0
  %2299 = vadd.xlane.f32.xlu0 %v2298
  %v2300 = vpop.xlane.xlu0 %2299
  %v2301 = vsel %vm139, %v2297, 0.0
  %2302 = vadd.xlane.f32.xlu0 %v2301
  %v2303 = vpop.xlane.xlu0 %2302
  %v2304 = vrot.slane %v2300, 4
  %v2305 = vmax.f32 %v2300, %v2304
  %v2306 = vrot.slane %v2305, 2
  %v2307 = vmax.f32 %v2305, %v2306
  %v2308 = vrot.slane %v2307, 1
  %v2309 = vmax.f32 %v2307, %v2308
  %v2310 = vrot.slane %v2303, 4
  %v2311 = vmax.f32 %v2303, %v2310
  %v2312 = vrot.slane %v2311, 2
  %v2313 = vmax.f32 %v2311, %v2312
  %v2314 = vrot.slane %v2313, 1
  %v2315 = vmax.f32 %v2313, %v2314
  %v2316 = vsub.f32 %v2300, %v2309
  %v2317 = vsub.f32 %v2303, %v2315
  %v2318 = vmul.f32 %v2316, 1.442695
  %v2319 = vpow.pop %v2318
  %v2320 = vmul.f32 %v2317, 1.442695
  %v2321 = vpow.pop %v2320
  %v2322 = vrot.slane %v2319, 4
  %v2323 = vadd.f32 %v2319, %v2322
  %v2324 = vrot.slane %v2323, 2
  %v2325 = vadd.f32 %v2323, %v2324
  %v2326 = vrot.slane %v2325, 1
  %v2327 = vadd.f32 %v2325, %v2326
  %v2328 = vrot.slane %v2321, 4
  %v2329 = vadd.f32 %v2321, %v2328
  %v2330 = vrot.slane %v2329, 2
  %v2331 = vadd.f32 %v2329, %v2330
  %v2332 = vrot.slane %v2331, 1
  %v2333 = vadd.f32 %v2331, %v2332
  %v2334 = vrcp.pop %v2327
  %v2335 = vrcp.pop %v2333
  %v2336 = vmul.f32 %v2319, %v2334
  %v2337 = vmul.f32 %v2321, %v2335
  %v2338 = vadd.f32 %v2081, %v2336
  %v2339 = vadd.f32 %v2082, %v2337
  %v2340 = vmul.f32 %v2336, %v517
  %v2341 = vmul.f32 %v2337, %v518
  %v2342 = vsel %vm521, %v2340, 0.0
  %v2343 = vrot.slane %v2342, 4
  %v2344 = vadd.f32 %v2342, %v2343
  %v2345 = vrot.slane %v2344, 2
  %v2346 = vadd.f32 %v2344, %v2345
  %v2347 = vrot.slane %v2346, 1
  %v2348 = vadd.f32 %v2346, %v2347
  %v2349 = vsel %vm521, %v2341, 0.0
  %v2350 = vrot.slane %v2349, 4
  %v2351 = vadd.f32 %v2349, %v2350
  %v2352 = vrot.slane %v2351, 2
  %v2353 = vadd.f32 %v2351, %v2352
  %v2354 = vrot.slane %v2353, 1
  %v2355 = vadd.f32 %v2353, %v2354
  %v2356 = vld [vmem:[%s1] sm:$0x3]
  %v2358 = vrot.slane %v2356, 1
  %2359 = vrot.lane.b32.xlu0 %v2356, 121
  %v2360 = vpop.permute.xlu0 %2359
  %2361 = vrot.lane.b32.xlu0 %v2358, 121
  %v2362 = vpop.permute.xlu0 %2361
  %v2365 = vadd.f32 %v2348, %v2360
  %v2366 = vadd.f32 %v2355, %v2362
  %2368 = vset.pattern.permute.xlu0 0
  %2369 = vperm.xlu0 %2368, %v2365
  %v2370 = vpop.permute.xlu0 %2369
  %2373 = vset.pattern.permute.xlu0 0
  %2374 = vperm.xlu0 %2373, %v2366
  %v2375 = vpop.permute.xlu0 %2374
  %v2377 = vmul.f32 %v2370, %v558
  %v2378 = vmul.f32 %v2370, %v562
  %v2379 = vmul.f32 %v2375, %v558
  %v2380 = vmul.f32 %v2375, %v562
  %v2385 = vrot.slane %v2379, 7
  %v2386 = vsel %vm574, %v2385, %v2377
  %v2387 = vrot.slane %v2380, 7
  %v2388 = vsel %vm574, %v2387, %v2378
  %v2391 = vadd.f32 %v2205, %v2386
  %v2392 = vadd.f32 %v2207, %v2388
  %v2393 = vadd.f32 %v2391, %v587
  %v2394 = vadd.f32 %v2392, %v591
  %v2395 = vxor.u32 %v2393, 2147483648
  %v2396 = vxor.u32 %v2394, 2147483648
  %v2397 = vmul.f32 %v2395, 1.442695
  %v2398 = vpow.pop %v2397
  %v2399 = vmul.f32 %v2396, 1.442695
  %v2400 = vpow.pop %v2399
  %v2401 = vadd.f32 %v2398, 1.0
  %v2402 = vadd.f32 %v2400, 1.0
  %v2403 = vrcp.pop %v2401
  %v2404 = vmul.f32 1.0, %v2403
  %v2405 = vrcp.pop %v2402
  %v2406 = vmul.f32 1.0, %v2405
  %v2407 = vtanh.pop %v2394
  %v2408 = vmul.f32 %v2404, %v2161
  %2410 = vrot.lane.b32.xlu0 %v2407, 64
  %v2411 = vpop.permute.xlu0 %2410
  %v2413 = vmul.f32 %v2404, %v2411
  %2415 = vrot.lane.b32.xlu0 %v2413, 64
  %v2416 = vpop.permute.xlu0 %2415
  %v2418 = vadd.f32 %v2408, %v2416
  %v2419 = vtanh.pop %v2418
  %2421 = vrot.lane.b32.xlu0 %v2419, 64
  %v2422 = vpop.permute.xlu0 %2421
  %v2424 = vmul.f32 %v2406, %v2422
  %v2425 = vmul.f32 %v2338, 0.125
  %v2426 = vmul.f32 %v2339, 0.125
  %2427 = vst.msk [vmem:[%s12] sm:$0xff] %vm521, %v2425
  %2428 = vst.msk [vmem:[%s12 + $0x8] sm:$0xff] %vm521, %v2426
  %v2429 = vld [vmem:[#allocation3] sm:$0xff]
  %v2430 = vld [vmem:[#allocation3 + $0x8] sm:$0xff]
  %v2431 = vmul.f32 %v2336, %v2429
  %v2432 = vmul.f32 %v2337, %v2430
  %vm2433 = vcmask 15368
  %v2434 = vsel %vm2433, %v2431, 0.0
  %v2435 = vrot.slane %v2434, 4
  %v2436 = vadd.f32 %v2434, %v2435
  %v2437 = vrot.slane %v2436, 2
  %v2438 = vadd.f32 %v2436, %v2437
  %v2439 = vrot.slane %v2438, 1
  %v2440 = vadd.f32 %v2438, %v2439
  %v2441 = vsel %vm2433, %v2432, 0.0
  %v2442 = vrot.slane %v2441, 4
  %v2443 = vadd.f32 %v2441, %v2442
  %v2444 = vrot.slane %v2443, 2
  %v2445 = vadd.f32 %v2443, %v2444
  %v2446 = vrot.slane %v2445, 1
  %v2447 = vadd.f32 %v2445, %v2446
  %v2448 = vld [vmem:[%s10] sm:$0x1]
  %v2450 = vlaneseq
  %v2451 = vshrl.u32 %v2450, 7
  %v2452 = vsub.s32 0, %v2451
  %v2453 = vrot.slane %v2448, %v2452
  %v2455 = vmul.f32 %v2424, %v2453
  %vm2456 = vcmask 254976
  %v2457 = vsel %vm2456, %v2455, 0.0
  %2458 = vadd.xlane.f32.xlu0 %v2457
  %v2459 = vpop.xlane.xlu0 %2458
  %v2462 = vsel %vm574, %v2447, %v2440
  %2463 = vrot.lane.b32.xlu0 %v2462, 127
  %v2464 = vpop.permute.xlu0 %2463
  %v2466 = vadd.f32 %v2459, %v2464
  %v2467 = vld [vmem:[#allocation4] sm:$0x1]
  %v2469 = vlaneseq
  %v2470 = vshrl.u32 %v2469, 7
  %v2471 = vsub.s32 0, %v2470
  %v2472 = vrot.slane %v2467, %v2471
  %v2474 = vadd.f32 %v2466, %v2472
  %vm2475 = vcmask 1024
  %2476 = vst.msk [vmem:[%s13] sm:$0x3] %vm2475, %v2474
  // Predicated region
  $region50: #{tpu_custom_call.1} parent=0 // pred_check
    _
  $region51: #{tpu_custom_call.1} parent=0 // pred_check_branch
    %2478 = sbr.rel (0) target = $region53
  $region52: #{tpu_custom_call.1} parent=0 // pred_region
    _
  $region53: #{tpu_custom_call.1} parent=0 // pred_fallthru
    _
  // Predicated region
  $region54: #{tpu_custom_call.1} parent=0 // pred_check
    _
  $region55: #{tpu_custom_call.1} parent=0 // pred_check_branch
    %2480 = sbr.rel (0) target = $region57
  $region56: #{tpu_custom_call.1} parent=0 // pred_region
    _
  $region57: #{tpu_custom_call.1} parent=0 // pred_fallthru
    _
  // Predicated region
  $region58: #{tpu_custom_call.1} parent=0 // pred_check
    _
  $region59: #{tpu_custom_call.1} parent=0 // pred_check_branch
    %2482 = sbr.rel (0) target = $region61
  $region60: #{tpu_custom_call.1} parent=0 // pred_region
    _
  $region61: #{tpu_custom_call.1} parent=0 // pred_fallthru
    _
  // Predicated region
  $region62: #{tpu_custom_call.1} parent=0 // pred_check
    _
  $region63: #{tpu_custom_call.1} parent=0 // pred_check_branch
    %2484 = sbr.rel (0) target = $region65
  $region64: #{tpu_custom_call.1} parent=0 // pred_region
    _
  $region65: #{tpu_custom_call.1} parent=0 // pred_fallthru
    _

</llo_original>
